<compile_context>
chip_gen: v6e
topology: v6e:2x2x1
jax: 0.10.0
libtpu: 0.0.40
codegen_flags: <defaults>
</compile_context>

<pallas_src>
import functools

import jax
import jax.numpy as jnp
import numpy as np
from jax.experimental import pallas as pl
from jax.experimental.pallas import tpu as pltpu


_PACK = 32            # 32 boxes * 4 coords = 128 lanes (one full vreg width)
_MIN_GRID_STEPS = 8   # >= 4 steps per TensorCore on 2-core (v7x) chips


def _box_embed_kernel(x_ref, w_ref, b_ref, o_ref, *, precision):
    # x_ref: (tm, 128)            packed box rows
    # w_ref: (128, 32*H)          block-diagonal weight (resident across steps)
    # b_ref: (1, 32*H)            tiled bias (resident)
    # o_ref: (tm, 32*H)           lane-dense output
    y = jnp.dot(x_ref[...], w_ref[...],
                preferred_element_type=jnp.float32,
                precision=precision)
    o_ref[...] = jnp.maximum(y + b_ref[...], 0.0).astype(o_ref.dtype)


def pack_box_embed_params(weight, bias):
    """Build the block-diagonal weight / tiled bias ONCE per parameter set.

    w_big[p*4 + k, q*H + h] = (p == q) * weight[k, h]
    """
    in_feat, hidden = weight.shape
    eye = jnp.eye(_PACK, dtype=weight.dtype)
    w_big = jnp.einsum("pq,kh->pkqh", eye, weight).reshape(
        _PACK * in_feat, _PACK * hidden)
    b_big = jnp.tile(bias, _PACK).reshape(1, _PACK * hidden)
    return w_big, b_big


def _box_embed_packed(x, w_big, b_big, hidden, out_dtype, precision, tm_max):
    """Kernel path for a row count that is a multiple of _PACK."""
    n_rows, in_feat = x.shape
    n_packed = n_rows // _PACK
    kx = _PACK * in_feat          # 128
    kn = _PACK * hidden

    x_packed = x.reshape(n_packed, kx)        # free contiguous reshape

    in_row_bytes = x.dtype.itemsize * kx
    out_row_bytes = np.dtype(out_dtype).itemsize * kn
    # Grid-invariant operands still get 2 pipeline buffers each -> count 2x.
    const_bytes = 2 * (w_big.size * w_big.dtype.itemsize
                       + b_big.size * b_big.dtype.itemsize)

    # Generation-aware VMEM budget (v7x: 64 MiB physical/core; v5e/v6e: 128).
    try:
        vmem_cap = pltpu.get_tpu_info().vmem_capacity_bytes
    except Exception:  # pragma: no cover - conservative fallback off-TPU
        vmem_cap = 64 * 1024 * 1024
    budget = min(vmem_cap // 4, 24 * 1024 * 1024)
    # TODO(synk): for hidden >~ 768 the resident block-diagonal weight alone
    # outgrows this budget; tile the feature axis with a second grid dim there.
    tm = (budget - const_bytes) // (2 * (in_row_bytes + out_row_bytes))
    tm = max(8, min(int(tm), tm_max))

    if n_packed <= 8:
        tm = n_packed                          # single tiny block == full array
    else:
        # Keep >= _MIN_GRID_STEPS grid steps so the pipeline overlaps DMA with
        # compute and both TensorCores get work on 2-core chips.
        tm = min(tm, max(8, -(-n_packed // _MIN_GRID_STEPS)))
        tm = max(8, (tm // 8) * 8)             # ragged last block is masked
    grid = (pl.cdiv(n_packed, tm),)

    cost = pl.CostEstimate(
        flops=2 * n_packed * kx * kn,
        transcendentals=0,
        bytes_accessed=(n_packed * (in_row_bytes + out_row_bytes)
                        + const_bytes // 2),
    )

    out = pl.pallas_call(
        functools.partial(_box_embed_kernel, precision=precision),
        out_shape=jax.ShapeDtypeStruct((n_packed, kn), out_dtype),
        grid_spec=pl.GridSpec(
            grid=grid,
            in_specs=[
                pl.BlockSpec((tm, kx), lambda i: (i, 0)),
                pl.BlockSpec((kx, kn), lambda i: (0, 0)),   # resident weight
                pl.BlockSpec((1, kn), lambda i: (0, 0)),    # resident bias
            ],
            out_specs=pl.BlockSpec((tm, kn), lambda i: (i, 0)),
        ),
        compiler_params=pltpu.CompilerParams(
            dimension_semantics=("parallel",),
            vmem_limit_bytes=32 * 1024 * 1024,
        ),
        cost_estimate=cost,
    )(x_packed, w_big, b_big)

    return out.reshape(n_rows, hidden)         # free contiguous reshape


def pie_feature_extractor(inputs, weight, bias, *, packed_params=None,
                          out_dtype=None,
                          precision=jax.lax.Precision.HIGHEST,
                          tm_max=2048):
    """ReLU(inputs @ weight + bias) applied to the last axis.

    inputs: (..., 4) float32;  weight: (4, hidden);  bias: (hidden,)
    returns (..., hidden) in `out_dtype` (defaults to inputs.dtype).
    Pass `packed_params=pack_box_embed_params(weight, bias)` to amortize the
    block-diagonal weight construction across calls.
    """
    lead_shape = inputs.shape[:-1]
    in_feat = inputs.shape[-1]
    hidden = weight.shape[1]
    out_dtype = inputs.dtype if out_dtype is None else out_dtype

    if packed_params is None:
        packed_params = pack_box_embed_params(weight, bias)
    w_big, b_big = packed_params

    x = inputs.reshape(-1, in_feat)
    n_rows = x.shape[0]
    n_main = (n_rows // _PACK) * _PACK

    pieces = []
    if n_main > 0:
        x_main = x if n_main == n_rows else x[:n_main]
        pieces.append(_box_embed_packed(x_main, w_big, b_big, hidden,
                                        out_dtype, precision, tm_max))
    if n_main < n_rows:
        # <= 31 leftover boxes: plain jnp (VPU-sized) beats padding the whole
        # input + re-slicing the whole output just for the ragged tail.
        tail = x[n_main:]
        tail_out = jnp.maximum(
            jnp.dot(tail, weight, preferred_element_type=jnp.float32,
                    precision=precision) + bias, 0.0)
        pieces.append(tail_out.astype(out_dtype))

    out = pieces[0] if len(pieces) == 1 else jnp.concatenate(pieces, axis=0)
    return out.reshape(*lead_shape, hidden)


def _reference(inputs, weight, bias):
    y = jnp.einsum("...i,ij->...j", inputs, weight,
                   precision=jax.lax.Precision.HIGHEST) + bias
    return jnp.maximum(y, 0.0)


if __name__ == "__main__":
    key = jax.random.PRNGKey(0)
    k_w, k_b, k_x1, k_x2, k_x3 = jax.random.split(key, 5)

    hidden = 32  # args.hidden_size
    # nn.Linear(4, hidden)-style init: U(-1/sqrt(4), 1/sqrt(4)) = U(-0.5, 0.5).
    weight = jax.random.uniform(k_w, (4, hidden), jnp.float32, -0.5, 0.5)
    bias = jax.random.uniform(k_b, (hidden,), jnp.float32, -0.5, 0.5)
    packed = pack_box_embed_params(weight, bias)   # hoisted once per param set

    # 1) Aligned case (4*32 = 128 boxes = 4 packed rows): pure kernel path.
    x1 = jax.random.normal(k_x1, (4, 32, 4), jnp.float32)
    o1 = jax.block_until_ready(
        pie_feature_extractor(x1, weight, bias, packed_params=packed))
    assert o1.shape == (4, 32, hidden), o1.shape
    assert jnp.allclose(o1, _reference(x1, weight, bias), atol=1e-5, rtol=1e-5)

    # 2) Ragged case (300 boxes): multi-step grid over the 288-row prefix
    #    (masked partial last block) + 12-row jnp tail.
    x2 = jax.random.normal(k_x2, (4, 75, 4), jnp.float32)
    o2 = jax.block_until_ready(
        pie_feature_extractor(x2, weight, bias, packed_params=packed))
    assert o2.shape == (4, 75, hidden), o2.shape
    assert jnp.allclose(o2, _reference(x2, weight, bias), atol=1e-5, rtol=1e-5)

    # 3) Tiny input (< 32 boxes): tail-only path.
    x3 = jax.random.normal(k_x3, (2, 8, 4), jnp.float32)
    o3 = jax.block_until_ready(
        pie_feature_extractor(x3, weight, bias, packed_params=packed))
    assert o3.shape == (2, 8, hidden), o3.shape
    assert jnp.allclose(o3, _reference(x3, weight, bias), atol=1e-5, rtol=1e-5)

    # 4) Optional bf16 output (halves the dominant HBM write stream).
    o4 = jax.block_until_ready(pie_feature_extractor(
        x1, weight, bias, packed_params=packed, out_dtype=jnp.bfloat16))
    assert o4.dtype == jnp.bfloat16
    assert jnp.allclose(o4.astype(jnp.float32), _reference(x1, weight, bias),
                        atol=3e-2, rtol=3e-2)

    print("KERNEL_OK")
</pallas_src>

<mosaic_0001>
module attributes {stable_mosaic.version = 11 : i64} {
  func.func @_box_embed_kernel(%arg0: i32, %arg1: memref<4x128xf32, #tpu.memory_space<vmem>>, %arg2: memref<128x1024xf32, #tpu.memory_space<vmem>>, %arg3: memref<1x1024xf32, #tpu.memory_space<vmem>>, %arg4: memref<4x1024xf32, #tpu.memory_space<vmem>>) attributes {dimension_semantics = [#tpu.dimension_semantics<parallel>], iteration_bounds = array<i64: 1>, scalar_prefetch = 0 : i64, scratch_operands = 0 : i64, tpu.core_type = #tpu.core_type<tc>, window_params = [{transform_indices = @transform_0, window_bounds = array<i64: 4, 128>}, {pipeline_mode = #tpu.pipeline_mode<synchronous>, transform_indices = @transform_1, window_bounds = array<i64: 128, 1024>}, {pipeline_mode = #tpu.pipeline_mode<synchronous>, transform_indices = @transform_2, window_bounds = array<i64: 1, 1024>}, {transform_indices = @transform_3, window_bounds = array<i64: 4, 1024>}]} {
    %c0 = arith.constant 0 : index
    %c0_0 = arith.constant 0 : index
    %0 = vector.load %arg1[%c0, %c0_0] : memref<4x128xf32, #tpu.memory_space<vmem>>, vector<4x128xf32>
    %c0_1 = arith.constant 0 : index
    %c0_2 = arith.constant 0 : index
    %1 = vector.load %arg2[%c0_1, %c0_2] : memref<128x1024xf32, #tpu.memory_space<vmem>>, vector<128x1024xf32>
    %cst = arith.constant dense<0.000000e+00> : vector<4x1024xf32>
    %2 = tpu.matmul %0, %1, %cst {dimension_numbers = #tpu.dot_dimension_numbers<[1], [0], [0], [1], [0, 0, 1, 1], [], []>, precision = #tpu.contract_precision<fp32>} : vector<4x128xf32>, vector<128x1024xf32>, vector<4x1024xf32> -> vector<4x1024xf32>
    %c0_3 = arith.constant 0 : index
    %c0_4 = arith.constant 0 : index
    %3 = vector.load %arg3[%c0_3, %c0_4] : memref<1x1024xf32, #tpu.memory_space<vmem>>, vector<1x1024xf32>
    %4 = vector.broadcast %3 : vector<1x1024xf32> to vector<4x1024xf32>
    %5 = arith.addf %2, %4 : vector<4x1024xf32>
    %cst_5 = arith.constant 0.000000e+00 : f32
    %6 = vector.broadcast %cst_5 : f32 to vector<4x1024xf32>
    %7 = arith.maximumf %5, %6 : vector<4x1024xf32>
    %c0_6 = arith.constant 0 : index
    %c0_7 = arith.constant 0 : index
    %8 = vector.load %arg4[%c0_6, %c0_7] : memref<4x1024xf32, #tpu.memory_space<vmem>>, vector<4x1024xf32>
    tpu.vector_store %arg4[%c0_6, %c0_7], %7 {strides = array<i32>} : memref<4x1024xf32, #tpu.memory_space<vmem>>, vector<4x1024xf32>,
    return
  }
  func.func @transform_0(%arg0: i32) -> (i32, i32) {
    %c0_i32 = arith.constant 0 : i32
    %c0_i32_0 = arith.constant 0 : i32
    return %arg0, %c0_i32 : i32, i32
  }
  func.func @transform_1(%arg0: i32) -> (i32, i32) {
    %c0_i32 = arith.constant 0 : i32
    %c0_i32_0 = arith.constant 0 : i32
    %c0_i32_1 = arith.constant 0 : i32
    return %c0_i32, %c0_i32_0 : i32, i32
  }
  func.func @transform_2(%arg0: i32) -> (i32, i32) {
    %c0_i32 = arith.constant 0 : i32
    %c0_i32_0 = arith.constant 0 : i32
    %c0_i32_1 = arith.constant 0 : i32
    return %c0_i32, %c0_i32_0 : i32, i32
  }
  func.func @transform_3(%arg0: i32) -> (i32, i32) {
    %c0_i32 = arith.constant 0 : i32
    %c0_i32_0 = arith.constant 0 : i32
    return %arg0, %c0_i32 : i32, i32
  }
}

</mosaic_0001>

<llo_original>
// kernel: tpu_custom_call.1
$region0: #{tpu_custom_call.1}
  #allocation0 [shape = 'u32[]', space=smem, size = 0x4, offset = 0x4, fixed_abs, tag = 'smem constant byte address 0x4 - core index']
  #allocation1 [shape = 'u32[144,128]{1,0:T(1,128)}', space=vmem, size = 0x12000, scoped, tag = 'internal scratch']
  %s0 = inlined_call_operand.hbm [shape: f32[4,128], index: 0, kind: input, shape index: {}]
  %s1 = inlined_call_operand.hbm [shape: f32[128,1024], index: 1, kind: input, shape index: {}]
  %s2 = inlined_call_operand.hbm [shape: f32[1,1024], index: 2, kind: input, shape index: {}]
  %s3 = inlined_call_operand.hbm [shape: f32[4,1024], index: 3, kind: output, shape index: {}]
  %s4 = sld [smem:[#allocation0]]
  $region34: #{tpu_custom_call.1} parent=0
    _
  %s6 = ssub.s32 1, %s4
  %s7 = scalar_select 0, %s6, %s4
  $region1: #{tpu_custom_call.1} parent=0
    #allocation2 [shape = 'u8[2048]{0}', space=vmem, size = 0x800, scoped, tag = 'input window, operand 0, single buffered']
    #allocation3 [shape = 's32[1]{0}', space=sflag, size = 0x4, scoped, tag = 'scoped memory for tpu_custom_call.1']
    #allocation4 [shape = 's32[1]{0}', space=sflag, size = 0x4, scoped, tag = 'scoped memory for tpu_custom_call.1']
    #allocation5 [shape = 'u8[524288]{0}', space=vmem, size = 0x80000, scoped, tag = 'input window, operand 1, single buffered']
    #allocation6 [shape = 's32[1]{0}', space=sflag, size = 0x4, scoped, tag = 'scoped memory for tpu_custom_call.1']
    #allocation7 [shape = 'u8[4096]{0}', space=vmem, size = 0x1000, scoped, tag = 'input window, operand 2, single buffered']
    #allocation8 [shape = 'u8[16384]{0}', space=vmem, size = 0x4000, scoped, tag = 'output window, operand 0, single buffered']
    %8 = vsyncpa [#allocation3], 0
    %9 = vsyncpa [#allocation6], 0
    %10 = vsyncpa [#allocation4], 0
    // Predicated region
    $region2: #{tpu_custom_call.1} parent=1 // pred_check
      _
    $region3: #{tpu_custom_call.1} parent=1 // pred_check_branch
      %12 = sbr.rel (0) target = $region5
    $region4: #{tpu_custom_call.1} parent=1 // pred_region
      %s14 = ssub.s32 64, 64
      %15 = vsyncadd [#allocation3], %s14
      %s17 = sshll.u32 [#allocation2], 4
      %s18 = int_to_ptr.vmem [resolvable:$true] %s17
      %20 = dma.hbm_to_vmem [thread:$0]  %s0, 64, %s18, [#allocation3]
    $region5: #{tpu_custom_call.1} parent=1 // pred_fallthru
      _
    // Predicated region
    $region6: #{tpu_custom_call.1} parent=1 // pred_check
      _
    $region7: #{tpu_custom_call.1} parent=1 // pred_check_branch
      %22 = sbr.rel (0) target = $region9
    $region8: #{tpu_custom_call.1} parent=1 // pred_region
      %s24 = ssub.s32 16384, 16384
      %25 = vsyncadd [#allocation6], %s24
      %s26 = sshll.u32 [#allocation5], 4
      %s27 = int_to_ptr.vmem [resolvable:$true] %s26
      %32 = dma.hbm_to_vmem [thread:$0]  %s1, 16384, %s27, [#allocation6], 1024, 1024, 64
    $region9: #{tpu_custom_call.1} parent=1 // pred_fallthru
      _
    // Predicated region
    $region10: #{tpu_custom_call.1} parent=1 // pred_check
      _
    $region11: #{tpu_custom_call.1} parent=1 // pred_check_branch
      %34 = sbr.rel (0) target = $region13
    $region12: #{tpu_custom_call.1} parent=1 // pred_region
      %s36 = ssub.s32 128, 128
      %37 = vsyncadd [#allocation6], %s36
      %s39 = sshll.u32 [#allocation7], 4
      %s40 = int_to_ptr.vmem [resolvable:$true] %s39
      %42 = dma.hbm_to_vmem [thread:$0]  %s2, 128, %s40, [#allocation6]
    $region13: #{tpu_custom_call.1} parent=1 // pred_fallthru
      _
    // Predicated region
    $region14: #{tpu_custom_call.1} parent=1 // pred_check
      _
    $region15: #{tpu_custom_call.1} parent=1 // pred_check_branch
      %44 = sbr.rel (0) target = $region17
    $region16: #{tpu_custom_call.1} parent=1 // pred_region
      %45 = dma.done [#allocation3], 64
    $region17: #{tpu_custom_call.1} parent=1 // pred_fallthru
      _
    // Predicated region
    $region18: #{tpu_custom_call.1} parent=1 // pred_check
      _
    $region19: #{tpu_custom_call.1} parent=1 // pred_check_branch
      %47 = sbr.rel (0) target = $region21
    $region20: #{tpu_custom_call.1} parent=1 // pred_region
      %48 = dma.done [#allocation6], 16384
    $region21: #{tpu_custom_call.1} parent=1 // pred_fallthru
      _
    // Predicated region
    $region22: #{tpu_custom_call.1} parent=1 // pred_check
      _
    $region23: #{tpu_custom_call.1} parent=1 // pred_check_branch
      %50 = sbr.rel (0) target = $region25
    $region24: #{tpu_custom_call.1} parent=1 // pred_region
      %51 = dma.done [#allocation6], 128
    $region25: #{tpu_custom_call.1} parent=1 // pred_fallthru
      _
    %v52 = vld [vmem:[#allocation2] sm:$0xf]
    %v53 = vld [vmem:[#allocation5] sm:$0xff]
    %v54 = vld [vmem:[#allocation5 + $0x8] sm:$0xff]
    %v55 = vld [vmem:[#allocation5 + $0x10] sm:$0xff]
    %v56 = vld [vmem:[#allocation5 + $0x18] sm:$0xff]
    %v57 = vld [vmem:[#allocation5 + $0x20] sm:$0xff]
    %v58 = vld [vmem:[#allocation5 + $0x28] sm:$0xff]
    %v59 = vld [vmem:[#allocation5 + $0x30] sm:$0xff]
    %v60 = vld [vmem:[#allocation5 + $0x38] sm:$0xff]
    %v61 = vld [vmem:[#allocation5 + $0x40] sm:$0xff]
    %v62 = vld [vmem:[#allocation5 + $0x48] sm:$0xff]
    %v63 = vld [vmem:[#allocation5 + $0x50] sm:$0xff]
    %v64 = vld [vmem:[#allocation5 + $0x58] sm:$0xff]
    %v65 = vld [vmem:[#allocation5 + $0x60] sm:$0xff]
    %v66 = vld [vmem:[#allocation5 + $0x68] sm:$0xff]
    %v67 = vld [vmem:[#allocation5 + $0x70] sm:$0xff]
    %v68 = vld [vmem:[#allocation5 + $0x78] sm:$0xff]
    %v69 = vld [vmem:[#allocation5 + $0x80] sm:$0xff]
    %v70 = vld [vmem:[#allocation5 + $0x88] sm:$0xff]
    %v71 = vld [vmem:[#allocation5 + $0x90] sm:$0xff]
    %v72 = vld [vmem:[#allocation5 + $0x98] sm:$0xff]
    %v73 = vld [vmem:[#allocation5 + $0xa0] sm:$0xff]
    %v74 = vld [vmem:[#allocation5 + $0xa8] sm:$0xff]
    %v75 = vld [vmem:[#allocation5 + $0xb0] sm:$0xff]
    %v76 = vld [vmem:[#allocation5 + $0xb8] sm:$0xff]
    %v77 = vld [vmem:[#allocation5 + $0xc0] sm:$0xff]
    %v78 = vld [vmem:[#allocation5 + $0xc8] sm:$0xff]
    %v79 = vld [vmem:[#allocation5 + $0xd0] sm:$0xff]
    %v80 = vld [vmem:[#allocation5 + $0xd8] sm:$0xff]
    %v81 = vld [vmem:[#allocation5 + $0xe0] sm:$0xff]
    %v82 = vld [vmem:[#allocation5 + $0xe8] sm:$0xff]
    %v83 = vld [vmem:[#allocation5 + $0xf0] sm:$0xff]
    %v84 = vld [vmem:[#allocation5 + $0xf8] sm:$0xff]
    %v85 = vld [vmem:[#allocation5 + $0x100] sm:$0xff]
    %v86 = vld [vmem:[#allocation5 + $0x108] sm:$0xff]
    %v87 = vld [vmem:[#allocation5 + $0x110] sm:$0xff]
    %v88 = vld [vmem:[#allocation5 + $0x118] sm:$0xff]
    %v89 = vld [vmem:[#allocation5 + $0x120] sm:$0xff]
    %v90 = vld [vmem:[#allocation5 + $0x128] sm:$0xff]
    %v91 = vld [vmem:[#allocation5 + $0x130] sm:$0xff]
    %v92 = vld [vmem:[#allocation5 + $0x138] sm:$0xff]
    %v93 = vld [vmem:[#allocation5 + $0x140] sm:$0xff]
    %v94 = vld [vmem:[#allocation5 + $0x148] sm:$0xff]
    %v95 = vld [vmem:[#allocation5 + $0x150] sm:$0xff]
    %v96 = vld [vmem:[#allocation5 + $0x158] sm:$0xff]
    %v97 = vld [vmem:[#allocation5 + $0x160] sm:$0xff]
    %v98 = vld [vmem:[#allocation5 + $0x168] sm:$0xff]
    %v99 = vld [vmem:[#allocation5 + $0x170] sm:$0xff]
    %v100 = vld [vmem:[#allocation5 + $0x178] sm:$0xff]
    %v101 = vld [vmem:[#allocation5 + $0x180] sm:$0xff]
    %v102 = vld [vmem:[#allocation5 + $0x188] sm:$0xff]
    %v103 = vld [vmem:[#allocation5 + $0x190] sm:$0xff]
    %v104 = vld [vmem:[#allocation5 + $0x198] sm:$0xff]
    %v105 = vld [vmem:[#allocation5 + $0x1a0] sm:$0xff]
    %v106 = vld [vmem:[#allocation5 + $0x1a8] sm:$0xff]
    %v107 = vld [vmem:[#allocation5 + $0x1b0] sm:$0xff]
    %v108 = vld [vmem:[#allocation5 + $0x1b8] sm:$0xff]
    %v109 = vld [vmem:[#allocation5 + $0x1c0] sm:$0xff]
    %v110 = vld [vmem:[#allocation5 + $0x1c8] sm:$0xff]
    %v111 = vld [vmem:[#allocation5 + $0x1d0] sm:$0xff]
    %v112 = vld [vmem:[#allocation5 + $0x1d8] sm:$0xff]
    %v113 = vld [vmem:[#allocation5 + $0x1e0] sm:$0xff]
    %v114 = vld [vmem:[#allocation5 + $0x1e8] sm:$0xff]
    %v115 = vld [vmem:[#allocation5 + $0x1f0] sm:$0xff]
    %v116 = vld [vmem:[#allocation5 + $0x1f8] sm:$0xff]
    %v117 = vld [vmem:[#allocation5 + $0x200] sm:$0xff]
    %v118 = vld [vmem:[#allocation5 + $0x208] sm:$0xff]
    %v119 = vld [vmem:[#allocation5 + $0x210] sm:$0xff]
    %v120 = vld [vmem:[#allocation5 + $0x218] sm:$0xff]
    %v121 = vld [vmem:[#allocation5 + $0x220] sm:$0xff]
    %v122 = vld [vmem:[#allocation5 + $0x228] sm:$0xff]
    %v123 = vld [vmem:[#allocation5 + $0x230] sm:$0xff]
    %v124 = vld [vmem:[#allocation5 + $0x238] sm:$0xff]
    %v125 = vld [vmem:[#allocation5 + $0x240] sm:$0xff]
    %v126 = vld [vmem:[#allocation5 + $0x248] sm:$0xff]
    %v127 = vld [vmem:[#allocation5 + $0x250] sm:$0xff]
    %v128 = vld [vmem:[#allocation5 + $0x258] sm:$0xff]
    %v129 = vld [vmem:[#allocation5 + $0x260] sm:$0xff]
    %v130 = vld [vmem:[#allocation5 + $0x268] sm:$0xff]
    %v131 = vld [vmem:[#allocation5 + $0x270] sm:$0xff]
    %v132 = vld [vmem:[#allocation5 + $0x278] sm:$0xff]
    %v133 = vld [vmem:[#allocation5 + $0x280] sm:$0xff]
    %v134 = vld [vmem:[#allocation5 + $0x288] sm:$0xff]
    %v135 = vld [vmem:[#allocation5 + $0x290] sm:$0xff]
    %v136 = vld [vmem:[#allocation5 + $0x298] sm:$0xff]
    %v137 = vld [vmem:[#allocation5 + $0x2a0] sm:$0xff]
    %v138 = vld [vmem:[#allocation5 + $0x2a8] sm:$0xff]
    %v139 = vld [vmem:[#allocation5 + $0x2b0] sm:$0xff]
    %v140 = vld [vmem:[#allocation5 + $0x2b8] sm:$0xff]
    %v141 = vld [vmem:[#allocation5 + $0x2c0] sm:$0xff]
    %v142 = vld [vmem:[#allocation5 + $0x2c8] sm:$0xff]
    %v143 = vld [vmem:[#allocation5 + $0x2d0] sm:$0xff]
    %v144 = vld [vmem:[#allocation5 + $0x2d8] sm:$0xff]
    %v145 = vld [vmem:[#allocation5 + $0x2e0] sm:$0xff]
    %v146 = vld [vmem:[#allocation5 + $0x2e8] sm:$0xff]
    %v147 = vld [vmem:[#allocation5 + $0x2f0] sm:$0xff]
    %v148 = vld [vmem:[#allocation5 + $0x2f8] sm:$0xff]
    %v149 = vld [vmem:[#allocation5 + $0x300] sm:$0xff]
    %v150 = vld [vmem:[#allocation5 + $0x308] sm:$0xff]
    %v151 = vld [vmem:[#allocation5 + $0x310] sm:$0xff]
    %v152 = vld [vmem:[#allocation5 + $0x318] sm:$0xff]
    %v153 = vld [vmem:[#allocation5 + $0x320] sm:$0xff]
    %v154 = vld [vmem:[#allocation5 + $0x328] sm:$0xff]
    %v155 = vld [vmem:[#allocation5 + $0x330] sm:$0xff]
    %v156 = vld [vmem:[#allocation5 + $0x338] sm:$0xff]
    %v157 = vld [vmem:[#allocation5 + $0x340] sm:$0xff]
    %v158 = vld [vmem:[#allocation5 + $0x348] sm:$0xff]
    %v159 = vld [vmem:[#allocation5 + $0x350] sm:$0xff]
    %v160 = vld [vmem:[#allocation5 + $0x358] sm:$0xff]
    %v161 = vld [vmem:[#allocation5 + $0x360] sm:$0xff]
    %v162 = vld [vmem:[#allocation5 + $0x368] sm:$0xff]
    %v163 = vld [vmem:[#allocation5 + $0x370] sm:$0xff]
    %v164 = vld [vmem:[#allocation5 + $0x378] sm:$0xff]
    %v165 = vld [vmem:[#allocation5 + $0x380] sm:$0xff]
    %v166 = vld [vmem:[#allocation5 + $0x388] sm:$0xff]
    %v167 = vld [vmem:[#allocation5 + $0x390] sm:$0xff]
    %v168 = vld [vmem:[#allocation5 + $0x398] sm:$0xff]
    %v169 = vld [vmem:[#allocation5 + $0x3a0] sm:$0xff]
    %v170 = vld [vmem:[#allocation5 + $0x3a8] sm:$0xff]
    %v171 = vld [vmem:[#allocation5 + $0x3b0] sm:$0xff]
    %v172 = vld [vmem:[#allocation5 + $0x3b8] sm:$0xff]
    %v173 = vld [vmem:[#allocation5 + $0x3c0] sm:$0xff]
    %v174 = vld [vmem:[#allocation5 + $0x3c8] sm:$0xff]
    %v175 = vld [vmem:[#allocation5 + $0x3d0] sm:$0xff]
    %v176 = vld [vmem:[#allocation5 + $0x3d8] sm:$0xff]
    %v177 = vld [vmem:[#allocation5 + $0x3e0] sm:$0xff]
    %v178 = vld [vmem:[#allocation5 + $0x3e8] sm:$0xff]
    %v179 = vld [vmem:[#allocation5 + $0x3f0] sm:$0xff]
    %v180 = vld [vmem:[#allocation5 + $0x3f8] sm:$0xff]
    %v181 = vld [vmem:[#allocation7] sm:$0xff]
    %v183 = vlaneseq
    %v184 = vshrl.u32 %v183, 7
    %v185 = vsub.s32 0, %v184
    %v186 = vrot.slane %v181, %v185
    %v187 = vlaneseq
    %v188 = vshrl.u32 %v187, 7
    %v189 = vsub.s32 1, %v188
    %v190 = vrot.slane %v181, %v189
    %v191 = vlaneseq
    %v192 = vshrl.u32 %v191, 7
    %v193 = vsub.s32 2, %v192
    %v194 = vrot.slane %v181, %v193
    %v195 = vlaneseq
    %v196 = vshrl.u32 %v195, 7
    %v197 = vsub.s32 3, %v196
    %v198 = vrot.slane %v181, %v197
    %v199 = vlaneseq
    %v200 = vshrl.u32 %v199, 7
    %v201 = vsub.s32 4, %v200
    %v202 = vrot.slane %v181, %v201
    %v203 = vlaneseq
    %v204 = vshrl.u32 %v203, 7
    %v205 = vsub.s32 5, %v204
    %v206 = vrot.slane %v181, %v205
    %v207 = vlaneseq
    %v208 = vshrl.u32 %v207, 7
    %v209 = vsub.s32 6, %v208
    %v210 = vrot.slane %v181, %v209
    %v211 = vlaneseq
    %v212 = vshrl.u32 %v211, 7
    %v213 = vsub.s32 7, %v212
    %v214 = vrot.slane %v181, %v213
    %v223 = vand.u32 %v174, 4294901760
    %224 = vmatprep.subr.mxu0 %v223
    %v225 = vand.u32 %v173, 4294901760
    %226 = vmatpush1.msra.mxu0 %v225
    %v227 = vand.u32 %v166, 4294901760
    %228 = vmatprep.subr.mxu0 %v227
    %v229 = vand.u32 %v165, 4294901760
    %230 = vmatpush1.msra.mxu0 %v229
    %v231 = vand.u32 %v158, 4294901760
    %232 = vmatprep.subr.mxu0 %v231
    %v233 = vand.u32 %v157, 4294901760
    %234 = vmatpush1.msra.mxu0 %v233
    %v235 = vand.u32 %v150, 4294901760
    %236 = vmatprep.subr.mxu0 %v235
    %v237 = vand.u32 %v149, 4294901760
    %238 = vmatpush1.msra.mxu0 %v237
    %v239 = vand.u32 %v142, 4294901760
    %240 = vmatprep.subr.mxu0 %v239
    %v241 = vand.u32 %v141, 4294901760
    %242 = vmatpush1.msra.mxu0 %v241
    %v243 = vand.u32 %v134, 4294901760
    %244 = vmatprep.subr.mxu0 %v243
    %v245 = vand.u32 %v133, 4294901760
    %246 = vmatpush1.msra.mxu0 %v245
    %v247 = vand.u32 %v126, 4294901760
    %248 = vmatprep.subr.mxu0 %v247
    %v249 = vand.u32 %v125, 4294901760
    %250 = vmatpush1.msra.mxu0 %v249
    %v251 = vand.u32 %v118, 4294901760
    %252 = vmatprep.subr.mxu0 %v251
    %v253 = vand.u32 %v117, 4294901760
    %254 = vmatpush1.msra.mxu0 %v253
    %v255 = vand.u32 %v110, 4294901760
    %256 = vmatprep.subr.mxu0 %v255
    %v257 = vand.u32 %v109, 4294901760
    %258 = vmatpush1.msra.mxu0 %v257
    %v259 = vand.u32 %v102, 4294901760
    %260 = vmatprep.subr.mxu0 %v259
    %v261 = vand.u32 %v101, 4294901760
    %262 = vmatpush1.msra.mxu0 %v261
    %v263 = vand.u32 %v94, 4294901760
    %264 = vmatprep.subr.mxu0 %v263
    %v265 = vand.u32 %v93, 4294901760
    %266 = vmatpush1.msra.mxu0 %v265
    %v267 = vand.u32 %v86, 4294901760
    %268 = vmatprep.subr.mxu0 %v267
    %v269 = vand.u32 %v85, 4294901760
    %270 = vmatpush1.msra.mxu0 %v269
    %v271 = vand.u32 %v78, 4294901760
    %272 = vmatprep.subr.mxu0 %v271
    %v273 = vand.u32 %v77, 4294901760
    %274 = vmatpush1.msra.mxu0 %v273
    %v275 = vand.u32 %v70, 4294901760
    %276 = vmatprep.subr.mxu0 %v275
    %v277 = vand.u32 %v69, 4294901760
    %278 = vmatpush1.msra.mxu0 %v277
    %v279 = vand.u32 %v62, 4294901760
    %280 = vmatprep.subr.mxu0 %v279
    %v281 = vand.u32 %v61, 4294901760
    %282 = vmatpush1.msra.mxu0 %v281
    %v283 = vand.u32 %v54, 4294901760
    %284 = vmatprep.subr.mxu0 %v283
    %v285 = vand.u32 %v53, 4294901760
    %286 = vmatpush1.msra.mxu0 %v285
    %287 = vmatprep.subr.mxu0 0.0
    %288 = vmatpush2.msra.mxu0 0.0
    %289 = vmatprep.subr.mxu0 0.0
    %290 = vmatpush2.msra.mxu0 0.0
    %291 = vmatprep.subr.mxu0 0.0
    %292 = vmatpush2.msra.mxu0 0.0
    %293 = vmatprep.subr.mxu0 0.0
    %294 = vmatpush2.msra.mxu0 0.0
    %295 = vmatprep.subr.mxu0 0.0
    %296 = vmatpush2.msra.mxu0 0.0
    %297 = vmatprep.subr.mxu0 0.0
    %298 = vmatpush2.msra.mxu0 0.0
    %299 = vmatprep.subr.mxu0 0.0
    %300 = vmatpush2.msra.mxu0 0.0
    %301 = vmatprep.subr.mxu0 0.0
    %302 = vmatpush2.msra.mxu0 0.0
    %303 = vmatprep.subr.mxu0 0.0
    %304 = vmatpush2.msra.mxu0 0.0
    %305 = vmatprep.subr.mxu0 0.0
    %306 = vmatpush2.msra.mxu0 0.0
    %307 = vmatprep.subr.mxu0 0.0
    %308 = vmatpush2.msra.mxu0 0.0
    %309 = vmatprep.subr.mxu0 0.0
    %310 = vmatpush2.msra.mxu0 0.0
    %311 = vmatprep.subr.mxu0 0.0
    %312 = vmatpush2.msra.mxu0 0.0
    %313 = vmatprep.subr.mxu0 0.0
    %314 = vmatpush2.msra.mxu0 0.0
    %315 = vmatprep.subr.mxu0 0.0
    %316 = vmatpush2.msra.mxu0 0.0
    %317 = vmatprep.subr.mxu0 0.0
    %318 = vmatpush2.msra.mxu0 0.0
    %319 = vmatprep.mubr.f32.mxu0 0.0
    %v320 = vand.u32 %v52, 4294901760
    %v321 = vsub.f32 %v52, %v320
    %v322 = vand.u32 %v321, 4294901760
    %v323 = vsub.f32 %v321, %v322
    %v324 = vand.u32 %v323, 4294901760
    %325 = vmatmul.mubr.f32.gmra.mxu0 %v324
    %v326 = vpop.f32.mrf.mxu0
    %v327 = vadd.f32 %v186, %v326
    %v328 = vpop.f32.mrf.mxu0
    %v329 = vadd.f32 %v190, %v328
    %330 = vdwg.mxu0
    %v331 = vand.u32 %v174, 4294901760
    %v332 = vsub.f32 %v174, %v331
    %v333 = vand.u32 %v332, 4294901760
    %v334 = vsub.f32 %v332, %v333
    %v335 = vand.u32 %v334, 4294901760
    %336 = vmatprep.subr.mxu0 %v335
    %v337 = vand.u32 %v173, 4294901760
    %v338 = vsub.f32 %v173, %v337
    %v339 = vand.u32 %v338, 4294901760
    %v340 = vsub.f32 %v338, %v339
    %v341 = vand.u32 %v340, 4294901760
    %342 = vmatpush1.msra.mxu0 %v341
    %v343 = vand.u32 %v166, 4294901760
    %v344 = vsub.f32 %v166, %v343
    %v345 = vand.u32 %v344, 4294901760
    %v346 = vsub.f32 %v344, %v345
    %v347 = vand.u32 %v346, 4294901760
    %348 = vmatprep.subr.mxu0 %v347
    %v349 = vand.u32 %v165, 4294901760
    %v350 = vsub.f32 %v165, %v349
    %v351 = vand.u32 %v350, 4294901760
    %v352 = vsub.f32 %v350, %v351
    %v353 = vand.u32 %v352, 4294901760
    %354 = vmatpush1.msra.mxu0 %v353
    %v355 = vand.u32 %v158, 4294901760
    %v356 = vsub.f32 %v158, %v355
    %v357 = vand.u32 %v356, 4294901760
    %v358 = vsub.f32 %v356, %v357
    %v359 = vand.u32 %v358, 4294901760
    %360 = vmatprep.subr.mxu0 %v359
    %v361 = vand.u32 %v157, 4294901760
    %v362 = vsub.f32 %v157, %v361
    %v363 = vand.u32 %v362, 4294901760
    %v364 = vsub.f32 %v362, %v363
    %v365 = vand.u32 %v364, 4294901760
    %366 = vmatpush1.msra.mxu0 %v365
    %v367 = vand.u32 %v150, 4294901760
    %v368 = vsub.f32 %v150, %v367
    %v369 = vand.u32 %v368, 4294901760
    %v370 = vsub.f32 %v368, %v369
    %v371 = vand.u32 %v370, 4294901760
    %372 = vmatprep.subr.mxu0 %v371
    %v373 = vand.u32 %v149, 4294901760
    %v374 = vsub.f32 %v149, %v373
    %v375 = vand.u32 %v374, 4294901760
    %v376 = vsub.f32 %v374, %v375
    %v377 = vand.u32 %v376, 4294901760
    %378 = vmatpush1.msra.mxu0 %v377
    %v379 = vand.u32 %v142, 4294901760
    %v380 = vsub.f32 %v142, %v379
    %v381 = vand.u32 %v380, 4294901760
    %v382 = vsub.f32 %v380, %v381
    %v383 = vand.u32 %v382, 4294901760
    %384 = vmatprep.subr.mxu0 %v383
    %v385 = vand.u32 %v141, 4294901760
    %v386 = vsub.f32 %v141, %v385
    %v387 = vand.u32 %v386, 4294901760
    %v388 = vsub.f32 %v386, %v387
    %v389 = vand.u32 %v388, 4294901760
    %390 = vmatpush1.msra.mxu0 %v389
    %v391 = vand.u32 %v134, 4294901760
    %v392 = vsub.f32 %v134, %v391
    %v393 = vand.u32 %v392, 4294901760
    %v394 = vsub.f32 %v392, %v393
    %v395 = vand.u32 %v394, 4294901760
    %396 = vmatprep.subr.mxu0 %v395
    %v397 = vand.u32 %v133, 4294901760
    %v398 = vsub.f32 %v133, %v397
    %v399 = vand.u32 %v398, 4294901760
    %v400 = vsub.f32 %v398, %v399
    %v401 = vand.u32 %v400, 4294901760
    %402 = vmatpush1.msra.mxu0 %v401
    %v403 = vand.u32 %v126, 4294901760
    %v404 = vsub.f32 %v126, %v403
    %v405 = vand.u32 %v404, 4294901760
    %v406 = vsub.f32 %v404, %v405
    %v407 = vand.u32 %v406, 4294901760
    %408 = vmatprep.subr.mxu0 %v407
    %v409 = vand.u32 %v125, 4294901760
    %v410 = vsub.f32 %v125, %v409
    %v411 = vand.u32 %v410, 4294901760
    %v412 = vsub.f32 %v410, %v411
    %v413 = vand.u32 %v412, 4294901760
    %414 = vmatpush1.msra.mxu0 %v413
    %v415 = vand.u32 %v118, 4294901760
    %v416 = vsub.f32 %v118, %v415
    %v417 = vand.u32 %v416, 4294901760
    %v418 = vsub.f32 %v416, %v417
    %v419 = vand.u32 %v418, 4294901760
    %420 = vmatprep.subr.mxu0 %v419
    %v421 = vand.u32 %v117, 4294901760
    %v422 = vsub.f32 %v117, %v421
    %v423 = vand.u32 %v422, 4294901760
    %v424 = vsub.f32 %v422, %v423
    %v425 = vand.u32 %v424, 4294901760
    %426 = vmatpush1.msra.mxu0 %v425
    %v427 = vand.u32 %v110, 4294901760
    %v428 = vsub.f32 %v110, %v427
    %v429 = vand.u32 %v428, 4294901760
    %v430 = vsub.f32 %v428, %v429
    %v431 = vand.u32 %v430, 4294901760
    %432 = vmatprep.subr.mxu0 %v431
    %v433 = vand.u32 %v109, 4294901760
    %v434 = vsub.f32 %v109, %v433
    %v435 = vand.u32 %v434, 4294901760
    %v436 = vsub.f32 %v434, %v435
    %v437 = vand.u32 %v436, 4294901760
    %438 = vmatpush1.msra.mxu0 %v437
    %v439 = vand.u32 %v102, 4294901760
    %v440 = vsub.f32 %v102, %v439
    %v441 = vand.u32 %v440, 4294901760
    %v442 = vsub.f32 %v440, %v441
    %v443 = vand.u32 %v442, 4294901760
    %444 = vmatprep.subr.mxu0 %v443
    %v445 = vand.u32 %v101, 4294901760
    %v446 = vsub.f32 %v101, %v445
    %v447 = vand.u32 %v446, 4294901760
    %v448 = vsub.f32 %v446, %v447
    %v449 = vand.u32 %v448, 4294901760
    %450 = vmatpush1.msra.mxu0 %v449
    %v451 = vand.u32 %v94, 4294901760
    %v452 = vsub.f32 %v94, %v451
    %v453 = vand.u32 %v452, 4294901760
    %v454 = vsub.f32 %v452, %v453
    %v455 = vand.u32 %v454, 4294901760
    %456 = vmatprep.subr.mxu0 %v455
    %v457 = vand.u32 %v93, 4294901760
    %v458 = vsub.f32 %v93, %v457
    %v459 = vand.u32 %v458, 4294901760
    %v460 = vsub.f32 %v458, %v459
    %v461 = vand.u32 %v460, 4294901760
    %462 = vmatpush1.msra.mxu0 %v461
    %v463 = vand.u32 %v86, 4294901760
    %v464 = vsub.f32 %v86, %v463
    %v465 = vand.u32 %v464, 4294901760
    %v466 = vsub.f32 %v464, %v465
    %v467 = vand.u32 %v466, 4294901760
    %468 = vmatprep.subr.mxu0 %v467
    %v469 = vand.u32 %v85, 4294901760
    %v470 = vsub.f32 %v85, %v469
    %v471 = vand.u32 %v470, 4294901760
    %v472 = vsub.f32 %v470, %v471
    %v473 = vand.u32 %v472, 4294901760
    %474 = vmatpush1.msra.mxu0 %v473
    %v475 = vand.u32 %v78, 4294901760
    %v476 = vsub.f32 %v78, %v475
    %v477 = vand.u32 %v476, 4294901760
    %v478 = vsub.f32 %v476, %v477
    %v479 = vand.u32 %v478, 4294901760
    %480 = vmatprep.subr.mxu0 %v479
    %v481 = vand.u32 %v77, 4294901760
    %v482 = vsub.f32 %v77, %v481
    %v483 = vand.u32 %v482, 4294901760
    %v484 = vsub.f32 %v482, %v483
    %v485 = vand.u32 %v484, 4294901760
    %486 = vmatpush1.msra.mxu0 %v485
    %v487 = vand.u32 %v70, 4294901760
    %v488 = vsub.f32 %v70, %v487
    %v489 = vand.u32 %v488, 4294901760
    %v490 = vsub.f32 %v488, %v489
    %v491 = vand.u32 %v490, 4294901760
    %492 = vmatprep.subr.mxu0 %v491
    %v493 = vand.u32 %v69, 4294901760
    %v494 = vsub.f32 %v69, %v493
    %v495 = vand.u32 %v494, 4294901760
    %v496 = vsub.f32 %v494, %v495
    %v497 = vand.u32 %v496, 4294901760
    %498 = vmatpush1.msra.mxu0 %v497
    %v499 = vand.u32 %v62, 4294901760
    %v500 = vsub.f32 %v62, %v499
    %v501 = vand.u32 %v500, 4294901760
    %v502 = vsub.f32 %v500, %v501
    %v503 = vand.u32 %v502, 4294901760
    %504 = vmatprep.subr.mxu0 %v503
    %v505 = vand.u32 %v61, 4294901760
    %v506 = vsub.f32 %v61, %v505
    %v507 = vand.u32 %v506, 4294901760
    %v508 = vsub.f32 %v506, %v507
    %v509 = vand.u32 %v508, 4294901760
    %510 = vmatpush1.msra.mxu0 %v509
    %v511 = vand.u32 %v54, 4294901760
    %v512 = vsub.f32 %v54, %v511
    %v513 = vand.u32 %v512, 4294901760
    %v514 = vsub.f32 %v512, %v513
    %v515 = vand.u32 %v514, 4294901760
    %516 = vmatprep.subr.mxu0 %v515
    %v517 = vand.u32 %v53, 4294901760
    %v518 = vsub.f32 %v53, %v517
    %v519 = vand.u32 %v518, 4294901760
    %v520 = vsub.f32 %v518, %v519
    %v521 = vand.u32 %v520, 4294901760
    %522 = vmatpush1.msra.mxu0 %v521
    %523 = vmatprep.subr.mxu0 0.0
    %524 = vmatpush2.msra.mxu0 0.0
    %525 = vmatprep.subr.mxu0 0.0
    %526 = vmatpush2.msra.mxu0 0.0
    %527 = vmatprep.subr.mxu0 0.0
    %528 = vmatpush2.msra.mxu0 0.0
    %529 = vmatprep.subr.mxu0 0.0
    %530 = vmatpush2.msra.mxu0 0.0
    %531 = vmatprep.subr.mxu0 0.0
    %532 = vmatpush2.msra.mxu0 0.0
    %533 = vmatprep.subr.mxu0 0.0
    %534 = vmatpush2.msra.mxu0 0.0
    %535 = vmatprep.subr.mxu0 0.0
    %536 = vmatpush2.msra.mxu0 0.0
    %537 = vmatprep.subr.mxu0 0.0
    %538 = vmatpush2.msra.mxu0 0.0
    %539 = vmatprep.subr.mxu0 0.0
    %540 = vmatpush2.msra.mxu0 0.0
    %541 = vmatprep.subr.mxu0 0.0
    %542 = vmatpush2.msra.mxu0 0.0
    %543 = vmatprep.subr.mxu0 0.0
    %544 = vmatpush2.msra.mxu0 0.0
    %545 = vmatprep.subr.mxu0 0.0
    %546 = vmatpush2.msra.mxu0 0.0
    %547 = vmatprep.subr.mxu0 0.0
    %548 = vmatpush2.msra.mxu0 0.0
    %549 = vmatprep.subr.mxu0 0.0
    %550 = vmatpush2.msra.mxu0 0.0
    %551 = vmatprep.subr.mxu0 0.0
    %552 = vmatpush2.msra.mxu0 0.0
    %553 = vmatprep.subr.mxu0 0.0
    %554 = vmatpush2.msra.mxu0 0.0
    %555 = vmatprep.mubr.f32.mxu0 0.0
    %v556 = vand.u32 %v52, 4294901760
    %557 = vmatmul.mubr.f32.gmra.mxu0 %v556
    %v558 = vpop.f32.mrf.mxu0
    %v559 = vadd.f32 %v327, %v558
    %v560 = vpop.f32.mrf.mxu0
    %v561 = vadd.f32 %v329, %v560
    %562 = vdwg.mxu0
    %v563 = vand.u32 %v174, 4294901760
    %v564 = vsub.f32 %v174, %v563
    %565 = vmatprep.subr.mxu0 %v564
    %v566 = vand.u32 %v173, 4294901760
    %v567 = vsub.f32 %v173, %v566
    %568 = vmatpush1.msra.mxu0 %v567
    %v569 = vand.u32 %v166, 4294901760
    %v570 = vsub.f32 %v166, %v569
    %571 = vmatprep.subr.mxu0 %v570
    %v572 = vand.u32 %v165, 4294901760
    %v573 = vsub.f32 %v165, %v572
    %574 = vmatpush1.msra.mxu0 %v573
    %v575 = vand.u32 %v158, 4294901760
    %v576 = vsub.f32 %v158, %v575
    %577 = vmatprep.subr.mxu0 %v576
    %v578 = vand.u32 %v157, 4294901760
    %v579 = vsub.f32 %v157, %v578
    %580 = vmatpush1.msra.mxu0 %v579
    %v581 = vand.u32 %v150, 4294901760
    %v582 = vsub.f32 %v150, %v581
    %583 = vmatprep.subr.mxu0 %v582
    %v584 = vand.u32 %v149, 4294901760
    %v585 = vsub.f32 %v149, %v584
    %586 = vmatpush1.msra.mxu0 %v585
    %v587 = vand.u32 %v142, 4294901760
    %v588 = vsub.f32 %v142, %v587
    %589 = vmatprep.subr.mxu0 %v588
    %v590 = vand.u32 %v141, 4294901760
    %v591 = vsub.f32 %v141, %v590
    %592 = vmatpush1.msra.mxu0 %v591
    %v593 = vand.u32 %v134, 4294901760
    %v594 = vsub.f32 %v134, %v593
    %595 = vmatprep.subr.mxu0 %v594
    %v596 = vand.u32 %v133, 4294901760
    %v597 = vsub.f32 %v133, %v596
    %598 = vmatpush1.msra.mxu0 %v597
    %v599 = vand.u32 %v126, 4294901760
    %v600 = vsub.f32 %v126, %v599
    %601 = vmatprep.subr.mxu0 %v600
    %v602 = vand.u32 %v125, 4294901760
    %v603 = vsub.f32 %v125, %v602
    %604 = vmatpush1.msra.mxu0 %v603
    %v605 = vand.u32 %v118, 4294901760
    %v606 = vsub.f32 %v118, %v605
    %607 = vmatprep.subr.mxu0 %v606
    %v608 = vand.u32 %v117, 4294901760
    %v609 = vsub.f32 %v117, %v608
    %610 = vmatpush1.msra.mxu0 %v609
    %v611 = vand.u32 %v110, 4294901760
    %v612 = vsub.f32 %v110, %v611
    %613 = vmatprep.subr.mxu0 %v612
    %v614 = vand.u32 %v109, 4294901760
    %v615 = vsub.f32 %v109, %v614
    %616 = vmatpush1.msra.mxu0 %v615
    %v617 = vand.u32 %v102, 4294901760
    %v618 = vsub.f32 %v102, %v617
    %619 = vmatprep.subr.mxu0 %v618
    %v620 = vand.u32 %v101, 4294901760
    %v621 = vsub.f32 %v101, %v620
    %622 = vmatpush1.msra.mxu0 %v621
    %v623 = vand.u32 %v94, 4294901760
    %v624 = vsub.f32 %v94, %v623
    %625 = vmatprep.subr.mxu0 %v624
    %v626 = vand.u32 %v93, 4294901760
    %v627 = vsub.f32 %v93, %v626
    %628 = vmatpush1.msra.mxu0 %v627
    %v629 = vand.u32 %v86, 4294901760
    %v630 = vsub.f32 %v86, %v629
    %631 = vmatprep.subr.mxu0 %v630
    %v632 = vand.u32 %v85, 4294901760
    %v633 = vsub.f32 %v85, %v632
    %634 = vmatpush1.msra.mxu0 %v633
    %v635 = vand.u32 %v78, 4294901760
    %v636 = vsub.f32 %v78, %v635
    %637 = vmatprep.subr.mxu0 %v636
    %v638 = vand.u32 %v77, 4294901760
    %v639 = vsub.f32 %v77, %v638
    %640 = vmatpush1.msra.mxu0 %v639
    %v641 = vand.u32 %v70, 4294901760
    %v642 = vsub.f32 %v70, %v641
    %643 = vmatprep.subr.mxu0 %v642
    %v644 = vand.u32 %v69, 4294901760
    %v645 = vsub.f32 %v69, %v644
    %646 = vmatpush1.msra.mxu0 %v645
    %v647 = vand.u32 %v62, 4294901760
    %v648 = vsub.f32 %v62, %v647
    %649 = vmatprep.subr.mxu0 %v648
    %v650 = vand.u32 %v61, 4294901760
    %v651 = vsub.f32 %v61, %v650
    %652 = vmatpush1.msra.mxu0 %v651
    %v653 = vand.u32 %v54, 4294901760
    %v654 = vsub.f32 %v54, %v653
    %655 = vmatprep.subr.mxu0 %v654
    %v656 = vand.u32 %v53, 4294901760
    %v657 = vsub.f32 %v53, %v656
    %658 = vmatpush1.msra.mxu0 %v657
    %659 = vmatprep.subr.mxu0 0.0
    %660 = vmatpush2.msra.mxu0 0.0
    %661 = vmatprep.subr.mxu0 0.0
    %662 = vmatpush2.msra.mxu0 0.0
    %663 = vmatprep.subr.mxu0 0.0
    %664 = vmatpush2.msra.mxu0 0.0
    %665 = vmatprep.subr.mxu0 0.0
    %666 = vmatpush2.msra.mxu0 0.0
    %667 = vmatprep.subr.mxu0 0.0
    %668 = vmatpush2.msra.mxu0 0.0
    %669 = vmatprep.subr.mxu0 0.0
    %670 = vmatpush2.msra.mxu0 0.0
    %671 = vmatprep.subr.mxu0 0.0
    %672 = vmatpush2.msra.mxu0 0.0
    %673 = vmatprep.subr.mxu0 0.0
    %674 = vmatpush2.msra.mxu0 0.0
    %675 = vmatprep.subr.mxu0 0.0
    %676 = vmatpush2.msra.mxu0 0.0
    %677 = vmatprep.subr.mxu0 0.0
    %678 = vmatpush2.msra.mxu0 0.0
    %679 = vmatprep.subr.mxu0 0.0
    %680 = vmatpush2.msra.mxu0 0.0
    %681 = vmatprep.subr.mxu0 0.0
    %682 = vmatpush2.msra.mxu0 0.0
    %683 = vmatprep.subr.mxu0 0.0
    %684 = vmatpush2.msra.mxu0 0.0
    %685 = vmatprep.subr.mxu0 0.0
    %686 = vmatpush2.msra.mxu0 0.0
    %687 = vmatprep.subr.mxu0 0.0
    %688 = vmatpush2.msra.mxu0 0.0
    %689 = vmatprep.subr.mxu0 0.0
    %690 = vmatpush2.msra.mxu0 0.0
    %691 = vmatprep.mubr.f32.mxu0 0.0
    %v692 = vand.u32 %v52, 4294901760
    %v693 = vsub.f32 %v52, %v692
    %694 = vmatmul.mubr.f32.gmra.mxu0 %v693
    %v695 = vpop.f32.mrf.mxu0
    %v696 = vadd.f32 %v559, %v695
    %v697 = vpop.f32.mrf.mxu0
    %v698 = vadd.f32 %v561, %v697
    %699 = vdwg.mxu0
    %v700 = vand.u32 %v174, 4294901760
    %701 = vmatprep.subr.mxu0 %v700
    %v702 = vand.u32 %v173, 4294901760
    %703 = vmatpush1.msra.mxu0 %v702
    %v704 = vand.u32 %v166, 4294901760
    %705 = vmatprep.subr.mxu0 %v704
    %v706 = vand.u32 %v165, 4294901760
    %707 = vmatpush1.msra.mxu0 %v706
    %v708 = vand.u32 %v158, 4294901760
    %709 = vmatprep.subr.mxu0 %v708
    %v710 = vand.u32 %v157, 4294901760
    %711 = vmatpush1.msra.mxu0 %v710
    %v712 = vand.u32 %v150, 4294901760
    %713 = vmatprep.subr.mxu0 %v712
    %v714 = vand.u32 %v149, 4294901760
    %715 = vmatpush1.msra.mxu0 %v714
    %v716 = vand.u32 %v142, 4294901760
    %717 = vmatprep.subr.mxu0 %v716
    %v718 = vand.u32 %v141, 4294901760
    %719 = vmatpush1.msra.mxu0 %v718
    %v720 = vand.u32 %v134, 4294901760
    %721 = vmatprep.subr.mxu0 %v720
    %v722 = vand.u32 %v133, 4294901760
    %723 = vmatpush1.msra.mxu0 %v722
    %v724 = vand.u32 %v126, 4294901760
    %725 = vmatprep.subr.mxu0 %v724
    %v726 = vand.u32 %v125, 4294901760
    %727 = vmatpush1.msra.mxu0 %v726
    %v728 = vand.u32 %v118, 4294901760
    %729 = vmatprep.subr.mxu0 %v728
    %v730 = vand.u32 %v117, 4294901760
    %731 = vmatpush1.msra.mxu0 %v730
    %v732 = vand.u32 %v110, 4294901760
    %733 = vmatprep.subr.mxu0 %v732
    %v734 = vand.u32 %v109, 4294901760
    %735 = vmatpush1.msra.mxu0 %v734
    %v736 = vand.u32 %v102, 4294901760
    %737 = vmatprep.subr.mxu0 %v736
    %v738 = vand.u32 %v101, 4294901760
    %739 = vmatpush1.msra.mxu0 %v738
    %v740 = vand.u32 %v94, 4294901760
    %741 = vmatprep.subr.mxu0 %v740
    %v742 = vand.u32 %v93, 4294901760
    %743 = vmatpush1.msra.mxu0 %v742
    %v744 = vand.u32 %v86, 4294901760
    %745 = vmatprep.subr.mxu0 %v744
    %v746 = vand.u32 %v85, 4294901760
    %747 = vmatpush1.msra.mxu0 %v746
    %v748 = vand.u32 %v78, 4294901760
    %749 = vmatprep.subr.mxu0 %v748
    %v750 = vand.u32 %v77, 4294901760
    %751 = vmatpush1.msra.mxu0 %v750
    %v752 = vand.u32 %v70, 4294901760
    %753 = vmatprep.subr.mxu0 %v752
    %v754 = vand.u32 %v69, 4294901760
    %755 = vmatpush1.msra.mxu0 %v754
    %v756 = vand.u32 %v62, 4294901760
    %757 = vmatprep.subr.mxu0 %v756
    %v758 = vand.u32 %v61, 4294901760
    %759 = vmatpush1.msra.mxu0 %v758
    %v760 = vand.u32 %v54, 4294901760
    %761 = vmatprep.subr.mxu0 %v760
    %v762 = vand.u32 %v53, 4294901760
    %763 = vmatpush1.msra.mxu0 %v762
    %764 = vmatprep.subr.mxu0 0.0
    %765 = vmatpush2.msra.mxu0 0.0
    %766 = vmatprep.subr.mxu0 0.0
    %767 = vmatpush2.msra.mxu0 0.0
    %768 = vmatprep.subr.mxu0 0.0
    %769 = vmatpush2.msra.mxu0 0.0
    %770 = vmatprep.subr.mxu0 0.0
    %771 = vmatpush2.msra.mxu0 0.0
    %772 = vmatprep.subr.mxu0 0.0
    %773 = vmatpush2.msra.mxu0 0.0
    %774 = vmatprep.subr.mxu0 0.0
    %775 = vmatpush2.msra.mxu0 0.0
    %776 = vmatprep.subr.mxu0 0.0
    %777 = vmatpush2.msra.mxu0 0.0
    %778 = vmatprep.subr.mxu0 0.0
    %779 = vmatpush2.msra.mxu0 0.0
    %780 = vmatprep.subr.mxu0 0.0
    %781 = vmatpush2.msra.mxu0 0.0
    %782 = vmatprep.subr.mxu0 0.0
    %783 = vmatpush2.msra.mxu0 0.0
    %784 = vmatprep.subr.mxu0 0.0
    %785 = vmatpush2.msra.mxu0 0.0
    %786 = vmatprep.subr.mxu0 0.0
    %787 = vmatpush2.msra.mxu0 0.0
    %788 = vmatprep.subr.mxu0 0.0
    %789 = vmatpush2.msra.mxu0 0.0
    %790 = vmatprep.subr.mxu0 0.0
    %791 = vmatpush2.msra.mxu0 0.0
    %792 = vmatprep.subr.mxu0 0.0
    %793 = vmatpush2.msra.mxu0 0.0
    %794 = vmatprep.subr.mxu0 0.0
    %795 = vmatpush2.msra.mxu0 0.0
    %796 = vmatprep.mubr.f32.mxu0 0.0
    %v797 = vand.u32 %v52, 4294901760
    %v798 = vsub.f32 %v52, %v797
    %v799 = vand.u32 %v798, 4294901760
    %800 = vmatmul.mubr.f32.gmra.mxu0 %v799
    %v801 = vpop.f32.mrf.mxu0
    %v802 = vadd.f32 %v696, %v801
    %v803 = vpop.f32.mrf.mxu0
    %v804 = vadd.f32 %v698, %v803
    %805 = vdwg.mxu0
    %v806 = vand.u32 %v174, 4294901760
    %v807 = vsub.f32 %v174, %v806
    %v808 = vand.u32 %v807, 4294901760
    %809 = vmatprep.subr.mxu0 %v808
    %v810 = vand.u32 %v173, 4294901760
    %v811 = vsub.f32 %v173, %v810
    %v812 = vand.u32 %v811, 4294901760
    %813 = vmatpush1.msra.mxu0 %v812
    %v814 = vand.u32 %v166, 4294901760
    %v815 = vsub.f32 %v166, %v814
    %v816 = vand.u32 %v815, 4294901760
    %817 = vmatprep.subr.mxu0 %v816
    %v818 = vand.u32 %v165, 4294901760
    %v819 = vsub.f32 %v165, %v818
    %v820 = vand.u32 %v819, 4294901760
    %821 = vmatpush1.msra.mxu0 %v820
    %v822 = vand.u32 %v158, 4294901760
    %v823 = vsub.f32 %v158, %v822
    %v824 = vand.u32 %v823, 4294901760
    %825 = vmatprep.subr.mxu0 %v824
    %v826 = vand.u32 %v157, 4294901760
    %v827 = vsub.f32 %v157, %v826
    %v828 = vand.u32 %v827, 4294901760
    %829 = vmatpush1.msra.mxu0 %v828
    %v830 = vand.u32 %v150, 4294901760
    %v831 = vsub.f32 %v150, %v830
    %v832 = vand.u32 %v831, 4294901760
    %833 = vmatprep.subr.mxu0 %v832
    %v834 = vand.u32 %v149, 4294901760
    %v835 = vsub.f32 %v149, %v834
    %v836 = vand.u32 %v835, 4294901760
    %837 = vmatpush1.msra.mxu0 %v836
    %v838 = vand.u32 %v142, 4294901760
    %v839 = vsub.f32 %v142, %v838
    %v840 = vand.u32 %v839, 4294901760
    %841 = vmatprep.subr.mxu0 %v840
    %v842 = vand.u32 %v141, 4294901760
    %v843 = vsub.f32 %v141, %v842
    %v844 = vand.u32 %v843, 4294901760
    %845 = vmatpush1.msra.mxu0 %v844
    %v846 = vand.u32 %v134, 4294901760
    %v847 = vsub.f32 %v134, %v846
    %v848 = vand.u32 %v847, 4294901760
    %849 = vmatprep.subr.mxu0 %v848
    %v850 = vand.u32 %v133, 4294901760
    %v851 = vsub.f32 %v133, %v850
    %v852 = vand.u32 %v851, 4294901760
    %853 = vmatpush1.msra.mxu0 %v852
    %v854 = vand.u32 %v126, 4294901760
    %v855 = vsub.f32 %v126, %v854
    %v856 = vand.u32 %v855, 4294901760
    %857 = vmatprep.subr.mxu0 %v856
    %v858 = vand.u32 %v125, 4294901760
    %v859 = vsub.f32 %v125, %v858
    %v860 = vand.u32 %v859, 4294901760
    %861 = vmatpush1.msra.mxu0 %v860
    %v862 = vand.u32 %v118, 4294901760
    %v863 = vsub.f32 %v118, %v862
    %v864 = vand.u32 %v863, 4294901760
    %865 = vmatprep.subr.mxu0 %v864
    %v866 = vand.u32 %v117, 4294901760
    %v867 = vsub.f32 %v117, %v866
    %v868 = vand.u32 %v867, 4294901760
    %869 = vmatpush1.msra.mxu0 %v868
    %v870 = vand.u32 %v110, 4294901760
    %v871 = vsub.f32 %v110, %v870
    %v872 = vand.u32 %v871, 4294901760
    %873 = vmatprep.subr.mxu0 %v872
    %v874 = vand.u32 %v109, 4294901760
    %v875 = vsub.f32 %v109, %v874
    %v876 = vand.u32 %v875, 4294901760
    %877 = vmatpush1.msra.mxu0 %v876
    %v878 = vand.u32 %v102, 4294901760
    %v879 = vsub.f32 %v102, %v878
    %v880 = vand.u32 %v879, 4294901760
    %881 = vmatprep.subr.mxu0 %v880
    %v882 = vand.u32 %v101, 4294901760
    %v883 = vsub.f32 %v101, %v882
    %v884 = vand.u32 %v883, 4294901760
    %885 = vmatpush1.msra.mxu0 %v884
    %v886 = vand.u32 %v94, 4294901760
    %v887 = vsub.f32 %v94, %v886
    %v888 = vand.u32 %v887, 4294901760
    %889 = vmatprep.subr.mxu0 %v888
    %v890 = vand.u32 %v93, 4294901760
    %v891 = vsub.f32 %v93, %v890
    %v892 = vand.u32 %v891, 4294901760
    %893 = vmatpush1.msra.mxu0 %v892
    %v894 = vand.u32 %v86, 4294901760
    %v895 = vsub.f32 %v86, %v894
    %v896 = vand.u32 %v895, 4294901760
    %897 = vmatprep.subr.mxu0 %v896
    %v898 = vand.u32 %v85, 4294901760
    %v899 = vsub.f32 %v85, %v898
    %v900 = vand.u32 %v899, 4294901760
    %901 = vmatpush1.msra.mxu0 %v900
    %v902 = vand.u32 %v78, 4294901760
    %v903 = vsub.f32 %v78, %v902
    %v904 = vand.u32 %v903, 4294901760
    %905 = vmatprep.subr.mxu0 %v904
    %v906 = vand.u32 %v77, 4294901760
    %v907 = vsub.f32 %v77, %v906
    %v908 = vand.u32 %v907, 4294901760
    %909 = vmatpush1.msra.mxu0 %v908
    %v910 = vand.u32 %v70, 4294901760
    %v911 = vsub.f32 %v70, %v910
    %v912 = vand.u32 %v911, 4294901760
    %913 = vmatprep.subr.mxu0 %v912
    %v914 = vand.u32 %v69, 4294901760
    %v915 = vsub.f32 %v69, %v914
    %v916 = vand.u32 %v915, 4294901760
    %917 = vmatpush1.msra.mxu0 %v916
    %v918 = vand.u32 %v62, 4294901760
    %v919 = vsub.f32 %v62, %v918
    %v920 = vand.u32 %v919, 4294901760
    %921 = vmatprep.subr.mxu0 %v920
    %v922 = vand.u32 %v61, 4294901760
    %v923 = vsub.f32 %v61, %v922
    %v924 = vand.u32 %v923, 4294901760
    %925 = vmatpush1.msra.mxu0 %v924
    %v926 = vand.u32 %v54, 4294901760
    %v927 = vsub.f32 %v54, %v926
    %v928 = vand.u32 %v927, 4294901760
    %929 = vmatprep.subr.mxu0 %v928
    %v930 = vand.u32 %v53, 4294901760
    %v931 = vsub.f32 %v53, %v930
    %v932 = vand.u32 %v931, 4294901760
    %933 = vmatpush1.msra.mxu0 %v932
    %934 = vmatprep.subr.mxu0 0.0
    %935 = vmatpush2.msra.mxu0 0.0
    %936 = vmatprep.subr.mxu0 0.0
    %937 = vmatpush2.msra.mxu0 0.0
    %938 = vmatprep.subr.mxu0 0.0
    %939 = vmatpush2.msra.mxu0 0.0
    %940 = vmatprep.subr.mxu0 0.0
    %941 = vmatpush2.msra.mxu0 0.0
    %942 = vmatprep.subr.mxu0 0.0
    %943 = vmatpush2.msra.mxu0 0.0
    %944 = vmatprep.subr.mxu0 0.0
    %945 = vmatpush2.msra.mxu0 0.0
    %946 = vmatprep.subr.mxu0 0.0
    %947 = vmatpush2.msra.mxu0 0.0
    %948 = vmatprep.subr.mxu0 0.0
    %949 = vmatpush2.msra.mxu0 0.0
    %950 = vmatprep.subr.mxu0 0.0
    %951 = vmatpush2.msra.mxu0 0.0
    %952 = vmatprep.subr.mxu0 0.0
    %953 = vmatpush2.msra.mxu0 0.0
    %954 = vmatprep.subr.mxu0 0.0
    %955 = vmatpush2.msra.mxu0 0.0
    %956 = vmatprep.subr.mxu0 0.0
    %957 = vmatpush2.msra.mxu0 0.0
    %958 = vmatprep.subr.mxu0 0.0
    %959 = vmatpush2.msra.mxu0 0.0
    %960 = vmatprep.subr.mxu0 0.0
    %961 = vmatpush2.msra.mxu0 0.0
    %962 = vmatprep.subr.mxu0 0.0
    %963 = vmatpush2.msra.mxu0 0.0
    %964 = vmatprep.subr.mxu0 0.0
    %965 = vmatpush2.msra.mxu0 0.0
    %966 = vmatprep.mubr.f32.mxu0 0.0
    %v967 = vand.u32 %v52, 4294901760
    %968 = vmatmul.mubr.f32.gmra.mxu0 %v967
    %v969 = vpop.f32.mrf.mxu0
    %v970 = vadd.f32 %v802, %v969
    %v971 = vpop.f32.mrf.mxu0
    %v972 = vadd.f32 %v804, %v971
    %973 = vdwg.mxu0
    %v974 = vand.u32 %v174, 4294901760
    %975 = vmatprep.subr.mxu0 %v974
    %v976 = vand.u32 %v173, 4294901760
    %977 = vmatpush1.msra.mxu0 %v976
    %v978 = vand.u32 %v166, 4294901760
    %979 = vmatprep.subr.mxu0 %v978
    %v980 = vand.u32 %v165, 4294901760
    %981 = vmatpush1.msra.mxu0 %v980
    %v982 = vand.u32 %v158, 4294901760
    %983 = vmatprep.subr.mxu0 %v982
    %v984 = vand.u32 %v157, 4294901760
    %985 = vmatpush1.msra.mxu0 %v984
    %v986 = vand.u32 %v150, 4294901760
    %987 = vmatprep.subr.mxu0 %v986
    %v988 = vand.u32 %v149, 4294901760
    %989 = vmatpush1.msra.mxu0 %v988
    %v990 = vand.u32 %v142, 4294901760
    %991 = vmatprep.subr.mxu0 %v990
    %v992 = vand.u32 %v141, 4294901760
    %993 = vmatpush1.msra.mxu0 %v992
    %v994 = vand.u32 %v134, 4294901760
    %995 = vmatprep.subr.mxu0 %v994
    %v996 = vand.u32 %v133, 4294901760
    %997 = vmatpush1.msra.mxu0 %v996
    %v998 = vand.u32 %v126, 4294901760
    %999 = vmatprep.subr.mxu0 %v998
    %v1000 = vand.u32 %v125, 4294901760
    %1001 = vmatpush1.msra.mxu0 %v1000
    %v1002 = vand.u32 %v118, 4294901760
    %1003 = vmatprep.subr.mxu0 %v1002
    %v1004 = vand.u32 %v117, 4294901760
    %1005 = vmatpush1.msra.mxu0 %v1004
    %v1006 = vand.u32 %v110, 4294901760
    %1007 = vmatprep.subr.mxu0 %v1006
    %v1008 = vand.u32 %v109, 4294901760
    %1009 = vmatpush1.msra.mxu0 %v1008
    %v1010 = vand.u32 %v102, 4294901760
    %1011 = vmatprep.subr.mxu0 %v1010
    %v1012 = vand.u32 %v101, 4294901760
    %1013 = vmatpush1.msra.mxu0 %v1012
    %v1014 = vand.u32 %v94, 4294901760
    %1015 = vmatprep.subr.mxu0 %v1014
    %v1016 = vand.u32 %v93, 4294901760
    %1017 = vmatpush1.msra.mxu0 %v1016
    %v1018 = vand.u32 %v86, 4294901760
    %1019 = vmatprep.subr.mxu0 %v1018
    %v1020 = vand.u32 %v85, 4294901760
    %1021 = vmatpush1.msra.mxu0 %v1020
    %v1022 = vand.u32 %v78, 4294901760
    %1023 = vmatprep.subr.mxu0 %v1022
    %v1024 = vand.u32 %v77, 4294901760
    %1025 = vmatpush1.msra.mxu0 %v1024
    %v1026 = vand.u32 %v70, 4294901760
    %1027 = vmatprep.subr.mxu0 %v1026
    %v1028 = vand.u32 %v69, 4294901760
    %1029 = vmatpush1.msra.mxu0 %v1028
    %v1030 = vand.u32 %v62, 4294901760
    %1031 = vmatprep.subr.mxu0 %v1030
    %v1032 = vand.u32 %v61, 4294901760
    %1033 = vmatpush1.msra.mxu0 %v1032
    %v1034 = vand.u32 %v54, 4294901760
    %1035 = vmatprep.subr.mxu0 %v1034
    %v1036 = vand.u32 %v53, 4294901760
    %1037 = vmatpush1.msra.mxu0 %v1036
    %1038 = vmatprep.subr.mxu0 0.0
    %1039 = vmatpush2.msra.mxu0 0.0
    %1040 = vmatprep.subr.mxu0 0.0
    %1041 = vmatpush2.msra.mxu0 0.0
    %1042 = vmatprep.subr.mxu0 0.0
    %1043 = vmatpush2.msra.mxu0 0.0
    %1044 = vmatprep.subr.mxu0 0.0
    %1045 = vmatpush2.msra.mxu0 0.0
    %1046 = vmatprep.subr.mxu0 0.0
    %1047 = vmatpush2.msra.mxu0 0.0
    %1048 = vmatprep.subr.mxu0 0.0
    %1049 = vmatpush2.msra.mxu0 0.0
    %1050 = vmatprep.subr.mxu0 0.0
    %1051 = vmatpush2.msra.mxu0 0.0
    %1052 = vmatprep.subr.mxu0 0.0
    %1053 = vmatpush2.msra.mxu0 0.0
    %1054 = vmatprep.subr.mxu0 0.0
    %1055 = vmatpush2.msra.mxu0 0.0
    %1056 = vmatprep.subr.mxu0 0.0
    %1057 = vmatpush2.msra.mxu0 0.0
    %1058 = vmatprep.subr.mxu0 0.0
    %1059 = vmatpush2.msra.mxu0 0.0
    %1060 = vmatprep.subr.mxu0 0.0
    %1061 = vmatpush2.msra.mxu0 0.0
    %1062 = vmatprep.subr.mxu0 0.0
    %1063 = vmatpush2.msra.mxu0 0.0
    %1064 = vmatprep.subr.mxu0 0.0
    %1065 = vmatpush2.msra.mxu0 0.0
    %1066 = vmatprep.subr.mxu0 0.0
    %1067 = vmatpush2.msra.mxu0 0.0
    %1068 = vmatprep.subr.mxu0 0.0
    %1069 = vmatpush2.msra.mxu0 0.0
    %1070 = vmatprep.mubr.f32.mxu0 0.0
    %v1071 = vand.u32 %v52, 4294901760
    %1072 = vmatmul.mubr.f32.gmra.mxu0 %v1071
    %v1073 = vpop.f32.mrf.mxu0
    %v1074 = vadd.f32 %v970, %v1073
    %v1075 = vpop.f32.mrf.mxu0
    %v1076 = vadd.f32 %v972, %v1075
    %1077 = vdwg.mxu0
    %v1078 = vand.u32 %v176, 4294901760
    %1079 = vmatprep.subr.mxu0 %v1078
    %v1080 = vand.u32 %v175, 4294901760
    %1081 = vmatpush1.msra.mxu0 %v1080
    %v1082 = vand.u32 %v168, 4294901760
    %1083 = vmatprep.subr.mxu0 %v1082
    %v1084 = vand.u32 %v167, 4294901760
    %1085 = vmatpush1.msra.mxu0 %v1084
    %v1086 = vand.u32 %v160, 4294901760
    %1087 = vmatprep.subr.mxu0 %v1086
    %v1088 = vand.u32 %v159, 4294901760
    %1089 = vmatpush1.msra.mxu0 %v1088
    %v1090 = vand.u32 %v152, 4294901760
    %1091 = vmatprep.subr.mxu0 %v1090
    %v1092 = vand.u32 %v151, 4294901760
    %1093 = vmatpush1.msra.mxu0 %v1092
    %v1094 = vand.u32 %v144, 4294901760
    %1095 = vmatprep.subr.mxu0 %v1094
    %v1096 = vand.u32 %v143, 4294901760
    %1097 = vmatpush1.msra.mxu0 %v1096
    %v1098 = vand.u32 %v136, 4294901760
    %1099 = vmatprep.subr.mxu0 %v1098
    %v1100 = vand.u32 %v135, 4294901760
    %1101 = vmatpush1.msra.mxu0 %v1100
    %v1102 = vand.u32 %v128, 4294901760
    %1103 = vmatprep.subr.mxu0 %v1102
    %v1104 = vand.u32 %v127, 4294901760
    %1105 = vmatpush1.msra.mxu0 %v1104
    %v1106 = vand.u32 %v120, 4294901760
    %1107 = vmatprep.subr.mxu0 %v1106
    %v1108 = vand.u32 %v119, 4294901760
    %1109 = vmatpush1.msra.mxu0 %v1108
    %v1110 = vand.u32 %v112, 4294901760
    %1111 = vmatprep.subr.mxu0 %v1110
    %v1112 = vand.u32 %v111, 4294901760
    %1113 = vmatpush1.msra.mxu0 %v1112
    %v1114 = vand.u32 %v104, 4294901760
    %1115 = vmatprep.subr.mxu0 %v1114
    %v1116 = vand.u32 %v103, 4294901760
    %1117 = vmatpush1.msra.mxu0 %v1116
    %v1118 = vand.u32 %v96, 4294901760
    %1119 = vmatprep.subr.mxu0 %v1118
    %v1120 = vand.u32 %v95, 4294901760
    %1121 = vmatpush1.msra.mxu0 %v1120
    %v1122 = vand.u32 %v88, 4294901760
    %1123 = vmatprep.subr.mxu0 %v1122
    %v1124 = vand.u32 %v87, 4294901760
    %1125 = vmatpush1.msra.mxu0 %v1124
    %v1126 = vand.u32 %v80, 4294901760
    %1127 = vmatprep.subr.mxu0 %v1126
    %v1128 = vand.u32 %v79, 4294901760
    %1129 = vmatpush1.msra.mxu0 %v1128
    %v1130 = vand.u32 %v72, 4294901760
    %1131 = vmatprep.subr.mxu0 %v1130
    %v1132 = vand.u32 %v71, 4294901760
    %1133 = vmatpush1.msra.mxu0 %v1132
    %v1134 = vand.u32 %v64, 4294901760
    %1135 = vmatprep.subr.mxu0 %v1134
    %v1136 = vand.u32 %v63, 4294901760
    %1137 = vmatpush1.msra.mxu0 %v1136
    %v1138 = vand.u32 %v56, 4294901760
    %1139 = vmatprep.subr.mxu0 %v1138
    %v1140 = vand.u32 %v55, 4294901760
    %1141 = vmatpush1.msra.mxu0 %v1140
    %1142 = vmatprep.subr.mxu0 0.0
    %1143 = vmatpush2.msra.mxu0 0.0
    %1144 = vmatprep.subr.mxu0 0.0
    %1145 = vmatpush2.msra.mxu0 0.0
    %1146 = vmatprep.subr.mxu0 0.0
    %1147 = vmatpush2.msra.mxu0 0.0
    %1148 = vmatprep.subr.mxu0 0.0
    %1149 = vmatpush2.msra.mxu0 0.0
    %1150 = vmatprep.subr.mxu0 0.0
    %1151 = vmatpush2.msra.mxu0 0.0
    %1152 = vmatprep.subr.mxu0 0.0
    %1153 = vmatpush2.msra.mxu0 0.0
    %1154 = vmatprep.subr.mxu0 0.0
    %1155 = vmatpush2.msra.mxu0 0.0
    %1156 = vmatprep.subr.mxu0 0.0
    %1157 = vmatpush2.msra.mxu0 0.0
    %1158 = vmatprep.subr.mxu0 0.0
    %1159 = vmatpush2.msra.mxu0 0.0
    %1160 = vmatprep.subr.mxu0 0.0
    %1161 = vmatpush2.msra.mxu0 0.0
    %1162 = vmatprep.subr.mxu0 0.0
    %1163 = vmatpush2.msra.mxu0 0.0
    %1164 = vmatprep.subr.mxu0 0.0
    %1165 = vmatpush2.msra.mxu0 0.0
    %1166 = vmatprep.subr.mxu0 0.0
    %1167 = vmatpush2.msra.mxu0 0.0
    %1168 = vmatprep.subr.mxu0 0.0
    %1169 = vmatpush2.msra.mxu0 0.0
    %1170 = vmatprep.subr.mxu0 0.0
    %1171 = vmatpush2.msra.mxu0 0.0
    %1172 = vmatprep.subr.mxu0 0.0
    %1173 = vmatpush2.msra.mxu0 0.0
    %1174 = vmatprep.mubr.f32.mxu0 0.0
    %v1175 = vand.u32 %v52, 4294901760
    %v1176 = vsub.f32 %v52, %v1175
    %v1177 = vand.u32 %v1176, 4294901760
    %v1178 = vsub.f32 %v1176, %v1177
    %v1179 = vand.u32 %v1178, 4294901760
    %1180 = vmatmul.mubr.f32.gmra.mxu0 %v1179
    %v1181 = vpop.f32.mrf.mxu0
    %v1182 = vadd.f32 %v194, %v1181
    %v1183 = vpop.f32.mrf.mxu0
    %v1184 = vadd.f32 %v198, %v1183
    %1185 = vdwg.mxu0
    %v1186 = vand.u32 %v176, 4294901760
    %v1187 = vsub.f32 %v176, %v1186
    %v1188 = vand.u32 %v1187, 4294901760
    %v1189 = vsub.f32 %v1187, %v1188
    %v1190 = vand.u32 %v1189, 4294901760
    %1191 = vmatprep.subr.mxu0 %v1190
    %v1192 = vand.u32 %v175, 4294901760
    %v1193 = vsub.f32 %v175, %v1192
    %v1194 = vand.u32 %v1193, 4294901760
    %v1195 = vsub.f32 %v1193, %v1194
    %v1196 = vand.u32 %v1195, 4294901760
    %1197 = vmatpush1.msra.mxu0 %v1196
    %v1198 = vand.u32 %v168, 4294901760
    %v1199 = vsub.f32 %v168, %v1198
    %v1200 = vand.u32 %v1199, 4294901760
    %v1201 = vsub.f32 %v1199, %v1200
    %v1202 = vand.u32 %v1201, 4294901760
    %1203 = vmatprep.subr.mxu0 %v1202
    %v1204 = vand.u32 %v167, 4294901760
    %v1205 = vsub.f32 %v167, %v1204
    %v1206 = vand.u32 %v1205, 4294901760
    %v1207 = vsub.f32 %v1205, %v1206
    %v1208 = vand.u32 %v1207, 4294901760
    %1209 = vmatpush1.msra.mxu0 %v1208
    %v1210 = vand.u32 %v160, 4294901760
    %v1211 = vsub.f32 %v160, %v1210
    %v1212 = vand.u32 %v1211, 4294901760
    %v1213 = vsub.f32 %v1211, %v1212
    %v1214 = vand.u32 %v1213, 4294901760
    %1215 = vmatprep.subr.mxu0 %v1214
    %v1216 = vand.u32 %v159, 4294901760
    %v1217 = vsub.f32 %v159, %v1216
    %v1218 = vand.u32 %v1217, 4294901760
    %v1219 = vsub.f32 %v1217, %v1218
    %v1220 = vand.u32 %v1219, 4294901760
    %1221 = vmatpush1.msra.mxu0 %v1220
    %v1222 = vand.u32 %v152, 4294901760
    %v1223 = vsub.f32 %v152, %v1222
    %v1224 = vand.u32 %v1223, 4294901760
    %v1225 = vsub.f32 %v1223, %v1224
    %v1226 = vand.u32 %v1225, 4294901760
    %1227 = vmatprep.subr.mxu0 %v1226
    %v1228 = vand.u32 %v151, 4294901760
    %v1229 = vsub.f32 %v151, %v1228
    %v1230 = vand.u32 %v1229, 4294901760
    %v1231 = vsub.f32 %v1229, %v1230
    %v1232 = vand.u32 %v1231, 4294901760
    %1233 = vmatpush1.msra.mxu0 %v1232
    %v1234 = vand.u32 %v144, 4294901760
    %v1235 = vsub.f32 %v144, %v1234
    %v1236 = vand.u32 %v1235, 4294901760
    %v1237 = vsub.f32 %v1235, %v1236
    %v1238 = vand.u32 %v1237, 4294901760
    %1239 = vmatprep.subr.mxu0 %v1238
    %v1240 = vand.u32 %v143, 4294901760
    %v1241 = vsub.f32 %v143, %v1240
    %v1242 = vand.u32 %v1241, 4294901760
    %v1243 = vsub.f32 %v1241, %v1242
    %v1244 = vand.u32 %v1243, 4294901760
    %1245 = vmatpush1.msra.mxu0 %v1244
    %v1246 = vand.u32 %v136, 4294901760
    %v1247 = vsub.f32 %v136, %v1246
    %v1248 = vand.u32 %v1247, 4294901760
    %v1249 = vsub.f32 %v1247, %v1248
    %v1250 = vand.u32 %v1249, 4294901760
    %1251 = vmatprep.subr.mxu0 %v1250
    %v1252 = vand.u32 %v135, 4294901760
    %v1253 = vsub.f32 %v135, %v1252
    %v1254 = vand.u32 %v1253, 4294901760
    %v1255 = vsub.f32 %v1253, %v1254
    %v1256 = vand.u32 %v1255, 4294901760
    %1257 = vmatpush1.msra.mxu0 %v1256
    %v1258 = vand.u32 %v128, 4294901760
    %v1259 = vsub.f32 %v128, %v1258
    %v1260 = vand.u32 %v1259, 4294901760
    %v1261 = vsub.f32 %v1259, %v1260
    %v1262 = vand.u32 %v1261, 4294901760
    %1263 = vmatprep.subr.mxu0 %v1262
    %v1264 = vand.u32 %v127, 4294901760
    %v1265 = vsub.f32 %v127, %v1264
    %v1266 = vand.u32 %v1265, 4294901760
    %v1267 = vsub.f32 %v1265, %v1266
    %v1268 = vand.u32 %v1267, 4294901760
    %1269 = vmatpush1.msra.mxu0 %v1268
    %v1270 = vand.u32 %v120, 4294901760
    %v1271 = vsub.f32 %v120, %v1270
    %v1272 = vand.u32 %v1271, 4294901760
    %v1273 = vsub.f32 %v1271, %v1272
    %v1274 = vand.u32 %v1273, 4294901760
    %1275 = vmatprep.subr.mxu0 %v1274
    %v1276 = vand.u32 %v119, 4294901760
    %v1277 = vsub.f32 %v119, %v1276
    %v1278 = vand.u32 %v1277, 4294901760
    %v1279 = vsub.f32 %v1277, %v1278
    %v1280 = vand.u32 %v1279, 4294901760
    %1281 = vmatpush1.msra.mxu0 %v1280
    %v1282 = vand.u32 %v112, 4294901760
    %v1283 = vsub.f32 %v112, %v1282
    %v1284 = vand.u32 %v1283, 4294901760
    %v1285 = vsub.f32 %v1283, %v1284
    %v1286 = vand.u32 %v1285, 4294901760
    %1287 = vmatprep.subr.mxu0 %v1286
    %v1288 = vand.u32 %v111, 4294901760
    %v1289 = vsub.f32 %v111, %v1288
    %v1290 = vand.u32 %v1289, 4294901760
    %v1291 = vsub.f32 %v1289, %v1290
    %v1292 = vand.u32 %v1291, 4294901760
    %1293 = vmatpush1.msra.mxu0 %v1292
    %v1294 = vand.u32 %v104, 4294901760
    %v1295 = vsub.f32 %v104, %v1294
    %v1296 = vand.u32 %v1295, 4294901760
    %v1297 = vsub.f32 %v1295, %v1296
    %v1298 = vand.u32 %v1297, 4294901760
    %1299 = vmatprep.subr.mxu0 %v1298
    %v1300 = vand.u32 %v103, 4294901760
    %v1301 = vsub.f32 %v103, %v1300
    %v1302 = vand.u32 %v1301, 4294901760
    %v1303 = vsub.f32 %v1301, %v1302
    %v1304 = vand.u32 %v1303, 4294901760
    %1305 = vmatpush1.msra.mxu0 %v1304
    %v1306 = vand.u32 %v96, 4294901760
    %v1307 = vsub.f32 %v96, %v1306
    %v1308 = vand.u32 %v1307, 4294901760
    %v1309 = vsub.f32 %v1307, %v1308
    %v1310 = vand.u32 %v1309, 4294901760
    %1311 = vmatprep.subr.mxu0 %v1310
    %v1312 = vand.u32 %v95, 4294901760
    %v1313 = vsub.f32 %v95, %v1312
    %v1314 = vand.u32 %v1313, 4294901760
    %v1315 = vsub.f32 %v1313, %v1314
    %v1316 = vand.u32 %v1315, 4294901760
    %1317 = vmatpush1.msra.mxu0 %v1316
    %v1318 = vand.u32 %v88, 4294901760
    %v1319 = vsub.f32 %v88, %v1318
    %v1320 = vand.u32 %v1319, 4294901760
    %v1321 = vsub.f32 %v1319, %v1320
    %v1322 = vand.u32 %v1321, 4294901760
    %1323 = vmatprep.subr.mxu0 %v1322
    %v1324 = vand.u32 %v87, 4294901760
    %v1325 = vsub.f32 %v87, %v1324
    %v1326 = vand.u32 %v1325, 4294901760
    %v1327 = vsub.f32 %v1325, %v1326
    %v1328 = vand.u32 %v1327, 4294901760
    %1329 = vmatpush1.msra.mxu0 %v1328
    %v1330 = vand.u32 %v80, 4294901760
    %v1331 = vsub.f32 %v80, %v1330
    %v1332 = vand.u32 %v1331, 4294901760
    %v1333 = vsub.f32 %v1331, %v1332
    %v1334 = vand.u32 %v1333, 4294901760
    %1335 = vmatprep.subr.mxu0 %v1334
    %v1336 = vand.u32 %v79, 4294901760
    %v1337 = vsub.f32 %v79, %v1336
    %v1338 = vand.u32 %v1337, 4294901760
    %v1339 = vsub.f32 %v1337, %v1338
    %v1340 = vand.u32 %v1339, 4294901760
    %1341 = vmatpush1.msra.mxu0 %v1340
    %v1342 = vand.u32 %v72, 4294901760
    %v1343 = vsub.f32 %v72, %v1342
    %v1344 = vand.u32 %v1343, 4294901760
    %v1345 = vsub.f32 %v1343, %v1344
    %v1346 = vand.u32 %v1345, 4294901760
    %1347 = vmatprep.subr.mxu0 %v1346
    %v1348 = vand.u32 %v71, 4294901760
    %v1349 = vsub.f32 %v71, %v1348
    %v1350 = vand.u32 %v1349, 4294901760
    %v1351 = vsub.f32 %v1349, %v1350
    %v1352 = vand.u32 %v1351, 4294901760
    %1353 = vmatpush1.msra.mxu0 %v1352
    %v1354 = vand.u32 %v64, 4294901760
    %v1355 = vsub.f32 %v64, %v1354
    %v1356 = vand.u32 %v1355, 4294901760
    %v1357 = vsub.f32 %v1355, %v1356
    %v1358 = vand.u32 %v1357, 4294901760
    %1359 = vmatprep.subr.mxu0 %v1358
    %v1360 = vand.u32 %v63, 4294901760
    %v1361 = vsub.f32 %v63, %v1360
    %v1362 = vand.u32 %v1361, 4294901760
    %v1363 = vsub.f32 %v1361, %v1362
    %v1364 = vand.u32 %v1363, 4294901760
    %1365 = vmatpush1.msra.mxu0 %v1364
    %v1366 = vand.u32 %v56, 4294901760
    %v1367 = vsub.f32 %v56, %v1366
    %v1368 = vand.u32 %v1367, 4294901760
    %v1369 = vsub.f32 %v1367, %v1368
    %v1370 = vand.u32 %v1369, 4294901760
    %1371 = vmatprep.subr.mxu0 %v1370
    %v1372 = vand.u32 %v55, 4294901760
    %v1373 = vsub.f32 %v55, %v1372
    %v1374 = vand.u32 %v1373, 4294901760
    %v1375 = vsub.f32 %v1373, %v1374
    %v1376 = vand.u32 %v1375, 4294901760
    %1377 = vmatpush1.msra.mxu0 %v1376
    %1378 = vmatprep.subr.mxu0 0.0
    %1379 = vmatpush2.msra.mxu0 0.0
    %1380 = vmatprep.subr.mxu0 0.0
    %1381 = vmatpush2.msra.mxu0 0.0
    %1382 = vmatprep.subr.mxu0 0.0
    %1383 = vmatpush2.msra.mxu0 0.0
    %1384 = vmatprep.subr.mxu0 0.0
    %1385 = vmatpush2.msra.mxu0 0.0
    %1386 = vmatprep.subr.mxu0 0.0
    %1387 = vmatpush2.msra.mxu0 0.0
    %1388 = vmatprep.subr.mxu0 0.0
    %1389 = vmatpush2.msra.mxu0 0.0
    %1390 = vmatprep.subr.mxu0 0.0
    %1391 = vmatpush2.msra.mxu0 0.0
    %1392 = vmatprep.subr.mxu0 0.0
    %1393 = vmatpush2.msra.mxu0 0.0
    %1394 = vmatprep.subr.mxu0 0.0
    %1395 = vmatpush2.msra.mxu0 0.0
    %1396 = vmatprep.subr.mxu0 0.0
    %1397 = vmatpush2.msra.mxu0 0.0
    %1398 = vmatprep.subr.mxu0 0.0
    %1399 = vmatpush2.msra.mxu0 0.0
    %1400 = vmatprep.subr.mxu0 0.0
    %1401 = vmatpush2.msra.mxu0 0.0
    %1402 = vmatprep.subr.mxu0 0.0
    %1403 = vmatpush2.msra.mxu0 0.0
    %1404 = vmatprep.subr.mxu0 0.0
    %1405 = vmatpush2.msra.mxu0 0.0
    %1406 = vmatprep.subr.mxu0 0.0
    %1407 = vmatpush2.msra.mxu0 0.0
    %1408 = vmatprep.subr.mxu0 0.0
    %1409 = vmatpush2.msra.mxu0 0.0
    %1410 = vmatprep.mubr.f32.mxu0 0.0
    %v1411 = vand.u32 %v52, 4294901760
    %1412 = vmatmul.mubr.f32.gmra.mxu0 %v1411
    %v1413 = vpop.f32.mrf.mxu0
    %v1414 = vadd.f32 %v1182, %v1413
    %v1415 = vpop.f32.mrf.mxu0
    %v1416 = vadd.f32 %v1184, %v1415
    %1417 = vdwg.mxu0
    %v1418 = vand.u32 %v176, 4294901760
    %v1419 = vsub.f32 %v176, %v1418
    %1420 = vmatprep.subr.mxu0 %v1419
    %v1421 = vand.u32 %v175, 4294901760
    %v1422 = vsub.f32 %v175, %v1421
    %1423 = vmatpush1.msra.mxu0 %v1422
    %v1424 = vand.u32 %v168, 4294901760
    %v1425 = vsub.f32 %v168, %v1424
    %1426 = vmatprep.subr.mxu0 %v1425
    %v1427 = vand.u32 %v167, 4294901760
    %v1428 = vsub.f32 %v167, %v1427
    %1429 = vmatpush1.msra.mxu0 %v1428
    %v1430 = vand.u32 %v160, 4294901760
    %v1431 = vsub.f32 %v160, %v1430
    %1432 = vmatprep.subr.mxu0 %v1431
    %v1433 = vand.u32 %v159, 4294901760
    %v1434 = vsub.f32 %v159, %v1433
    %1435 = vmatpush1.msra.mxu0 %v1434
    %v1436 = vand.u32 %v152, 4294901760
    %v1437 = vsub.f32 %v152, %v1436
    %1438 = vmatprep.subr.mxu0 %v1437
    %v1439 = vand.u32 %v151, 4294901760
    %v1440 = vsub.f32 %v151, %v1439
    %1441 = vmatpush1.msra.mxu0 %v1440
    %v1442 = vand.u32 %v144, 4294901760
    %v1443 = vsub.f32 %v144, %v1442
    %1444 = vmatprep.subr.mxu0 %v1443
    %v1445 = vand.u32 %v143, 4294901760
    %v1446 = vsub.f32 %v143, %v1445
    %1447 = vmatpush1.msra.mxu0 %v1446
    %v1448 = vand.u32 %v136, 4294901760
    %v1449 = vsub.f32 %v136, %v1448
    %1450 = vmatprep.subr.mxu0 %v1449
    %v1451 = vand.u32 %v135, 4294901760
    %v1452 = vsub.f32 %v135, %v1451
    %1453 = vmatpush1.msra.mxu0 %v1452
    %v1454 = vand.u32 %v128, 4294901760
    %v1455 = vsub.f32 %v128, %v1454
    %1456 = vmatprep.subr.mxu0 %v1455
    %v1457 = vand.u32 %v127, 4294901760
    %v1458 = vsub.f32 %v127, %v1457
    %1459 = vmatpush1.msra.mxu0 %v1458
    %v1460 = vand.u32 %v120, 4294901760
    %v1461 = vsub.f32 %v120, %v1460
    %1462 = vmatprep.subr.mxu0 %v1461
    %v1463 = vand.u32 %v119, 4294901760
    %v1464 = vsub.f32 %v119, %v1463
    %1465 = vmatpush1.msra.mxu0 %v1464
    %v1466 = vand.u32 %v112, 4294901760
    %v1467 = vsub.f32 %v112, %v1466
    %1468 = vmatprep.subr.mxu0 %v1467
    %v1469 = vand.u32 %v111, 4294901760
    %v1470 = vsub.f32 %v111, %v1469
    %1471 = vmatpush1.msra.mxu0 %v1470
    %v1472 = vand.u32 %v104, 4294901760
    %v1473 = vsub.f32 %v104, %v1472
    %1474 = vmatprep.subr.mxu0 %v1473
    %v1475 = vand.u32 %v103, 4294901760
    %v1476 = vsub.f32 %v103, %v1475
    %1477 = vmatpush1.msra.mxu0 %v1476
    %v1478 = vand.u32 %v96, 4294901760
    %v1479 = vsub.f32 %v96, %v1478
    %1480 = vmatprep.subr.mxu0 %v1479
    %v1481 = vand.u32 %v95, 4294901760
    %v1482 = vsub.f32 %v95, %v1481
    %1483 = vmatpush1.msra.mxu0 %v1482
    %v1484 = vand.u32 %v88, 4294901760
    %v1485 = vsub.f32 %v88, %v1484
    %1486 = vmatprep.subr.mxu0 %v1485
    %v1487 = vand.u32 %v87, 4294901760
    %v1488 = vsub.f32 %v87, %v1487
    %1489 = vmatpush1.msra.mxu0 %v1488
    %v1490 = vand.u32 %v80, 4294901760
    %v1491 = vsub.f32 %v80, %v1490
    %1492 = vmatprep.subr.mxu0 %v1491
    %v1493 = vand.u32 %v79, 4294901760
    %v1494 = vsub.f32 %v79, %v1493
    %1495 = vmatpush1.msra.mxu0 %v1494
    %v1496 = vand.u32 %v72, 4294901760
    %v1497 = vsub.f32 %v72, %v1496
    %1498 = vmatprep.subr.mxu0 %v1497
    %v1499 = vand.u32 %v71, 4294901760
    %v1500 = vsub.f32 %v71, %v1499
    %1501 = vmatpush1.msra.mxu0 %v1500
    %v1502 = vand.u32 %v64, 4294901760
    %v1503 = vsub.f32 %v64, %v1502
    %1504 = vmatprep.subr.mxu0 %v1503
    %v1505 = vand.u32 %v63, 4294901760
    %v1506 = vsub.f32 %v63, %v1505
    %1507 = vmatpush1.msra.mxu0 %v1506
    %v1508 = vand.u32 %v56, 4294901760
    %v1509 = vsub.f32 %v56, %v1508
    %1510 = vmatprep.subr.mxu0 %v1509
    %v1511 = vand.u32 %v55, 4294901760
    %v1512 = vsub.f32 %v55, %v1511
    %1513 = vmatpush1.msra.mxu0 %v1512
    %1514 = vmatprep.subr.mxu0 0.0
    %1515 = vmatpush2.msra.mxu0 0.0
    %1516 = vmatprep.subr.mxu0 0.0
    %1517 = vmatpush2.msra.mxu0 0.0
    %1518 = vmatprep.subr.mxu0 0.0
    %1519 = vmatpush2.msra.mxu0 0.0
    %1520 = vmatprep.subr.mxu0 0.0
    %1521 = vmatpush2.msra.mxu0 0.0
    %1522 = vmatprep.subr.mxu0 0.0
    %1523 = vmatpush2.msra.mxu0 0.0
    %1524 = vmatprep.subr.mxu0 0.0
    %1525 = vmatpush2.msra.mxu0 0.0
    %1526 = vmatprep.subr.mxu0 0.0
    %1527 = vmatpush2.msra.mxu0 0.0
    %1528 = vmatprep.subr.mxu0 0.0
    %1529 = vmatpush2.msra.mxu0 0.0
    %1530 = vmatprep.subr.mxu0 0.0
    %1531 = vmatpush2.msra.mxu0 0.0
    %1532 = vmatprep.subr.mxu0 0.0
    %1533 = vmatpush2.msra.mxu0 0.0
    %1534 = vmatprep.subr.mxu0 0.0
    %1535 = vmatpush2.msra.mxu0 0.0
    %1536 = vmatprep.subr.mxu0 0.0
    %1537 = vmatpush2.msra.mxu0 0.0
    %1538 = vmatprep.subr.mxu0 0.0
    %1539 = vmatpush2.msra.mxu0 0.0
    %1540 = vmatprep.subr.mxu0 0.0
    %1541 = vmatpush2.msra.mxu0 0.0
    %1542 = vmatprep.subr.mxu0 0.0
    %1543 = vmatpush2.msra.mxu0 0.0
    %1544 = vmatprep.subr.mxu0 0.0
    %1545 = vmatpush2.msra.mxu0 0.0
    %1546 = vmatprep.mubr.f32.mxu0 0.0
    %v1547 = vand.u32 %v52, 4294901760
    %v1548 = vsub.f32 %v52, %v1547
    %1549 = vmatmul.mubr.f32.gmra.mxu0 %v1548
    %v1550 = vpop.f32.mrf.mxu0
    %v1551 = vadd.f32 %v1414, %v1550
    %v1552 = vpop.f32.mrf.mxu0
    %v1553 = vadd.f32 %v1416, %v1552
    %1554 = vdwg.mxu0
    %v1555 = vand.u32 %v176, 4294901760
    %1556 = vmatprep.subr.mxu0 %v1555
    %v1557 = vand.u32 %v175, 4294901760
    %1558 = vmatpush1.msra.mxu0 %v1557
    %v1559 = vand.u32 %v168, 4294901760
    %1560 = vmatprep.subr.mxu0 %v1559
    %v1561 = vand.u32 %v167, 4294901760
    %1562 = vmatpush1.msra.mxu0 %v1561
    %v1563 = vand.u32 %v160, 4294901760
    %1564 = vmatprep.subr.mxu0 %v1563
    %v1565 = vand.u32 %v159, 4294901760
    %1566 = vmatpush1.msra.mxu0 %v1565
    %v1567 = vand.u32 %v152, 4294901760
    %1568 = vmatprep.subr.mxu0 %v1567
    %v1569 = vand.u32 %v151, 4294901760
    %1570 = vmatpush1.msra.mxu0 %v1569
    %v1571 = vand.u32 %v144, 4294901760
    %1572 = vmatprep.subr.mxu0 %v1571
    %v1573 = vand.u32 %v143, 4294901760
    %1574 = vmatpush1.msra.mxu0 %v1573
    %v1575 = vand.u32 %v136, 4294901760
    %1576 = vmatprep.subr.mxu0 %v1575
    %v1577 = vand.u32 %v135, 4294901760
    %1578 = vmatpush1.msra.mxu0 %v1577
    %v1579 = vand.u32 %v128, 4294901760
    %1580 = vmatprep.subr.mxu0 %v1579
    %v1581 = vand.u32 %v127, 4294901760
    %1582 = vmatpush1.msra.mxu0 %v1581
    %v1583 = vand.u32 %v120, 4294901760
    %1584 = vmatprep.subr.mxu0 %v1583
    %v1585 = vand.u32 %v119, 4294901760
    %1586 = vmatpush1.msra.mxu0 %v1585
    %v1587 = vand.u32 %v112, 4294901760
    %1588 = vmatprep.subr.mxu0 %v1587
    %v1589 = vand.u32 %v111, 4294901760
    %1590 = vmatpush1.msra.mxu0 %v1589
    %v1591 = vand.u32 %v104, 4294901760
    %1592 = vmatprep.subr.mxu0 %v1591
    %v1593 = vand.u32 %v103, 4294901760
    %1594 = vmatpush1.msra.mxu0 %v1593
    %v1595 = vand.u32 %v96, 4294901760
    %1596 = vmatprep.subr.mxu0 %v1595
    %v1597 = vand.u32 %v95, 4294901760
    %1598 = vmatpush1.msra.mxu0 %v1597
    %v1599 = vand.u32 %v88, 4294901760
    %1600 = vmatprep.subr.mxu0 %v1599
    %v1601 = vand.u32 %v87, 4294901760
    %1602 = vmatpush1.msra.mxu0 %v1601
    %v1603 = vand.u32 %v80, 4294901760
    %1604 = vmatprep.subr.mxu0 %v1603
    %v1605 = vand.u32 %v79, 4294901760
    %1606 = vmatpush1.msra.mxu0 %v1605
    %v1607 = vand.u32 %v72, 4294901760
    %1608 = vmatprep.subr.mxu0 %v1607
    %v1609 = vand.u32 %v71, 4294901760
    %1610 = vmatpush1.msra.mxu0 %v1609
    %v1611 = vand.u32 %v64, 4294901760
    %1612 = vmatprep.subr.mxu0 %v1611
    %v1613 = vand.u32 %v63, 4294901760
    %1614 = vmatpush1.msra.mxu0 %v1613
    %v1615 = vand.u32 %v56, 4294901760
    %1616 = vmatprep.subr.mxu0 %v1615
    %v1617 = vand.u32 %v55, 4294901760
    %1618 = vmatpush1.msra.mxu0 %v1617
    %1619 = vmatprep.subr.mxu0 0.0
    %1620 = vmatpush2.msra.mxu0 0.0
    %1621 = vmatprep.subr.mxu0 0.0
    %1622 = vmatpush2.msra.mxu0 0.0
    %1623 = vmatprep.subr.mxu0 0.0
    %1624 = vmatpush2.msra.mxu0 0.0
    %1625 = vmatprep.subr.mxu0 0.0
    %1626 = vmatpush2.msra.mxu0 0.0
    %1627 = vmatprep.subr.mxu0 0.0
    %1628 = vmatpush2.msra.mxu0 0.0
    %1629 = vmatprep.subr.mxu0 0.0
    %1630 = vmatpush2.msra.mxu0 0.0
    %1631 = vmatprep.subr.mxu0 0.0
    %1632 = vmatpush2.msra.mxu0 0.0
    %1633 = vmatprep.subr.mxu0 0.0
    %1634 = vmatpush2.msra.mxu0 0.0
    %1635 = vmatprep.subr.mxu0 0.0
    %1636 = vmatpush2.msra.mxu0 0.0
    %1637 = vmatprep.subr.mxu0 0.0
    %1638 = vmatpush2.msra.mxu0 0.0
    %1639 = vmatprep.subr.mxu0 0.0
    %1640 = vmatpush2.msra.mxu0 0.0
    %1641 = vmatprep.subr.mxu0 0.0
    %1642 = vmatpush2.msra.mxu0 0.0
    %1643 = vmatprep.subr.mxu0 0.0
    %1644 = vmatpush2.msra.mxu0 0.0
    %1645 = vmatprep.subr.mxu0 0.0
    %1646 = vmatpush2.msra.mxu0 0.0
    %1647 = vmatprep.subr.mxu0 0.0
    %1648 = vmatpush2.msra.mxu0 0.0
    %1649 = vmatprep.subr.mxu0 0.0
    %1650 = vmatpush2.msra.mxu0 0.0
    %1651 = vmatprep.mubr.f32.mxu0 0.0
    %v1652 = vand.u32 %v52, 4294901760
    %v1653 = vsub.f32 %v52, %v1652
    %v1654 = vand.u32 %v1653, 4294901760
    %1655 = vmatmul.mubr.f32.gmra.mxu0 %v1654
    %v1656 = vpop.f32.mrf.mxu0
    %v1657 = vadd.f32 %v1551, %v1656
    %v1658 = vpop.f32.mrf.mxu0
    %v1659 = vadd.f32 %v1553, %v1658
    %1660 = vdwg.mxu0
    %v1661 = vand.u32 %v176, 4294901760
    %v1662 = vsub.f32 %v176, %v1661
    %v1663 = vand.u32 %v1662, 4294901760
    %1664 = vmatprep.subr.mxu0 %v1663
    %v1665 = vand.u32 %v175, 4294901760
    %v1666 = vsub.f32 %v175, %v1665
    %v1667 = vand.u32 %v1666, 4294901760
    %1668 = vmatpush1.msra.mxu0 %v1667
    %v1669 = vand.u32 %v168, 4294901760
    %v1670 = vsub.f32 %v168, %v1669
    %v1671 = vand.u32 %v1670, 4294901760
    %1672 = vmatprep.subr.mxu0 %v1671
    %v1673 = vand.u32 %v167, 4294901760
    %v1674 = vsub.f32 %v167, %v1673
    %v1675 = vand.u32 %v1674, 4294901760
    %1676 = vmatpush1.msra.mxu0 %v1675
    %v1677 = vand.u32 %v160, 4294901760
    %v1678 = vsub.f32 %v160, %v1677
    %v1679 = vand.u32 %v1678, 4294901760
    %1680 = vmatprep.subr.mxu0 %v1679
    %v1681 = vand.u32 %v159, 4294901760
    %v1682 = vsub.f32 %v159, %v1681
    %v1683 = vand.u32 %v1682, 4294901760
    %1684 = vmatpush1.msra.mxu0 %v1683
    %v1685 = vand.u32 %v152, 4294901760
    %v1686 = vsub.f32 %v152, %v1685
    %v1687 = vand.u32 %v1686, 4294901760
    %1688 = vmatprep.subr.mxu0 %v1687
    %v1689 = vand.u32 %v151, 4294901760
    %v1690 = vsub.f32 %v151, %v1689
    %v1691 = vand.u32 %v1690, 4294901760
    %1692 = vmatpush1.msra.mxu0 %v1691
    %v1693 = vand.u32 %v144, 4294901760
    %v1694 = vsub.f32 %v144, %v1693
    %v1695 = vand.u32 %v1694, 4294901760
    %1696 = vmatprep.subr.mxu0 %v1695
    %v1697 = vand.u32 %v143, 4294901760
    %v1698 = vsub.f32 %v143, %v1697
    %v1699 = vand.u32 %v1698, 4294901760
    %1700 = vmatpush1.msra.mxu0 %v1699
    %v1701 = vand.u32 %v136, 4294901760
    %v1702 = vsub.f32 %v136, %v1701
    %v1703 = vand.u32 %v1702, 4294901760
    %1704 = vmatprep.subr.mxu0 %v1703
    %v1705 = vand.u32 %v135, 4294901760
    %v1706 = vsub.f32 %v135, %v1705
    %v1707 = vand.u32 %v1706, 4294901760
    %1708 = vmatpush1.msra.mxu0 %v1707
    %v1709 = vand.u32 %v128, 4294901760
    %v1710 = vsub.f32 %v128, %v1709
    %v1711 = vand.u32 %v1710, 4294901760
    %1712 = vmatprep.subr.mxu0 %v1711
    %v1713 = vand.u32 %v127, 4294901760
    %v1714 = vsub.f32 %v127, %v1713
    %v1715 = vand.u32 %v1714, 4294901760
    %1716 = vmatpush1.msra.mxu0 %v1715
    %v1717 = vand.u32 %v120, 4294901760
    %v1718 = vsub.f32 %v120, %v1717
    %v1719 = vand.u32 %v1718, 4294901760
    %1720 = vmatprep.subr.mxu0 %v1719
    %v1721 = vand.u32 %v119, 4294901760
    %v1722 = vsub.f32 %v119, %v1721
    %v1723 = vand.u32 %v1722, 4294901760
    %1724 = vmatpush1.msra.mxu0 %v1723
    %v1725 = vand.u32 %v112, 4294901760
    %v1726 = vsub.f32 %v112, %v1725
    %v1727 = vand.u32 %v1726, 4294901760
    %1728 = vmatprep.subr.mxu0 %v1727
    %v1729 = vand.u32 %v111, 4294901760
    %v1730 = vsub.f32 %v111, %v1729
    %v1731 = vand.u32 %v1730, 4294901760
    %1732 = vmatpush1.msra.mxu0 %v1731
    %v1733 = vand.u32 %v104, 4294901760
    %v1734 = vsub.f32 %v104, %v1733
    %v1735 = vand.u32 %v1734, 4294901760
    %1736 = vmatprep.subr.mxu0 %v1735
    %v1737 = vand.u32 %v103, 4294901760
    %v1738 = vsub.f32 %v103, %v1737
    %v1739 = vand.u32 %v1738, 4294901760
    %1740 = vmatpush1.msra.mxu0 %v1739
    %v1741 = vand.u32 %v96, 4294901760
    %v1742 = vsub.f32 %v96, %v1741
    %v1743 = vand.u32 %v1742, 4294901760
    %1744 = vmatprep.subr.mxu0 %v1743
    %v1745 = vand.u32 %v95, 4294901760
    %v1746 = vsub.f32 %v95, %v1745
    %v1747 = vand.u32 %v1746, 4294901760
    %1748 = vmatpush1.msra.mxu0 %v1747
    %v1749 = vand.u32 %v88, 4294901760
    %v1750 = vsub.f32 %v88, %v1749
    %v1751 = vand.u32 %v1750, 4294901760
    %1752 = vmatprep.subr.mxu0 %v1751
    %v1753 = vand.u32 %v87, 4294901760
    %v1754 = vsub.f32 %v87, %v1753
    %v1755 = vand.u32 %v1754, 4294901760
    %1756 = vmatpush1.msra.mxu0 %v1755
    %v1757 = vand.u32 %v80, 4294901760
    %v1758 = vsub.f32 %v80, %v1757
    %v1759 = vand.u32 %v1758, 4294901760
    %1760 = vmatprep.subr.mxu0 %v1759
    %v1761 = vand.u32 %v79, 4294901760
    %v1762 = vsub.f32 %v79, %v1761
    %v1763 = vand.u32 %v1762, 4294901760
    %1764 = vmatpush1.msra.mxu0 %v1763
    %v1765 = vand.u32 %v72, 4294901760
    %v1766 = vsub.f32 %v72, %v1765
    %v1767 = vand.u32 %v1766, 4294901760
    %1768 = vmatprep.subr.mxu0 %v1767
    %v1769 = vand.u32 %v71, 4294901760
    %v1770 = vsub.f32 %v71, %v1769
    %v1771 = vand.u32 %v1770, 4294901760
    %1772 = vmatpush1.msra.mxu0 %v1771
    %v1773 = vand.u32 %v64, 4294901760
    %v1774 = vsub.f32 %v64, %v1773
    %v1775 = vand.u32 %v1774, 4294901760
    %1776 = vmatprep.subr.mxu0 %v1775
    %v1777 = vand.u32 %v63, 4294901760
    %v1778 = vsub.f32 %v63, %v1777
    %v1779 = vand.u32 %v1778, 4294901760
    %1780 = vmatpush1.msra.mxu0 %v1779
    %v1781 = vand.u32 %v56, 4294901760
    %v1782 = vsub.f32 %v56, %v1781
    %v1783 = vand.u32 %v1782, 4294901760
    %1784 = vmatprep.subr.mxu0 %v1783
    %v1785 = vand.u32 %v55, 4294901760
    %v1786 = vsub.f32 %v55, %v1785
    %v1787 = vand.u32 %v1786, 4294901760
    %1788 = vmatpush1.msra.mxu0 %v1787
    %1789 = vmatprep.subr.mxu0 0.0
    %1790 = vmatpush2.msra.mxu0 0.0
    %1791 = vmatprep.subr.mxu0 0.0
    %1792 = vmatpush2.msra.mxu0 0.0
    %1793 = vmatprep.subr.mxu0 0.0
    %1794 = vmatpush2.msra.mxu0 0.0
    %1795 = vmatprep.subr.mxu0 0.0
    %1796 = vmatpush2.msra.mxu0 0.0
    %1797 = vmatprep.subr.mxu0 0.0
    %1798 = vmatpush2.msra.mxu0 0.0
    %1799 = vmatprep.subr.mxu0 0.0
    %1800 = vmatpush2.msra.mxu0 0.0
    %1801 = vmatprep.subr.mxu0 0.0
    %1802 = vmatpush2.msra.mxu0 0.0
    %1803 = vmatprep.subr.mxu0 0.0
    %1804 = vmatpush2.msra.mxu0 0.0
    %1805 = vmatprep.subr.mxu0 0.0
    %1806 = vmatpush2.msra.mxu0 0.0
    %1807 = vmatprep.subr.mxu0 0.0
    %1808 = vmatpush2.msra.mxu0 0.0
    %1809 = vmatprep.subr.mxu0 0.0
    %1810 = vmatpush2.msra.mxu0 0.0
    %1811 = vmatprep.subr.mxu0 0.0
    %1812 = vmatpush2.msra.mxu0 0.0
    %1813 = vmatprep.subr.mxu0 0.0
    %1814 = vmatpush2.msra.mxu0 0.0
    %1815 = vmatprep.subr.mxu0 0.0
    %1816 = vmatpush2.msra.mxu0 0.0
    %1817 = vmatprep.subr.mxu0 0.0
    %1818 = vmatpush2.msra.mxu0 0.0
    %1819 = vmatprep.subr.mxu0 0.0
    %1820 = vmatpush2.msra.mxu0 0.0
    %1821 = vmatprep.mubr.f32.mxu0 0.0
    %v1822 = vand.u32 %v52, 4294901760
    %1823 = vmatmul.mubr.f32.gmra.mxu0 %v1822
    %v1824 = vpop.f32.mrf.mxu0
    %v1825 = vadd.f32 %v1657, %v1824
    %v1826 = vpop.f32.mrf.mxu0
    %v1827 = vadd.f32 %v1659, %v1826
    %1828 = vdwg.mxu0
    %v1829 = vand.u32 %v176, 4294901760
    %1830 = vmatprep.subr.mxu0 %v1829
    %v1831 = vand.u32 %v175, 4294901760
    %1832 = vmatpush1.msra.mxu0 %v1831
    %v1833 = vand.u32 %v168, 4294901760
    %1834 = vmatprep.subr.mxu0 %v1833
    %v1835 = vand.u32 %v167, 4294901760
    %1836 = vmatpush1.msra.mxu0 %v1835
    %v1837 = vand.u32 %v160, 4294901760
    %1838 = vmatprep.subr.mxu0 %v1837
    %v1839 = vand.u32 %v159, 4294901760
    %1840 = vmatpush1.msra.mxu0 %v1839
    %v1841 = vand.u32 %v152, 4294901760
    %1842 = vmatprep.subr.mxu0 %v1841
    %v1843 = vand.u32 %v151, 4294901760
    %1844 = vmatpush1.msra.mxu0 %v1843
    %v1845 = vand.u32 %v144, 4294901760
    %1846 = vmatprep.subr.mxu0 %v1845
    %v1847 = vand.u32 %v143, 4294901760
    %1848 = vmatpush1.msra.mxu0 %v1847
    %v1849 = vand.u32 %v136, 4294901760
    %1850 = vmatprep.subr.mxu0 %v1849
    %v1851 = vand.u32 %v135, 4294901760
    %1852 = vmatpush1.msra.mxu0 %v1851
    %v1853 = vand.u32 %v128, 4294901760
    %1854 = vmatprep.subr.mxu0 %v1853
    %v1855 = vand.u32 %v127, 4294901760
    %1856 = vmatpush1.msra.mxu0 %v1855
    %v1857 = vand.u32 %v120, 4294901760
    %1858 = vmatprep.subr.mxu0 %v1857
    %v1859 = vand.u32 %v119, 4294901760
    %1860 = vmatpush1.msra.mxu0 %v1859
    %v1861 = vand.u32 %v112, 4294901760
    %1862 = vmatprep.subr.mxu0 %v1861
    %v1863 = vand.u32 %v111, 4294901760
    %1864 = vmatpush1.msra.mxu0 %v1863
    %v1865 = vand.u32 %v104, 4294901760
    %1866 = vmatprep.subr.mxu0 %v1865
    %v1867 = vand.u32 %v103, 4294901760
    %1868 = vmatpush1.msra.mxu0 %v1867
    %v1869 = vand.u32 %v96, 4294901760
    %1870 = vmatprep.subr.mxu0 %v1869
    %v1871 = vand.u32 %v95, 4294901760
    %1872 = vmatpush1.msra.mxu0 %v1871
    %v1873 = vand.u32 %v88, 4294901760
    %1874 = vmatprep.subr.mxu0 %v1873
    %v1875 = vand.u32 %v87, 4294901760
    %1876 = vmatpush1.msra.mxu0 %v1875
    %v1877 = vand.u32 %v80, 4294901760
    %1878 = vmatprep.subr.mxu0 %v1877
    %v1879 = vand.u32 %v79, 4294901760
    %1880 = vmatpush1.msra.mxu0 %v1879
    %v1881 = vand.u32 %v72, 4294901760
    %1882 = vmatprep.subr.mxu0 %v1881
    %v1883 = vand.u32 %v71, 4294901760
    %1884 = vmatpush1.msra.mxu0 %v1883
    %v1885 = vand.u32 %v64, 4294901760
    %1886 = vmatprep.subr.mxu0 %v1885
    %v1887 = vand.u32 %v63, 4294901760
    %1888 = vmatpush1.msra.mxu0 %v1887
    %v1889 = vand.u32 %v56, 4294901760
    %1890 = vmatprep.subr.mxu0 %v1889
    %v1891 = vand.u32 %v55, 4294901760
    %1892 = vmatpush1.msra.mxu0 %v1891
    %1893 = vmatprep.subr.mxu0 0.0
    %1894 = vmatpush2.msra.mxu0 0.0
    %1895 = vmatprep.subr.mxu0 0.0
    %1896 = vmatpush2.msra.mxu0 0.0
    %1897 = vmatprep.subr.mxu0 0.0
    %1898 = vmatpush2.msra.mxu0 0.0
    %1899 = vmatprep.subr.mxu0 0.0
    %1900 = vmatpush2.msra.mxu0 0.0
    %1901 = vmatprep.subr.mxu0 0.0
    %1902 = vmatpush2.msra.mxu0 0.0
    %1903 = vmatprep.subr.mxu0 0.0
    %1904 = vmatpush2.msra.mxu0 0.0
    %1905 = vmatprep.subr.mxu0 0.0
    %1906 = vmatpush2.msra.mxu0 0.0
    %1907 = vmatprep.subr.mxu0 0.0
    %1908 = vmatpush2.msra.mxu0 0.0
    %1909 = vmatprep.subr.mxu0 0.0
    %1910 = vmatpush2.msra.mxu0 0.0
    %1911 = vmatprep.subr.mxu0 0.0
    %1912 = vmatpush2.msra.mxu0 0.0
    %1913 = vmatprep.subr.mxu0 0.0
    %1914 = vmatpush2.msra.mxu0 0.0
    %1915 = vmatprep.subr.mxu0 0.0
    %1916 = vmatpush2.msra.mxu0 0.0
    %1917 = vmatprep.subr.mxu0 0.0
    %1918 = vmatpush2.msra.mxu0 0.0
    %1919 = vmatprep.subr.mxu0 0.0
    %1920 = vmatpush2.msra.mxu0 0.0
    %1921 = vmatprep.subr.mxu0 0.0
    %1922 = vmatpush2.msra.mxu0 0.0
    %1923 = vmatprep.subr.mxu0 0.0
    %1924 = vmatpush2.msra.mxu0 0.0
    %1925 = vmatprep.mubr.f32.mxu0 0.0
    %v1926 = vand.u32 %v52, 4294901760
    %1927 = vmatmul.mubr.f32.gmra.mxu0 %v1926
    %v1928 = vpop.f32.mrf.mxu0
    %v1929 = vadd.f32 %v1825, %v1928
    %v1930 = vpop.f32.mrf.mxu0
    %v1931 = vadd.f32 %v1827, %v1930
    %1932 = vdwg.mxu0
    %v1933 = vand.u32 %v178, 4294901760
    %1934 = vmatprep.subr.mxu0 %v1933
    %v1935 = vand.u32 %v177, 4294901760
    %1936 = vmatpush1.msra.mxu0 %v1935
    %v1937 = vand.u32 %v170, 4294901760
    %1938 = vmatprep.subr.mxu0 %v1937
    %v1939 = vand.u32 %v169, 4294901760
    %1940 = vmatpush1.msra.mxu0 %v1939
    %v1941 = vand.u32 %v162, 4294901760
    %1942 = vmatprep.subr.mxu0 %v1941
    %v1943 = vand.u32 %v161, 4294901760
    %1944 = vmatpush1.msra.mxu0 %v1943
    %v1945 = vand.u32 %v154, 4294901760
    %1946 = vmatprep.subr.mxu0 %v1945
    %v1947 = vand.u32 %v153, 4294901760
    %1948 = vmatpush1.msra.mxu0 %v1947
    %v1949 = vand.u32 %v146, 4294901760
    %1950 = vmatprep.subr.mxu0 %v1949
    %v1951 = vand.u32 %v145, 4294901760
    %1952 = vmatpush1.msra.mxu0 %v1951
    %v1953 = vand.u32 %v138, 4294901760
    %1954 = vmatprep.subr.mxu0 %v1953
    %v1955 = vand.u32 %v137, 4294901760
    %1956 = vmatpush1.msra.mxu0 %v1955
    %v1957 = vand.u32 %v130, 4294901760
    %1958 = vmatprep.subr.mxu0 %v1957
    %v1959 = vand.u32 %v129, 4294901760
    %1960 = vmatpush1.msra.mxu0 %v1959
    %v1961 = vand.u32 %v122, 4294901760
    %1962 = vmatprep.subr.mxu0 %v1961
    %v1963 = vand.u32 %v121, 4294901760
    %1964 = vmatpush1.msra.mxu0 %v1963
    %v1965 = vand.u32 %v114, 4294901760
    %1966 = vmatprep.subr.mxu0 %v1965
    %v1967 = vand.u32 %v113, 4294901760
    %1968 = vmatpush1.msra.mxu0 %v1967
    %v1969 = vand.u32 %v106, 4294901760
    %1970 = vmatprep.subr.mxu0 %v1969
    %v1971 = vand.u32 %v105, 4294901760
    %1972 = vmatpush1.msra.mxu0 %v1971
    %v1973 = vand.u32 %v98, 4294901760
    %1974 = vmatprep.subr.mxu0 %v1973
    %v1975 = vand.u32 %v97, 4294901760
    %1976 = vmatpush1.msra.mxu0 %v1975
    %v1977 = vand.u32 %v90, 4294901760
    %1978 = vmatprep.subr.mxu0 %v1977
    %v1979 = vand.u32 %v89, 4294901760
    %1980 = vmatpush1.msra.mxu0 %v1979
    %v1981 = vand.u32 %v82, 4294901760
    %1982 = vmatprep.subr.mxu0 %v1981
    %v1983 = vand.u32 %v81, 4294901760
    %1984 = vmatpush1.msra.mxu0 %v1983
    %v1985 = vand.u32 %v74, 4294901760
    %1986 = vmatprep.subr.mxu0 %v1985
    %v1987 = vand.u32 %v73, 4294901760
    %1988 = vmatpush1.msra.mxu0 %v1987
    %v1989 = vand.u32 %v66, 4294901760
    %1990 = vmatprep.subr.mxu0 %v1989
    %v1991 = vand.u32 %v65, 4294901760
    %1992 = vmatpush1.msra.mxu0 %v1991
    %v1993 = vand.u32 %v58, 4294901760
    %1994 = vmatprep.subr.mxu0 %v1993
    %v1995 = vand.u32 %v57, 4294901760
    %1996 = vmatpush1.msra.mxu0 %v1995
    %1997 = vmatprep.subr.mxu0 0.0
    %1998 = vmatpush2.msra.mxu0 0.0
    %1999 = vmatprep.subr.mxu0 0.0
    %2000 = vmatpush2.msra.mxu0 0.0
    %2001 = vmatprep.subr.mxu0 0.0
    %2002 = vmatpush2.msra.mxu0 0.0
    %2003 = vmatprep.subr.mxu0 0.0
    %2004 = vmatpush2.msra.mxu0 0.0
    %2005 = vmatprep.subr.mxu0 0.0
    %2006 = vmatpush2.msra.mxu0 0.0
    %2007 = vmatprep.subr.mxu0 0.0
    %2008 = vmatpush2.msra.mxu0 0.0
    %2009 = vmatprep.subr.mxu0 0.0
    %2010 = vmatpush2.msra.mxu0 0.0
    %2011 = vmatprep.subr.mxu0 0.0
    %2012 = vmatpush2.msra.mxu0 0.0
    %2013 = vmatprep.subr.mxu0 0.0
    %2014 = vmatpush2.msra.mxu0 0.0
    %2015 = vmatprep.subr.mxu0 0.0
    %2016 = vmatpush2.msra.mxu0 0.0
    %2017 = vmatprep.subr.mxu0 0.0
    %2018 = vmatpush2.msra.mxu0 0.0
    %2019 = vmatprep.subr.mxu0 0.0
    %2020 = vmatpush2.msra.mxu0 0.0
    %2021 = vmatprep.subr.mxu0 0.0
    %2022 = vmatpush2.msra.mxu0 0.0
    %2023 = vmatprep.subr.mxu0 0.0
    %2024 = vmatpush2.msra.mxu0 0.0
    %2025 = vmatprep.subr.mxu0 0.0
    %2026 = vmatpush2.msra.mxu0 0.0
    %2027 = vmatprep.subr.mxu0 0.0
    %2028 = vmatpush2.msra.mxu0 0.0
    %2029 = vmatprep.mubr.f32.mxu0 0.0
    %v2030 = vand.u32 %v52, 4294901760
    %v2031 = vsub.f32 %v52, %v2030
    %v2032 = vand.u32 %v2031, 4294901760
    %v2033 = vsub.f32 %v2031, %v2032
    %v2034 = vand.u32 %v2033, 4294901760
    %2035 = vmatmul.mubr.f32.gmra.mxu0 %v2034
    %v2036 = vpop.f32.mrf.mxu0
    %v2037 = vadd.f32 %v202, %v2036
    %v2038 = vpop.f32.mrf.mxu0
    %v2039 = vadd.f32 %v206, %v2038
    %2040 = vdwg.mxu0
    %v2041 = vand.u32 %v178, 4294901760
    %v2042 = vsub.f32 %v178, %v2041
    %v2043 = vand.u32 %v2042, 4294901760
    %v2044 = vsub.f32 %v2042, %v2043
    %v2045 = vand.u32 %v2044, 4294901760
    %2046 = vmatprep.subr.mxu0 %v2045
    %v2047 = vand.u32 %v177, 4294901760
    %v2048 = vsub.f32 %v177, %v2047
    %v2049 = vand.u32 %v2048, 4294901760
    %v2050 = vsub.f32 %v2048, %v2049
    %v2051 = vand.u32 %v2050, 4294901760
    %2052 = vmatpush1.msra.mxu0 %v2051
    %v2053 = vand.u32 %v170, 4294901760
    %v2054 = vsub.f32 %v170, %v2053
    %v2055 = vand.u32 %v2054, 4294901760
    %v2056 = vsub.f32 %v2054, %v2055
    %v2057 = vand.u32 %v2056, 4294901760
    %2058 = vmatprep.subr.mxu0 %v2057
    %v2059 = vand.u32 %v169, 4294901760
    %v2060 = vsub.f32 %v169, %v2059
    %v2061 = vand.u32 %v2060, 4294901760
    %v2062 = vsub.f32 %v2060, %v2061
    %v2063 = vand.u32 %v2062, 4294901760
    %2064 = vmatpush1.msra.mxu0 %v2063
    %v2065 = vand.u32 %v162, 4294901760
    %v2066 = vsub.f32 %v162, %v2065
    %v2067 = vand.u32 %v2066, 4294901760
    %v2068 = vsub.f32 %v2066, %v2067
    %v2069 = vand.u32 %v2068, 4294901760
    %2070 = vmatprep.subr.mxu0 %v2069
    %v2071 = vand.u32 %v161, 4294901760
    %v2072 = vsub.f32 %v161, %v2071
    %v2073 = vand.u32 %v2072, 4294901760
    %v2074 = vsub.f32 %v2072, %v2073
    %v2075 = vand.u32 %v2074, 4294901760
    %2076 = vmatpush1.msra.mxu0 %v2075
    %v2077 = vand.u32 %v154, 4294901760
    %v2078 = vsub.f32 %v154, %v2077
    %v2079 = vand.u32 %v2078, 4294901760
    %v2080 = vsub.f32 %v2078, %v2079
    %v2081 = vand.u32 %v2080, 4294901760
    %2082 = vmatprep.subr.mxu0 %v2081
    %v2083 = vand.u32 %v153, 4294901760
    %v2084 = vsub.f32 %v153, %v2083
    %v2085 = vand.u32 %v2084, 4294901760
    %v2086 = vsub.f32 %v2084, %v2085
    %v2087 = vand.u32 %v2086, 4294901760
    %2088 = vmatpush1.msra.mxu0 %v2087
    %v2089 = vand.u32 %v146, 4294901760
    %v2090 = vsub.f32 %v146, %v2089
    %v2091 = vand.u32 %v2090, 4294901760
    %v2092 = vsub.f32 %v2090, %v2091
    %v2093 = vand.u32 %v2092, 4294901760
    %2094 = vmatprep.subr.mxu0 %v2093
    %v2095 = vand.u32 %v145, 4294901760
    %v2096 = vsub.f32 %v145, %v2095
    %v2097 = vand.u32 %v2096, 4294901760
    %v2098 = vsub.f32 %v2096, %v2097
    %v2099 = vand.u32 %v2098, 4294901760
    %2100 = vmatpush1.msra.mxu0 %v2099
    %v2101 = vand.u32 %v138, 4294901760
    %v2102 = vsub.f32 %v138, %v2101
    %v2103 = vand.u32 %v2102, 4294901760
    %v2104 = vsub.f32 %v2102, %v2103
    %v2105 = vand.u32 %v2104, 4294901760
    %2106 = vmatprep.subr.mxu0 %v2105
    %v2107 = vand.u32 %v137, 4294901760
    %v2108 = vsub.f32 %v137, %v2107
    %v2109 = vand.u32 %v2108, 4294901760
    %v2110 = vsub.f32 %v2108, %v2109
    %v2111 = vand.u32 %v2110, 4294901760
    %2112 = vmatpush1.msra.mxu0 %v2111
    %v2113 = vand.u32 %v130, 4294901760
    %v2114 = vsub.f32 %v130, %v2113
    %v2115 = vand.u32 %v2114, 4294901760
    %v2116 = vsub.f32 %v2114, %v2115
    %v2117 = vand.u32 %v2116, 4294901760
    %2118 = vmatprep.subr.mxu0 %v2117
    %v2119 = vand.u32 %v129, 4294901760
    %v2120 = vsub.f32 %v129, %v2119
    %v2121 = vand.u32 %v2120, 4294901760
    %v2122 = vsub.f32 %v2120, %v2121
    %v2123 = vand.u32 %v2122, 4294901760
    %2124 = vmatpush1.msra.mxu0 %v2123
    %v2125 = vand.u32 %v122, 4294901760
    %v2126 = vsub.f32 %v122, %v2125
    %v2127 = vand.u32 %v2126, 4294901760
    %v2128 = vsub.f32 %v2126, %v2127
    %v2129 = vand.u32 %v2128, 4294901760
    %2130 = vmatprep.subr.mxu0 %v2129
    %v2131 = vand.u32 %v121, 4294901760
    %v2132 = vsub.f32 %v121, %v2131
    %v2133 = vand.u32 %v2132, 4294901760
    %v2134 = vsub.f32 %v2132, %v2133
    %v2135 = vand.u32 %v2134, 4294901760
    %2136 = vmatpush1.msra.mxu0 %v2135
    %v2137 = vand.u32 %v114, 4294901760
    %v2138 = vsub.f32 %v114, %v2137
    %v2139 = vand.u32 %v2138, 4294901760
    %v2140 = vsub.f32 %v2138, %v2139
    %v2141 = vand.u32 %v2140, 4294901760
    %2142 = vmatprep.subr.mxu0 %v2141
    %v2143 = vand.u32 %v113, 4294901760
    %v2144 = vsub.f32 %v113, %v2143
    %v2145 = vand.u32 %v2144, 4294901760
    %v2146 = vsub.f32 %v2144, %v2145
    %v2147 = vand.u32 %v2146, 4294901760
    %2148 = vmatpush1.msra.mxu0 %v2147
    %v2149 = vand.u32 %v106, 4294901760
    %v2150 = vsub.f32 %v106, %v2149
    %v2151 = vand.u32 %v2150, 4294901760
    %v2152 = vsub.f32 %v2150, %v2151
    %v2153 = vand.u32 %v2152, 4294901760
    %2154 = vmatprep.subr.mxu0 %v2153
    %v2155 = vand.u32 %v105, 4294901760
    %v2156 = vsub.f32 %v105, %v2155
    %v2157 = vand.u32 %v2156, 4294901760
    %v2158 = vsub.f32 %v2156, %v2157
    %v2159 = vand.u32 %v2158, 4294901760
    %2160 = vmatpush1.msra.mxu0 %v2159
    %v2161 = vand.u32 %v98, 4294901760
    %v2162 = vsub.f32 %v98, %v2161
    %v2163 = vand.u32 %v2162, 4294901760
    %v2164 = vsub.f32 %v2162, %v2163
    %v2165 = vand.u32 %v2164, 4294901760
    %2166 = vmatprep.subr.mxu0 %v2165
    %v2167 = vand.u32 %v97, 4294901760
    %v2168 = vsub.f32 %v97, %v2167
    %v2169 = vand.u32 %v2168, 4294901760
    %v2170 = vsub.f32 %v2168, %v2169
    %v2171 = vand.u32 %v2170, 4294901760
    %2172 = vmatpush1.msra.mxu0 %v2171
    %v2173 = vand.u32 %v90, 4294901760
    %v2174 = vsub.f32 %v90, %v2173
    %v2175 = vand.u32 %v2174, 4294901760
    %v2176 = vsub.f32 %v2174, %v2175
    %v2177 = vand.u32 %v2176, 4294901760
    %2178 = vmatprep.subr.mxu0 %v2177
    %v2179 = vand.u32 %v89, 4294901760
    %v2180 = vsub.f32 %v89, %v2179
    %v2181 = vand.u32 %v2180, 4294901760
    %v2182 = vsub.f32 %v2180, %v2181
    %v2183 = vand.u32 %v2182, 4294901760
    %2184 = vmatpush1.msra.mxu0 %v2183
    %v2185 = vand.u32 %v82, 4294901760
    %v2186 = vsub.f32 %v82, %v2185
    %v2187 = vand.u32 %v2186, 4294901760
    %v2188 = vsub.f32 %v2186, %v2187
    %v2189 = vand.u32 %v2188, 4294901760
    %2190 = vmatprep.subr.mxu0 %v2189
    %v2191 = vand.u32 %v81, 4294901760
    %v2192 = vsub.f32 %v81, %v2191
    %v2193 = vand.u32 %v2192, 4294901760
    %v2194 = vsub.f32 %v2192, %v2193
    %v2195 = vand.u32 %v2194, 4294901760
    %2196 = vmatpush1.msra.mxu0 %v2195
    %v2197 = vand.u32 %v74, 4294901760
    %v2198 = vsub.f32 %v74, %v2197
    %v2199 = vand.u32 %v2198, 4294901760
    %v2200 = vsub.f32 %v2198, %v2199
    %v2201 = vand.u32 %v2200, 4294901760
    %2202 = vmatprep.subr.mxu0 %v2201
    %v2203 = vand.u32 %v73, 4294901760
    %v2204 = vsub.f32 %v73, %v2203
    %v2205 = vand.u32 %v2204, 4294901760
    %v2206 = vsub.f32 %v2204, %v2205
    %v2207 = vand.u32 %v2206, 4294901760
    %2208 = vmatpush1.msra.mxu0 %v2207
    %v2209 = vand.u32 %v66, 4294901760
    %v2210 = vsub.f32 %v66, %v2209
    %v2211 = vand.u32 %v2210, 4294901760
    %v2212 = vsub.f32 %v2210, %v2211
    %v2213 = vand.u32 %v2212, 4294901760
    %2214 = vmatprep.subr.mxu0 %v2213
    %v2215 = vand.u32 %v65, 4294901760
    %v2216 = vsub.f32 %v65, %v2215
    %v2217 = vand.u32 %v2216, 4294901760
    %v2218 = vsub.f32 %v2216, %v2217
    %v2219 = vand.u32 %v2218, 4294901760
    %2220 = vmatpush1.msra.mxu0 %v2219
    %v2221 = vand.u32 %v58, 4294901760
    %v2222 = vsub.f32 %v58, %v2221
    %v2223 = vand.u32 %v2222, 4294901760
    %v2224 = vsub.f32 %v2222, %v2223
    %v2225 = vand.u32 %v2224, 4294901760
    %2226 = vmatprep.subr.mxu0 %v2225
    %v2227 = vand.u32 %v57, 4294901760
    %v2228 = vsub.f32 %v57, %v2227
    %v2229 = vand.u32 %v2228, 4294901760
    %v2230 = vsub.f32 %v2228, %v2229
    %v2231 = vand.u32 %v2230, 4294901760
    %2232 = vmatpush1.msra.mxu0 %v2231
    %2233 = vmatprep.subr.mxu0 0.0
    %2234 = vmatpush2.msra.mxu0 0.0
    %2235 = vmatprep.subr.mxu0 0.0
    %2236 = vmatpush2.msra.mxu0 0.0
    %2237 = vmatprep.subr.mxu0 0.0
    %2238 = vmatpush2.msra.mxu0 0.0
    %2239 = vmatprep.subr.mxu0 0.0
    %2240 = vmatpush2.msra.mxu0 0.0
    %2241 = vmatprep.subr.mxu0 0.0
    %2242 = vmatpush2.msra.mxu0 0.0
    %2243 = vmatprep.subr.mxu0 0.0
    %2244 = vmatpush2.msra.mxu0 0.0
    %2245 = vmatprep.subr.mxu0 0.0
    %2246 = vmatpush2.msra.mxu0 0.0
    %2247 = vmatprep.subr.mxu0 0.0
    %2248 = vmatpush2.msra.mxu0 0.0
    %2249 = vmatprep.subr.mxu0 0.0
    %2250 = vmatpush2.msra.mxu0 0.0
    %2251 = vmatprep.subr.mxu0 0.0
    %2252 = vmatpush2.msra.mxu0 0.0
    %2253 = vmatprep.subr.mxu0 0.0
    %2254 = vmatpush2.msra.mxu0 0.0
    %2255 = vmatprep.subr.mxu0 0.0
    %2256 = vmatpush2.msra.mxu0 0.0
    %2257 = vmatprep.subr.mxu0 0.0
    %2258 = vmatpush2.msra.mxu0 0.0
    %2259 = vmatprep.subr.mxu0 0.0
    %2260 = vmatpush2.msra.mxu0 0.0
    %2261 = vmatprep.subr.mxu0 0.0
    %2262 = vmatpush2.msra.mxu0 0.0
    %2263 = vmatprep.subr.mxu0 0.0
    %2264 = vmatpush2.msra.mxu0 0.0
    %2265 = vmatprep.mubr.f32.mxu0 0.0
    %v2266 = vand.u32 %v52, 4294901760
    %2267 = vmatmul.mubr.f32.gmra.mxu0 %v2266
    %v2268 = vpop.f32.mrf.mxu0
    %v2269 = vadd.f32 %v2037, %v2268
    %v2270 = vpop.f32.mrf.mxu0
    %v2271 = vadd.f32 %v2039, %v2270
    %2272 = vdwg.mxu0
    %v2273 = vand.u32 %v178, 4294901760
    %v2274 = vsub.f32 %v178, %v2273
    %2275 = vmatprep.subr.mxu0 %v2274
    %v2276 = vand.u32 %v177, 4294901760
    %v2277 = vsub.f32 %v177, %v2276
    %2278 = vmatpush1.msra.mxu0 %v2277
    %v2279 = vand.u32 %v170, 4294901760
    %v2280 = vsub.f32 %v170, %v2279
    %2281 = vmatprep.subr.mxu0 %v2280
    %v2282 = vand.u32 %v169, 4294901760
    %v2283 = vsub.f32 %v169, %v2282
    %2284 = vmatpush1.msra.mxu0 %v2283
    %v2285 = vand.u32 %v162, 4294901760
    %v2286 = vsub.f32 %v162, %v2285
    %2287 = vmatprep.subr.mxu0 %v2286
    %v2288 = vand.u32 %v161, 4294901760
    %v2289 = vsub.f32 %v161, %v2288
    %2290 = vmatpush1.msra.mxu0 %v2289
    %v2291 = vand.u32 %v154, 4294901760
    %v2292 = vsub.f32 %v154, %v2291
    %2293 = vmatprep.subr.mxu0 %v2292
    %v2294 = vand.u32 %v153, 4294901760
    %v2295 = vsub.f32 %v153, %v2294
    %2296 = vmatpush1.msra.mxu0 %v2295
    %v2297 = vand.u32 %v146, 4294901760
    %v2298 = vsub.f32 %v146, %v2297
    %2299 = vmatprep.subr.mxu0 %v2298
    %v2300 = vand.u32 %v145, 4294901760
    %v2301 = vsub.f32 %v145, %v2300
    %2302 = vmatpush1.msra.mxu0 %v2301
    %v2303 = vand.u32 %v138, 4294901760
    %v2304 = vsub.f32 %v138, %v2303
    %2305 = vmatprep.subr.mxu0 %v2304
    %v2306 = vand.u32 %v137, 4294901760
    %v2307 = vsub.f32 %v137, %v2306
    %2308 = vmatpush1.msra.mxu0 %v2307
    %v2309 = vand.u32 %v130, 4294901760
    %v2310 = vsub.f32 %v130, %v2309
    %2311 = vmatprep.subr.mxu0 %v2310
    %v2312 = vand.u32 %v129, 4294901760
    %v2313 = vsub.f32 %v129, %v2312
    %2314 = vmatpush1.msra.mxu0 %v2313
    %v2315 = vand.u32 %v122, 4294901760
    %v2316 = vsub.f32 %v122, %v2315
    %2317 = vmatprep.subr.mxu0 %v2316
    %v2318 = vand.u32 %v121, 4294901760
    %v2319 = vsub.f32 %v121, %v2318
    %2320 = vmatpush1.msra.mxu0 %v2319
    %v2321 = vand.u32 %v114, 4294901760
    %v2322 = vsub.f32 %v114, %v2321
    %2323 = vmatprep.subr.mxu0 %v2322
    %v2324 = vand.u32 %v113, 4294901760
    %v2325 = vsub.f32 %v113, %v2324
    %2326 = vmatpush1.msra.mxu0 %v2325
    %v2327 = vand.u32 %v106, 4294901760
    %v2328 = vsub.f32 %v106, %v2327
    %2329 = vmatprep.subr.mxu0 %v2328
    %v2330 = vand.u32 %v105, 4294901760
    %v2331 = vsub.f32 %v105, %v2330
    %2332 = vmatpush1.msra.mxu0 %v2331
    %v2333 = vand.u32 %v98, 4294901760
    %v2334 = vsub.f32 %v98, %v2333
    %2335 = vmatprep.subr.mxu0 %v2334
    %v2336 = vand.u32 %v97, 4294901760
    %v2337 = vsub.f32 %v97, %v2336
    %2338 = vmatpush1.msra.mxu0 %v2337
    %v2339 = vand.u32 %v90, 4294901760
    %v2340 = vsub.f32 %v90, %v2339
    %2341 = vmatprep.subr.mxu0 %v2340
    %v2342 = vand.u32 %v89, 4294901760
    %v2343 = vsub.f32 %v89, %v2342
    %2344 = vmatpush1.msra.mxu0 %v2343
    %v2345 = vand.u32 %v82, 4294901760
    %v2346 = vsub.f32 %v82, %v2345
    %2347 = vmatprep.subr.mxu0 %v2346
    %v2348 = vand.u32 %v81, 4294901760
    %v2349 = vsub.f32 %v81, %v2348
    %2350 = vmatpush1.msra.mxu0 %v2349
    %v2351 = vand.u32 %v74, 4294901760
    %v2352 = vsub.f32 %v74, %v2351
    %2353 = vmatprep.subr.mxu0 %v2352
    %v2354 = vand.u32 %v73, 4294901760
    %v2355 = vsub.f32 %v73, %v2354
    %2356 = vmatpush1.msra.mxu0 %v2355
    %v2357 = vand.u32 %v66, 4294901760
    %v2358 = vsub.f32 %v66, %v2357
    %2359 = vmatprep.subr.mxu0 %v2358
    %v2360 = vand.u32 %v65, 4294901760
    %v2361 = vsub.f32 %v65, %v2360
    %2362 = vmatpush1.msra.mxu0 %v2361
    %v2363 = vand.u32 %v58, 4294901760
    %v2364 = vsub.f32 %v58, %v2363
    %2365 = vmatprep.subr.mxu0 %v2364
    %v2366 = vand.u32 %v57, 4294901760
    %v2367 = vsub.f32 %v57, %v2366
    %2368 = vmatpush1.msra.mxu0 %v2367
    %2369 = vmatprep.subr.mxu0 0.0
    %2370 = vmatpush2.msra.mxu0 0.0
    %2371 = vmatprep.subr.mxu0 0.0
    %2372 = vmatpush2.msra.mxu0 0.0
    %2373 = vmatprep.subr.mxu0 0.0
    %2374 = vmatpush2.msra.mxu0 0.0
    %2375 = vmatprep.subr.mxu0 0.0
    %2376 = vmatpush2.msra.mxu0 0.0
    %2377 = vmatprep.subr.mxu0 0.0
    %2378 = vmatpush2.msra.mxu0 0.0
    %2379 = vmatprep.subr.mxu0 0.0
    %2380 = vmatpush2.msra.mxu0 0.0
    %2381 = vmatprep.subr.mxu0 0.0
    %2382 = vmatpush2.msra.mxu0 0.0
    %2383 = vmatprep.subr.mxu0 0.0
    %2384 = vmatpush2.msra.mxu0 0.0
    %2385 = vmatprep.subr.mxu0 0.0
    %2386 = vmatpush2.msra.mxu0 0.0
    %2387 = vmatprep.subr.mxu0 0.0
    %2388 = vmatpush2.msra.mxu0 0.0
    %2389 = vmatprep.subr.mxu0 0.0
    %2390 = vmatpush2.msra.mxu0 0.0
    %2391 = vmatprep.subr.mxu0 0.0
    %2392 = vmatpush2.msra.mxu0 0.0
    %2393 = vmatprep.subr.mxu0 0.0
    %2394 = vmatpush2.msra.mxu0 0.0
    %2395 = vmatprep.subr.mxu0 0.0
    %2396 = vmatpush2.msra.mxu0 0.0
    %2397 = vmatprep.subr.mxu0 0.0
    %2398 = vmatpush2.msra.mxu0 0.0
    %2399 = vmatprep.subr.mxu0 0.0
    %2400 = vmatpush2.msra.mxu0 0.0
    %2401 = vmatprep.mubr.f32.mxu0 0.0
    %v2402 = vand.u32 %v52, 4294901760
    %v2403 = vsub.f32 %v52, %v2402
    %2404 = vmatmul.mubr.f32.gmra.mxu0 %v2403
    %v2405 = vpop.f32.mrf.mxu0
    %v2406 = vadd.f32 %v2269, %v2405
    %v2407 = vpop.f32.mrf.mxu0
    %v2408 = vadd.f32 %v2271, %v2407
    %2409 = vdwg.mxu0
    %v2410 = vand.u32 %v178, 4294901760
    %2411 = vmatprep.subr.mxu0 %v2410
    %v2412 = vand.u32 %v177, 4294901760
    %2413 = vmatpush1.msra.mxu0 %v2412
    %v2414 = vand.u32 %v170, 4294901760
    %2415 = vmatprep.subr.mxu0 %v2414
    %v2416 = vand.u32 %v169, 4294901760
    %2417 = vmatpush1.msra.mxu0 %v2416
    %v2418 = vand.u32 %v162, 4294901760
    %2419 = vmatprep.subr.mxu0 %v2418
    %v2420 = vand.u32 %v161, 4294901760
    %2421 = vmatpush1.msra.mxu0 %v2420
    %v2422 = vand.u32 %v154, 4294901760
    %2423 = vmatprep.subr.mxu0 %v2422
    %v2424 = vand.u32 %v153, 4294901760
    %2425 = vmatpush1.msra.mxu0 %v2424
    %v2426 = vand.u32 %v146, 4294901760
    %2427 = vmatprep.subr.mxu0 %v2426
    %v2428 = vand.u32 %v145, 4294901760
    %2429 = vmatpush1.msra.mxu0 %v2428
    %v2430 = vand.u32 %v138, 4294901760
    %2431 = vmatprep.subr.mxu0 %v2430
    %v2432 = vand.u32 %v137, 4294901760
    %2433 = vmatpush1.msra.mxu0 %v2432
    %v2434 = vand.u32 %v130, 4294901760
    %2435 = vmatprep.subr.mxu0 %v2434
    %v2436 = vand.u32 %v129, 4294901760
    %2437 = vmatpush1.msra.mxu0 %v2436
    %v2438 = vand.u32 %v122, 4294901760
    %2439 = vmatprep.subr.mxu0 %v2438
    %v2440 = vand.u32 %v121, 4294901760
    %2441 = vmatpush1.msra.mxu0 %v2440
    %v2442 = vand.u32 %v114, 4294901760
    %2443 = vmatprep.subr.mxu0 %v2442
    %v2444 = vand.u32 %v113, 4294901760
    %2445 = vmatpush1.msra.mxu0 %v2444
    %v2446 = vand.u32 %v106, 4294901760
    %2447 = vmatprep.subr.mxu0 %v2446
    %v2448 = vand.u32 %v105, 4294901760
    %2449 = vmatpush1.msra.mxu0 %v2448
    %v2450 = vand.u32 %v98, 4294901760
    %2451 = vmatprep.subr.mxu0 %v2450
    %v2452 = vand.u32 %v97, 4294901760
    %2453 = vmatpush1.msra.mxu0 %v2452
    %v2454 = vand.u32 %v90, 4294901760
    %2455 = vmatprep.subr.mxu0 %v2454
    %v2456 = vand.u32 %v89, 4294901760
    %2457 = vmatpush1.msra.mxu0 %v2456
    %v2458 = vand.u32 %v82, 4294901760
    %2459 = vmatprep.subr.mxu0 %v2458
    %v2460 = vand.u32 %v81, 4294901760
    %2461 = vmatpush1.msra.mxu0 %v2460
    %v2462 = vand.u32 %v74, 4294901760
    %2463 = vmatprep.subr.mxu0 %v2462
    %v2464 = vand.u32 %v73, 4294901760
    %2465 = vmatpush1.msra.mxu0 %v2464
    %v2466 = vand.u32 %v66, 4294901760
    %2467 = vmatprep.subr.mxu0 %v2466
    %v2468 = vand.u32 %v65, 4294901760
    %2469 = vmatpush1.msra.mxu0 %v2468
    %v2470 = vand.u32 %v58, 4294901760
    %2471 = vmatprep.subr.mxu0 %v2470
    %v2472 = vand.u32 %v57, 4294901760
    %2473 = vmatpush1.msra.mxu0 %v2472
    %2474 = vmatprep.subr.mxu0 0.0
    %2475 = vmatpush2.msra.mxu0 0.0
    %2476 = vmatprep.subr.mxu0 0.0
    %2477 = vmatpush2.msra.mxu0 0.0
    %2478 = vmatprep.subr.mxu0 0.0
    %2479 = vmatpush2.msra.mxu0 0.0
    %2480 = vmatprep.subr.mxu0 0.0
    %2481 = vmatpush2.msra.mxu0 0.0
    %2482 = vmatprep.subr.mxu0 0.0
    %2483 = vmatpush2.msra.mxu0 0.0
    %2484 = vmatprep.subr.mxu0 0.0
    %2485 = vmatpush2.msra.mxu0 0.0
    %2486 = vmatprep.subr.mxu0 0.0
    %2487 = vmatpush2.msra.mxu0 0.0
    %2488 = vmatprep.subr.mxu0 0.0
    %2489 = vmatpush2.msra.mxu0 0.0
    %2490 = vmatprep.subr.mxu0 0.0
    %2491 = vmatpush2.msra.mxu0 0.0
    %2492 = vmatprep.subr.mxu0 0.0
    %2493 = vmatpush2.msra.mxu0 0.0
    %2494 = vmatprep.subr.mxu0 0.0
    %2495 = vmatpush2.msra.mxu0 0.0
    %2496 = vmatprep.subr.mxu0 0.0
    %2497 = vmatpush2.msra.mxu0 0.0
    %2498 = vmatprep.subr.mxu0 0.0
    %2499 = vmatpush2.msra.mxu0 0.0
    %2500 = vmatprep.subr.mxu0 0.0
    %2501 = vmatpush2.msra.mxu0 0.0
    %2502 = vmatprep.subr.mxu0 0.0
    %2503 = vmatpush2.msra.mxu0 0.0
    %2504 = vmatprep.subr.mxu0 0.0
    %2505 = vmatpush2.msra.mxu0 0.0
    %2506 = vmatprep.mubr.f32.mxu0 0.0
    %v2507 = vand.u32 %v52, 4294901760
    %v2508 = vsub.f32 %v52, %v2507
    %v2509 = vand.u32 %v2508, 4294901760
    %2510 = vmatmul.mubr.f32.gmra.mxu0 %v2509
    %v2511 = vpop.f32.mrf.mxu0
    %v2512 = vadd.f32 %v2406, %v2511
    %v2513 = vpop.f32.mrf.mxu0
    %v2514 = vadd.f32 %v2408, %v2513
    %2515 = vdwg.mxu0
    %v2516 = vand.u32 %v178, 4294901760
    %v2517 = vsub.f32 %v178, %v2516
    %v2518 = vand.u32 %v2517, 4294901760
    %2519 = vmatprep.subr.mxu0 %v2518
    %v2520 = vand.u32 %v177, 4294901760
    %v2521 = vsub.f32 %v177, %v2520
    %v2522 = vand.u32 %v2521, 4294901760
    %2523 = vmatpush1.msra.mxu0 %v2522
    %v2524 = vand.u32 %v170, 4294901760
    %v2525 = vsub.f32 %v170, %v2524
    %v2526 = vand.u32 %v2525, 4294901760
    %2527 = vmatprep.subr.mxu0 %v2526
    %v2528 = vand.u32 %v169, 4294901760
    %v2529 = vsub.f32 %v169, %v2528
    %v2530 = vand.u32 %v2529, 4294901760
    %2531 = vmatpush1.msra.mxu0 %v2530
    %v2532 = vand.u32 %v162, 4294901760
    %v2533 = vsub.f32 %v162, %v2532
    %v2534 = vand.u32 %v2533, 4294901760
    %2535 = vmatprep.subr.mxu0 %v2534
    %v2536 = vand.u32 %v161, 4294901760
    %v2537 = vsub.f32 %v161, %v2536
    %v2538 = vand.u32 %v2537, 4294901760
    %2539 = vmatpush1.msra.mxu0 %v2538
    %v2540 = vand.u32 %v154, 4294901760
    %v2541 = vsub.f32 %v154, %v2540
    %v2542 = vand.u32 %v2541, 4294901760
    %2543 = vmatprep.subr.mxu0 %v2542
    %v2544 = vand.u32 %v153, 4294901760
    %v2545 = vsub.f32 %v153, %v2544
    %v2546 = vand.u32 %v2545, 4294901760
    %2547 = vmatpush1.msra.mxu0 %v2546
    %v2548 = vand.u32 %v146, 4294901760
    %v2549 = vsub.f32 %v146, %v2548
    %v2550 = vand.u32 %v2549, 4294901760
    %2551 = vmatprep.subr.mxu0 %v2550
    %v2552 = vand.u32 %v145, 4294901760
    %v2553 = vsub.f32 %v145, %v2552
    %v2554 = vand.u32 %v2553, 4294901760
    %2555 = vmatpush1.msra.mxu0 %v2554
    %v2556 = vand.u32 %v138, 4294901760
    %v2557 = vsub.f32 %v138, %v2556
    %v2558 = vand.u32 %v2557, 4294901760
    %2559 = vmatprep.subr.mxu0 %v2558
    %v2560 = vand.u32 %v137, 4294901760
    %v2561 = vsub.f32 %v137, %v2560
    %v2562 = vand.u32 %v2561, 4294901760
    %2563 = vmatpush1.msra.mxu0 %v2562
    %v2564 = vand.u32 %v130, 4294901760
    %v2565 = vsub.f32 %v130, %v2564
    %v2566 = vand.u32 %v2565, 4294901760
    %2567 = vmatprep.subr.mxu0 %v2566
    %v2568 = vand.u32 %v129, 4294901760
    %v2569 = vsub.f32 %v129, %v2568
    %v2570 = vand.u32 %v2569, 4294901760
    %2571 = vmatpush1.msra.mxu0 %v2570
    %v2572 = vand.u32 %v122, 4294901760
    %v2573 = vsub.f32 %v122, %v2572
    %v2574 = vand.u32 %v2573, 4294901760
    %2575 = vmatprep.subr.mxu0 %v2574
    %v2576 = vand.u32 %v121, 4294901760
    %v2577 = vsub.f32 %v121, %v2576
    %v2578 = vand.u32 %v2577, 4294901760
    %2579 = vmatpush1.msra.mxu0 %v2578
    %v2580 = vand.u32 %v114, 4294901760
    %v2581 = vsub.f32 %v114, %v2580
    %v2582 = vand.u32 %v2581, 4294901760
    %2583 = vmatprep.subr.mxu0 %v2582
    %v2584 = vand.u32 %v113, 4294901760
    %v2585 = vsub.f32 %v113, %v2584
    %v2586 = vand.u32 %v2585, 4294901760
    %2587 = vmatpush1.msra.mxu0 %v2586
    %v2588 = vand.u32 %v106, 4294901760
    %v2589 = vsub.f32 %v106, %v2588
    %v2590 = vand.u32 %v2589, 4294901760
    %2591 = vmatprep.subr.mxu0 %v2590
    %v2592 = vand.u32 %v105, 4294901760
    %v2593 = vsub.f32 %v105, %v2592
    %v2594 = vand.u32 %v2593, 4294901760
    %2595 = vmatpush1.msra.mxu0 %v2594
    %v2596 = vand.u32 %v98, 4294901760
    %v2597 = vsub.f32 %v98, %v2596
    %v2598 = vand.u32 %v2597, 4294901760
    %2599 = vmatprep.subr.mxu0 %v2598
    %v2600 = vand.u32 %v97, 4294901760
    %v2601 = vsub.f32 %v97, %v2600
    %v2602 = vand.u32 %v2601, 4294901760
    %2603 = vmatpush1.msra.mxu0 %v2602
    %v2604 = vand.u32 %v90, 4294901760
    %v2605 = vsub.f32 %v90, %v2604
    %v2606 = vand.u32 %v2605, 4294901760
    %2607 = vmatprep.subr.mxu0 %v2606
    %v2608 = vand.u32 %v89, 4294901760
    %v2609 = vsub.f32 %v89, %v2608
    %v2610 = vand.u32 %v2609, 4294901760
    %2611 = vmatpush1.msra.mxu0 %v2610
    %v2612 = vand.u32 %v82, 4294901760
    %v2613 = vsub.f32 %v82, %v2612
    %v2614 = vand.u32 %v2613, 4294901760
    %2615 = vmatprep.subr.mxu0 %v2614
    %v2616 = vand.u32 %v81, 4294901760
    %v2617 = vsub.f32 %v81, %v2616
    %v2618 = vand.u32 %v2617, 4294901760
    %2619 = vmatpush1.msra.mxu0 %v2618
    %v2620 = vand.u32 %v74, 4294901760
    %v2621 = vsub.f32 %v74, %v2620
    %v2622 = vand.u32 %v2621, 4294901760
    %2623 = vmatprep.subr.mxu0 %v2622
    %v2624 = vand.u32 %v73, 4294901760
    %v2625 = vsub.f32 %v73, %v2624
    %v2626 = vand.u32 %v2625, 4294901760
    %2627 = vmatpush1.msra.mxu0 %v2626
    %v2628 = vand.u32 %v66, 4294901760
    %v2629 = vsub.f32 %v66, %v2628
    %v2630 = vand.u32 %v2629, 4294901760
    %2631 = vmatprep.subr.mxu0 %v2630
    %v2632 = vand.u32 %v65, 4294901760
    %v2633 = vsub.f32 %v65, %v2632
    %v2634 = vand.u32 %v2633, 4294901760
    %2635 = vmatpush1.msra.mxu0 %v2634
    %v2636 = vand.u32 %v58, 4294901760
    %v2637 = vsub.f32 %v58, %v2636
    %v2638 = vand.u32 %v2637, 4294901760
    %2639 = vmatprep.subr.mxu0 %v2638
    %v2640 = vand.u32 %v57, 4294901760
    %v2641 = vsub.f32 %v57, %v2640
    %v2642 = vand.u32 %v2641, 4294901760
    %2643 = vmatpush1.msra.mxu0 %v2642
    %2644 = vmatprep.subr.mxu0 0.0
    %2645 = vmatpush2.msra.mxu0 0.0
    %2646 = vmatprep.subr.mxu0 0.0
    %2647 = vmatpush2.msra.mxu0 0.0
    %2648 = vmatprep.subr.mxu0 0.0
    %2649 = vmatpush2.msra.mxu0 0.0
    %2650 = vmatprep.subr.mxu0 0.0
    %2651 = vmatpush2.msra.mxu0 0.0
    %2652 = vmatprep.subr.mxu0 0.0
    %2653 = vmatpush2.msra.mxu0 0.0
    %2654 = vmatprep.subr.mxu0 0.0
    %2655 = vmatpush2.msra.mxu0 0.0
    %2656 = vmatprep.subr.mxu0 0.0
    %2657 = vmatpush2.msra.mxu0 0.0
    %2658 = vmatprep.subr.mxu0 0.0
    %2659 = vmatpush2.msra.mxu0 0.0
    %2660 = vmatprep.subr.mxu0 0.0
    %2661 = vmatpush2.msra.mxu0 0.0
    %2662 = vmatprep.subr.mxu0 0.0
    %2663 = vmatpush2.msra.mxu0 0.0
    %2664 = vmatprep.subr.mxu0 0.0
    %2665 = vmatpush2.msra.mxu0 0.0
    %2666 = vmatprep.subr.mxu0 0.0
    %2667 = vmatpush2.msra.mxu0 0.0
    %2668 = vmatprep.subr.mxu0 0.0
    %2669 = vmatpush2.msra.mxu0 0.0
    %2670 = vmatprep.subr.mxu0 0.0
    %2671 = vmatpush2.msra.mxu0 0.0
    %2672 = vmatprep.subr.mxu0 0.0
    %2673 = vmatpush2.msra.mxu0 0.0
    %2674 = vmatprep.subr.mxu0 0.0
    %2675 = vmatpush2.msra.mxu0 0.0
    %2676 = vmatprep.mubr.f32.mxu0 0.0
    %v2677 = vand.u32 %v52, 4294901760
    %2678 = vmatmul.mubr.f32.gmra.mxu0 %v2677
    %v2679 = vpop.f32.mrf.mxu0
    %v2680 = vadd.f32 %v2512, %v2679
    %v2681 = vpop.f32.mrf.mxu0
    %v2682 = vadd.f32 %v2514, %v2681
    %2683 = vdwg.mxu0
    %v2684 = vand.u32 %v178, 4294901760
    %2685 = vmatprep.subr.mxu0 %v2684
    %v2686 = vand.u32 %v177, 4294901760
    %2687 = vmatpush1.msra.mxu0 %v2686
    %v2688 = vand.u32 %v170, 4294901760
    %2689 = vmatprep.subr.mxu0 %v2688
    %v2690 = vand.u32 %v169, 4294901760
    %2691 = vmatpush1.msra.mxu0 %v2690
    %v2692 = vand.u32 %v162, 4294901760
    %2693 = vmatprep.subr.mxu0 %v2692
    %v2694 = vand.u32 %v161, 4294901760
    %2695 = vmatpush1.msra.mxu0 %v2694
    %v2696 = vand.u32 %v154, 4294901760
    %2697 = vmatprep.subr.mxu0 %v2696
    %v2698 = vand.u32 %v153, 4294901760
    %2699 = vmatpush1.msra.mxu0 %v2698
    %v2700 = vand.u32 %v146, 4294901760
    %2701 = vmatprep.subr.mxu0 %v2700
    %v2702 = vand.u32 %v145, 4294901760
    %2703 = vmatpush1.msra.mxu0 %v2702
    %v2704 = vand.u32 %v138, 4294901760
    %2705 = vmatprep.subr.mxu0 %v2704
    %v2706 = vand.u32 %v137, 4294901760
    %2707 = vmatpush1.msra.mxu0 %v2706
    %v2708 = vand.u32 %v130, 4294901760
    %2709 = vmatprep.subr.mxu0 %v2708
    %v2710 = vand.u32 %v129, 4294901760
    %2711 = vmatpush1.msra.mxu0 %v2710
    %v2712 = vand.u32 %v122, 4294901760
    %2713 = vmatprep.subr.mxu0 %v2712
    %v2714 = vand.u32 %v121, 4294901760
    %2715 = vmatpush1.msra.mxu0 %v2714
    %v2716 = vand.u32 %v114, 4294901760
    %2717 = vmatprep.subr.mxu0 %v2716
    %v2718 = vand.u32 %v113, 4294901760
    %2719 = vmatpush1.msra.mxu0 %v2718
    %v2720 = vand.u32 %v106, 4294901760
    %2721 = vmatprep.subr.mxu0 %v2720
    %v2722 = vand.u32 %v105, 4294901760
    %2723 = vmatpush1.msra.mxu0 %v2722
    %v2724 = vand.u32 %v98, 4294901760
    %2725 = vmatprep.subr.mxu0 %v2724
    %v2726 = vand.u32 %v97, 4294901760
    %2727 = vmatpush1.msra.mxu0 %v2726
    %v2728 = vand.u32 %v90, 4294901760
    %2729 = vmatprep.subr.mxu0 %v2728
    %v2730 = vand.u32 %v89, 4294901760
    %2731 = vmatpush1.msra.mxu0 %v2730
    %v2732 = vand.u32 %v82, 4294901760
    %2733 = vmatprep.subr.mxu0 %v2732
    %v2734 = vand.u32 %v81, 4294901760
    %2735 = vmatpush1.msra.mxu0 %v2734
    %v2736 = vand.u32 %v74, 4294901760
    %2737 = vmatprep.subr.mxu0 %v2736
    %v2738 = vand.u32 %v73, 4294901760
    %2739 = vmatpush1.msra.mxu0 %v2738
    %v2740 = vand.u32 %v66, 4294901760
    %2741 = vmatprep.subr.mxu0 %v2740
    %v2742 = vand.u32 %v65, 4294901760
    %2743 = vmatpush1.msra.mxu0 %v2742
    %v2744 = vand.u32 %v58, 4294901760
    %2745 = vmatprep.subr.mxu0 %v2744
    %v2746 = vand.u32 %v57, 4294901760
    %2747 = vmatpush1.msra.mxu0 %v2746
    %2748 = vmatprep.subr.mxu0 0.0
    %2749 = vmatpush2.msra.mxu0 0.0
    %2750 = vmatprep.subr.mxu0 0.0
    %2751 = vmatpush2.msra.mxu0 0.0
    %2752 = vmatprep.subr.mxu0 0.0
    %2753 = vmatpush2.msra.mxu0 0.0
    %2754 = vmatprep.subr.mxu0 0.0
    %2755 = vmatpush2.msra.mxu0 0.0
    %2756 = vmatprep.subr.mxu0 0.0
    %2757 = vmatpush2.msra.mxu0 0.0
    %2758 = vmatprep.subr.mxu0 0.0
    %2759 = vmatpush2.msra.mxu0 0.0
    %2760 = vmatprep.subr.mxu0 0.0
    %2761 = vmatpush2.msra.mxu0 0.0
    %2762 = vmatprep.subr.mxu0 0.0
    %2763 = vmatpush2.msra.mxu0 0.0
    %2764 = vmatprep.subr.mxu0 0.0
    %2765 = vmatpush2.msra.mxu0 0.0
    %2766 = vmatprep.subr.mxu0 0.0
    %2767 = vmatpush2.msra.mxu0 0.0
    %2768 = vmatprep.subr.mxu0 0.0
    %2769 = vmatpush2.msra.mxu0 0.0
    %2770 = vmatprep.subr.mxu0 0.0
    %2771 = vmatpush2.msra.mxu0 0.0
    %2772 = vmatprep.subr.mxu0 0.0
    %2773 = vmatpush2.msra.mxu0 0.0
    %2774 = vmatprep.subr.mxu0 0.0
    %2775 = vmatpush2.msra.mxu0 0.0
    %2776 = vmatprep.subr.mxu0 0.0
    %2777 = vmatpush2.msra.mxu0 0.0
    %2778 = vmatprep.subr.mxu0 0.0
    %2779 = vmatpush2.msra.mxu0 0.0
    %2780 = vmatprep.mubr.f32.mxu0 0.0
    %v2781 = vand.u32 %v52, 4294901760
    %2782 = vmatmul.mubr.f32.gmra.mxu0 %v2781
    %v2783 = vpop.f32.mrf.mxu0
    %v2784 = vadd.f32 %v2680, %v2783
    %v2785 = vpop.f32.mrf.mxu0
    %v2786 = vadd.f32 %v2682, %v2785
    %2787 = vdwg.mxu0
    %v2788 = vand.u32 %v180, 4294901760
    %2789 = vmatprep.subr.mxu0 %v2788
    %v2790 = vand.u32 %v179, 4294901760
    %2791 = vmatpush1.msra.mxu0 %v2790
    %v2792 = vand.u32 %v172, 4294901760
    %2793 = vmatprep.subr.mxu0 %v2792
    %v2794 = vand.u32 %v171, 4294901760
    %2795 = vmatpush1.msra.mxu0 %v2794
    %v2796 = vand.u32 %v164, 4294901760
    %2797 = vmatprep.subr.mxu0 %v2796
    %v2798 = vand.u32 %v163, 4294901760
    %2799 = vmatpush1.msra.mxu0 %v2798
    %v2800 = vand.u32 %v156, 4294901760
    %2801 = vmatprep.subr.mxu0 %v2800
    %v2802 = vand.u32 %v155, 4294901760
    %2803 = vmatpush1.msra.mxu0 %v2802
    %v2804 = vand.u32 %v148, 4294901760
    %2805 = vmatprep.subr.mxu0 %v2804
    %v2806 = vand.u32 %v147, 4294901760
    %2807 = vmatpush1.msra.mxu0 %v2806
    %v2808 = vand.u32 %v140, 4294901760
    %2809 = vmatprep.subr.mxu0 %v2808
    %v2810 = vand.u32 %v139, 4294901760
    %2811 = vmatpush1.msra.mxu0 %v2810
    %v2812 = vand.u32 %v132, 4294901760
    %2813 = vmatprep.subr.mxu0 %v2812
    %v2814 = vand.u32 %v131, 4294901760
    %2815 = vmatpush1.msra.mxu0 %v2814
    %v2816 = vand.u32 %v124, 4294901760
    %2817 = vmatprep.subr.mxu0 %v2816
    %v2818 = vand.u32 %v123, 4294901760
    %2819 = vmatpush1.msra.mxu0 %v2818
    %v2820 = vand.u32 %v116, 4294901760
    %2821 = vmatprep.subr.mxu0 %v2820
    %v2822 = vand.u32 %v115, 4294901760
    %2823 = vmatpush1.msra.mxu0 %v2822
    %v2824 = vand.u32 %v108, 4294901760
    %2825 = vmatprep.subr.mxu0 %v2824
    %v2826 = vand.u32 %v107, 4294901760
    %2827 = vmatpush1.msra.mxu0 %v2826
    %v2828 = vand.u32 %v100, 4294901760
    %2829 = vmatprep.subr.mxu0 %v2828
    %v2830 = vand.u32 %v99, 4294901760
    %2831 = vmatpush1.msra.mxu0 %v2830
    %v2832 = vand.u32 %v92, 4294901760
    %2833 = vmatprep.subr.mxu0 %v2832
    %v2834 = vand.u32 %v91, 4294901760
    %2835 = vmatpush1.msra.mxu0 %v2834
    %v2836 = vand.u32 %v84, 4294901760
    %2837 = vmatprep.subr.mxu0 %v2836
    %v2838 = vand.u32 %v83, 4294901760
    %2839 = vmatpush1.msra.mxu0 %v2838
    %v2840 = vand.u32 %v76, 4294901760
    %2841 = vmatprep.subr.mxu0 %v2840
    %v2842 = vand.u32 %v75, 4294901760
    %2843 = vmatpush1.msra.mxu0 %v2842
    %v2844 = vand.u32 %v68, 4294901760
    %2845 = vmatprep.subr.mxu0 %v2844
    %v2846 = vand.u32 %v67, 4294901760
    %2847 = vmatpush1.msra.mxu0 %v2846
    %v2848 = vand.u32 %v60, 4294901760
    %2849 = vmatprep.subr.mxu0 %v2848
    %v2850 = vand.u32 %v59, 4294901760
    %2851 = vmatpush1.msra.mxu0 %v2850
    %2852 = vmatprep.subr.mxu0 0.0
    %2853 = vmatpush2.msra.mxu0 0.0
    %2854 = vmatprep.subr.mxu0 0.0
    %2855 = vmatpush2.msra.mxu0 0.0
    %2856 = vmatprep.subr.mxu0 0.0
    %2857 = vmatpush2.msra.mxu0 0.0
    %2858 = vmatprep.subr.mxu0 0.0
    %2859 = vmatpush2.msra.mxu0 0.0
    %2860 = vmatprep.subr.mxu0 0.0
    %2861 = vmatpush2.msra.mxu0 0.0
    %2862 = vmatprep.subr.mxu0 0.0
    %2863 = vmatpush2.msra.mxu0 0.0
    %2864 = vmatprep.subr.mxu0 0.0
    %2865 = vmatpush2.msra.mxu0 0.0
    %2866 = vmatprep.subr.mxu0 0.0
    %2867 = vmatpush2.msra.mxu0 0.0
    %2868 = vmatprep.subr.mxu0 0.0
    %2869 = vmatpush2.msra.mxu0 0.0
    %2870 = vmatprep.subr.mxu0 0.0
    %2871 = vmatpush2.msra.mxu0 0.0
    %2872 = vmatprep.subr.mxu0 0.0
    %2873 = vmatpush2.msra.mxu0 0.0
    %2874 = vmatprep.subr.mxu0 0.0
    %2875 = vmatpush2.msra.mxu0 0.0
    %2876 = vmatprep.subr.mxu0 0.0
    %2877 = vmatpush2.msra.mxu0 0.0
    %2878 = vmatprep.subr.mxu0 0.0
    %2879 = vmatpush2.msra.mxu0 0.0
    %2880 = vmatprep.subr.mxu0 0.0
    %2881 = vmatpush2.msra.mxu0 0.0
    %2882 = vmatprep.subr.mxu0 0.0
    %2883 = vmatpush2.msra.mxu0 0.0
    %2884 = vmatprep.mubr.f32.mxu0 0.0
    %v2885 = vand.u32 %v52, 4294901760
    %v2886 = vsub.f32 %v52, %v2885
    %v2887 = vand.u32 %v2886, 4294901760
    %v2888 = vsub.f32 %v2886, %v2887
    %v2889 = vand.u32 %v2888, 4294901760
    %2890 = vmatmul.mubr.f32.gmra.mxu0 %v2889
    %v2891 = vpop.f32.mrf.mxu0
    %v2892 = vadd.f32 %v210, %v2891
    %v2893 = vpop.f32.mrf.mxu0
    %v2894 = vadd.f32 %v214, %v2893
    %2895 = vdwg.mxu0
    %v2896 = vand.u32 %v180, 4294901760
    %v2897 = vsub.f32 %v180, %v2896
    %v2898 = vand.u32 %v2897, 4294901760
    %v2899 = vsub.f32 %v2897, %v2898
    %v2900 = vand.u32 %v2899, 4294901760
    %2901 = vmatprep.subr.mxu0 %v2900
    %v2902 = vand.u32 %v179, 4294901760
    %v2903 = vsub.f32 %v179, %v2902
    %v2904 = vand.u32 %v2903, 4294901760
    %v2905 = vsub.f32 %v2903, %v2904
    %v2906 = vand.u32 %v2905, 4294901760
    %2907 = vmatpush1.msra.mxu0 %v2906
    %v2908 = vand.u32 %v172, 4294901760
    %v2909 = vsub.f32 %v172, %v2908
    %v2910 = vand.u32 %v2909, 4294901760
    %v2911 = vsub.f32 %v2909, %v2910
    %v2912 = vand.u32 %v2911, 4294901760
    %2913 = vmatprep.subr.mxu0 %v2912
    %v2914 = vand.u32 %v171, 4294901760
    %v2915 = vsub.f32 %v171, %v2914
    %v2916 = vand.u32 %v2915, 4294901760
    %v2917 = vsub.f32 %v2915, %v2916
    %v2918 = vand.u32 %v2917, 4294901760
    %2919 = vmatpush1.msra.mxu0 %v2918
    %v2920 = vand.u32 %v164, 4294901760
    %v2921 = vsub.f32 %v164, %v2920
    %v2922 = vand.u32 %v2921, 4294901760
    %v2923 = vsub.f32 %v2921, %v2922
    %v2924 = vand.u32 %v2923, 4294901760
    %2925 = vmatprep.subr.mxu0 %v2924
    %v2926 = vand.u32 %v163, 4294901760
    %v2927 = vsub.f32 %v163, %v2926
    %v2928 = vand.u32 %v2927, 4294901760
    %v2929 = vsub.f32 %v2927, %v2928
    %v2930 = vand.u32 %v2929, 4294901760
    %2931 = vmatpush1.msra.mxu0 %v2930
    %v2932 = vand.u32 %v156, 4294901760
    %v2933 = vsub.f32 %v156, %v2932
    %v2934 = vand.u32 %v2933, 4294901760
    %v2935 = vsub.f32 %v2933, %v2934
    %v2936 = vand.u32 %v2935, 4294901760
    %2937 = vmatprep.subr.mxu0 %v2936
    %v2938 = vand.u32 %v155, 4294901760
    %v2939 = vsub.f32 %v155, %v2938
    %v2940 = vand.u32 %v2939, 4294901760
    %v2941 = vsub.f32 %v2939, %v2940
    %v2942 = vand.u32 %v2941, 4294901760
    %2943 = vmatpush1.msra.mxu0 %v2942
    %v2944 = vand.u32 %v148, 4294901760
    %v2945 = vsub.f32 %v148, %v2944
    %v2946 = vand.u32 %v2945, 4294901760
    %v2947 = vsub.f32 %v2945, %v2946
    %v2948 = vand.u32 %v2947, 4294901760
    %2949 = vmatprep.subr.mxu0 %v2948
    %v2950 = vand.u32 %v147, 4294901760
    %v2951 = vsub.f32 %v147, %v2950
    %v2952 = vand.u32 %v2951, 4294901760
    %v2953 = vsub.f32 %v2951, %v2952
    %v2954 = vand.u32 %v2953, 4294901760
    %2955 = vmatpush1.msra.mxu0 %v2954
    %v2956 = vand.u32 %v140, 4294901760
    %v2957 = vsub.f32 %v140, %v2956
    %v2958 = vand.u32 %v2957, 4294901760
    %v2959 = vsub.f32 %v2957, %v2958
    %v2960 = vand.u32 %v2959, 4294901760
    %2961 = vmatprep.subr.mxu0 %v2960
    %v2962 = vand.u32 %v139, 4294901760
    %v2963 = vsub.f32 %v139, %v2962
    %v2964 = vand.u32 %v2963, 4294901760
    %v2965 = vsub.f32 %v2963, %v2964
    %v2966 = vand.u32 %v2965, 4294901760
    %2967 = vmatpush1.msra.mxu0 %v2966
    %v2968 = vand.u32 %v132, 4294901760
    %v2969 = vsub.f32 %v132, %v2968
    %v2970 = vand.u32 %v2969, 4294901760
    %v2971 = vsub.f32 %v2969, %v2970
    %v2972 = vand.u32 %v2971, 4294901760
    %2973 = vmatprep.subr.mxu0 %v2972
    %v2974 = vand.u32 %v131, 4294901760
    %v2975 = vsub.f32 %v131, %v2974
    %v2976 = vand.u32 %v2975, 4294901760
    %v2977 = vsub.f32 %v2975, %v2976
    %v2978 = vand.u32 %v2977, 4294901760
    %2979 = vmatpush1.msra.mxu0 %v2978
    %v2980 = vand.u32 %v124, 4294901760
    %v2981 = vsub.f32 %v124, %v2980
    %v2982 = vand.u32 %v2981, 4294901760
    %v2983 = vsub.f32 %v2981, %v2982
    %v2984 = vand.u32 %v2983, 4294901760
    %2985 = vmatprep.subr.mxu0 %v2984
    %v2986 = vand.u32 %v123, 4294901760
    %v2987 = vsub.f32 %v123, %v2986
    %v2988 = vand.u32 %v2987, 4294901760
    %v2989 = vsub.f32 %v2987, %v2988
    %v2990 = vand.u32 %v2989, 4294901760
    %2991 = vmatpush1.msra.mxu0 %v2990
    %v2992 = vand.u32 %v116, 4294901760
    %v2993 = vsub.f32 %v116, %v2992
    %v2994 = vand.u32 %v2993, 4294901760
    %v2995 = vsub.f32 %v2993, %v2994
    %v2996 = vand.u32 %v2995, 4294901760
    %2997 = vmatprep.subr.mxu0 %v2996
    %v2998 = vand.u32 %v115, 4294901760
    %v2999 = vsub.f32 %v115, %v2998
    %v3000 = vand.u32 %v2999, 4294901760
    %v3001 = vsub.f32 %v2999, %v3000
    %v3002 = vand.u32 %v3001, 4294901760
    %3003 = vmatpush1.msra.mxu0 %v3002
    %v3004 = vand.u32 %v108, 4294901760
    %v3005 = vsub.f32 %v108, %v3004
    %v3006 = vand.u32 %v3005, 4294901760
    %v3007 = vsub.f32 %v3005, %v3006
    %v3008 = vand.u32 %v3007, 4294901760
    %3009 = vmatprep.subr.mxu0 %v3008
    %v3010 = vand.u32 %v107, 4294901760
    %v3011 = vsub.f32 %v107, %v3010
    %v3012 = vand.u32 %v3011, 4294901760
    %v3013 = vsub.f32 %v3011, %v3012
    %v3014 = vand.u32 %v3013, 4294901760
    %3015 = vmatpush1.msra.mxu0 %v3014
    %v3016 = vand.u32 %v100, 4294901760
    %v3017 = vsub.f32 %v100, %v3016
    %v3018 = vand.u32 %v3017, 4294901760
    %v3019 = vsub.f32 %v3017, %v3018
    %v3020 = vand.u32 %v3019, 4294901760
    %3021 = vmatprep.subr.mxu0 %v3020
    %v3022 = vand.u32 %v99, 4294901760
    %v3023 = vsub.f32 %v99, %v3022
    %v3024 = vand.u32 %v3023, 4294901760
    %v3025 = vsub.f32 %v3023, %v3024
    %v3026 = vand.u32 %v3025, 4294901760
    %3027 = vmatpush1.msra.mxu0 %v3026
    %v3028 = vand.u32 %v92, 4294901760
    %v3029 = vsub.f32 %v92, %v3028
    %v3030 = vand.u32 %v3029, 4294901760
    %v3031 = vsub.f32 %v3029, %v3030
    %v3032 = vand.u32 %v3031, 4294901760
    %3033 = vmatprep.subr.mxu0 %v3032
    %v3034 = vand.u32 %v91, 4294901760
    %v3035 = vsub.f32 %v91, %v3034
    %v3036 = vand.u32 %v3035, 4294901760
    %v3037 = vsub.f32 %v3035, %v3036
    %v3038 = vand.u32 %v3037, 4294901760
    %3039 = vmatpush1.msra.mxu0 %v3038
    %v3040 = vand.u32 %v84, 4294901760
    %v3041 = vsub.f32 %v84, %v3040
    %v3042 = vand.u32 %v3041, 4294901760
    %v3043 = vsub.f32 %v3041, %v3042
    %v3044 = vand.u32 %v3043, 4294901760
    %3045 = vmatprep.subr.mxu0 %v3044
    %v3046 = vand.u32 %v83, 4294901760
    %v3047 = vsub.f32 %v83, %v3046
    %v3048 = vand.u32 %v3047, 4294901760
    %v3049 = vsub.f32 %v3047, %v3048
    %v3050 = vand.u32 %v3049, 4294901760
    %3051 = vmatpush1.msra.mxu0 %v3050
    %v3052 = vand.u32 %v76, 4294901760
    %v3053 = vsub.f32 %v76, %v3052
    %v3054 = vand.u32 %v3053, 4294901760
    %v3055 = vsub.f32 %v3053, %v3054
    %v3056 = vand.u32 %v3055, 4294901760
    %3057 = vmatprep.subr.mxu0 %v3056
    %v3058 = vand.u32 %v75, 4294901760
    %v3059 = vsub.f32 %v75, %v3058
    %v3060 = vand.u32 %v3059, 4294901760
    %v3061 = vsub.f32 %v3059, %v3060
    %v3062 = vand.u32 %v3061, 4294901760
    %3063 = vmatpush1.msra.mxu0 %v3062
    %v3064 = vand.u32 %v68, 4294901760
    %v3065 = vsub.f32 %v68, %v3064
    %v3066 = vand.u32 %v3065, 4294901760
    %v3067 = vsub.f32 %v3065, %v3066
    %v3068 = vand.u32 %v3067, 4294901760
    %3069 = vmatprep.subr.mxu0 %v3068
    %v3070 = vand.u32 %v67, 4294901760
    %v3071 = vsub.f32 %v67, %v3070
    %v3072 = vand.u32 %v3071, 4294901760
    %v3073 = vsub.f32 %v3071, %v3072
    %v3074 = vand.u32 %v3073, 4294901760
    %3075 = vmatpush1.msra.mxu0 %v3074
    %v3076 = vand.u32 %v60, 4294901760
    %v3077 = vsub.f32 %v60, %v3076
    %v3078 = vand.u32 %v3077, 4294901760
    %v3079 = vsub.f32 %v3077, %v3078
    %v3080 = vand.u32 %v3079, 4294901760
    %3081 = vmatprep.subr.mxu0 %v3080
    %v3082 = vand.u32 %v59, 4294901760
    %v3083 = vsub.f32 %v59, %v3082
    %v3084 = vand.u32 %v3083, 4294901760
    %v3085 = vsub.f32 %v3083, %v3084
    %v3086 = vand.u32 %v3085, 4294901760
    %3087 = vmatpush1.msra.mxu0 %v3086
    %3088 = vmatprep.subr.mxu0 0.0
    %3089 = vmatpush2.msra.mxu0 0.0
    %3090 = vmatprep.subr.mxu0 0.0
    %3091 = vmatpush2.msra.mxu0 0.0
    %3092 = vmatprep.subr.mxu0 0.0
    %3093 = vmatpush2.msra.mxu0 0.0
    %3094 = vmatprep.subr.mxu0 0.0
    %3095 = vmatpush2.msra.mxu0 0.0
    %3096 = vmatprep.subr.mxu0 0.0
    %3097 = vmatpush2.msra.mxu0 0.0
    %3098 = vmatprep.subr.mxu0 0.0
    %3099 = vmatpush2.msra.mxu0 0.0
    %3100 = vmatprep.subr.mxu0 0.0
    %3101 = vmatpush2.msra.mxu0 0.0
    %3102 = vmatprep.subr.mxu0 0.0
    %3103 = vmatpush2.msra.mxu0 0.0
    %3104 = vmatprep.subr.mxu0 0.0
    %3105 = vmatpush2.msra.mxu0 0.0
    %3106 = vmatprep.subr.mxu0 0.0
    %3107 = vmatpush2.msra.mxu0 0.0
    %3108 = vmatprep.subr.mxu0 0.0
    %3109 = vmatpush2.msra.mxu0 0.0
    %3110 = vmatprep.subr.mxu0 0.0
    %3111 = vmatpush2.msra.mxu0 0.0
    %3112 = vmatprep.subr.mxu0 0.0
    %3113 = vmatpush2.msra.mxu0 0.0
    %3114 = vmatprep.subr.mxu0 0.0
    %3115 = vmatpush2.msra.mxu0 0.0
    %3116 = vmatprep.subr.mxu0 0.0
    %3117 = vmatpush2.msra.mxu0 0.0
    %3118 = vmatprep.subr.mxu0 0.0
    %3119 = vmatpush2.msra.mxu0 0.0
    %3120 = vmatprep.mubr.f32.mxu0 0.0
    %v3121 = vand.u32 %v52, 4294901760
    %3122 = vmatmul.mubr.f32.gmra.mxu0 %v3121
    %v3123 = vpop.f32.mrf.mxu0
    %v3124 = vadd.f32 %v2892, %v3123
    %v3125 = vpop.f32.mrf.mxu0
    %v3126 = vadd.f32 %v2894, %v3125
    %3127 = vdwg.mxu0
    %v3128 = vand.u32 %v180, 4294901760
    %v3129 = vsub.f32 %v180, %v3128
    %3130 = vmatprep.subr.mxu0 %v3129
    %v3131 = vand.u32 %v179, 4294901760
    %v3132 = vsub.f32 %v179, %v3131
    %3133 = vmatpush1.msra.mxu0 %v3132
    %v3134 = vand.u32 %v172, 4294901760
    %v3135 = vsub.f32 %v172, %v3134
    %3136 = vmatprep.subr.mxu0 %v3135
    %v3137 = vand.u32 %v171, 4294901760
    %v3138 = vsub.f32 %v171, %v3137
    %3139 = vmatpush1.msra.mxu0 %v3138
    %v3140 = vand.u32 %v164, 4294901760
    %v3141 = vsub.f32 %v164, %v3140
    %3142 = vmatprep.subr.mxu0 %v3141
    %v3143 = vand.u32 %v163, 4294901760
    %v3144 = vsub.f32 %v163, %v3143
    %3145 = vmatpush1.msra.mxu0 %v3144
    %v3146 = vand.u32 %v156, 4294901760
    %v3147 = vsub.f32 %v156, %v3146
    %3148 = vmatprep.subr.mxu0 %v3147
    %v3149 = vand.u32 %v155, 4294901760
    %v3150 = vsub.f32 %v155, %v3149
    %3151 = vmatpush1.msra.mxu0 %v3150
    %v3152 = vand.u32 %v148, 4294901760
    %v3153 = vsub.f32 %v148, %v3152
    %3154 = vmatprep.subr.mxu0 %v3153
    %v3155 = vand.u32 %v147, 4294901760
    %v3156 = vsub.f32 %v147, %v3155
    %3157 = vmatpush1.msra.mxu0 %v3156
    %v3158 = vand.u32 %v140, 4294901760
    %v3159 = vsub.f32 %v140, %v3158
    %3160 = vmatprep.subr.mxu0 %v3159
    %v3161 = vand.u32 %v139, 4294901760
    %v3162 = vsub.f32 %v139, %v3161
    %3163 = vmatpush1.msra.mxu0 %v3162
    %v3164 = vand.u32 %v132, 4294901760
    %v3165 = vsub.f32 %v132, %v3164
    %3166 = vmatprep.subr.mxu0 %v3165
    %v3167 = vand.u32 %v131, 4294901760
    %v3168 = vsub.f32 %v131, %v3167
    %3169 = vmatpush1.msra.mxu0 %v3168
    %v3170 = vand.u32 %v124, 4294901760
    %v3171 = vsub.f32 %v124, %v3170
    %3172 = vmatprep.subr.mxu0 %v3171
    %v3173 = vand.u32 %v123, 4294901760
    %v3174 = vsub.f32 %v123, %v3173
    %3175 = vmatpush1.msra.mxu0 %v3174
    %v3176 = vand.u32 %v116, 4294901760
    %v3177 = vsub.f32 %v116, %v3176
    %3178 = vmatprep.subr.mxu0 %v3177
    %v3179 = vand.u32 %v115, 4294901760
    %v3180 = vsub.f32 %v115, %v3179
    %3181 = vmatpush1.msra.mxu0 %v3180
    %v3182 = vand.u32 %v108, 4294901760
    %v3183 = vsub.f32 %v108, %v3182
    %3184 = vmatprep.subr.mxu0 %v3183
    %v3185 = vand.u32 %v107, 4294901760
    %v3186 = vsub.f32 %v107, %v3185
    %3187 = vmatpush1.msra.mxu0 %v3186
    %v3188 = vand.u32 %v100, 4294901760
    %v3189 = vsub.f32 %v100, %v3188
    %3190 = vmatprep.subr.mxu0 %v3189
    %v3191 = vand.u32 %v99, 4294901760
    %v3192 = vsub.f32 %v99, %v3191
    %3193 = vmatpush1.msra.mxu0 %v3192
    %v3194 = vand.u32 %v92, 4294901760
    %v3195 = vsub.f32 %v92, %v3194
    %3196 = vmatprep.subr.mxu0 %v3195
    %v3197 = vand.u32 %v91, 4294901760
    %v3198 = vsub.f32 %v91, %v3197
    %3199 = vmatpush1.msra.mxu0 %v3198
    %v3200 = vand.u32 %v84, 4294901760
    %v3201 = vsub.f32 %v84, %v3200
    %3202 = vmatprep.subr.mxu0 %v3201
    %v3203 = vand.u32 %v83, 4294901760
    %v3204 = vsub.f32 %v83, %v3203
    %3205 = vmatpush1.msra.mxu0 %v3204
    %v3206 = vand.u32 %v76, 4294901760
    %v3207 = vsub.f32 %v76, %v3206
    %3208 = vmatprep.subr.mxu0 %v3207
    %v3209 = vand.u32 %v75, 4294901760
    %v3210 = vsub.f32 %v75, %v3209
    %3211 = vmatpush1.msra.mxu0 %v3210
    %v3212 = vand.u32 %v68, 4294901760
    %v3213 = vsub.f32 %v68, %v3212
    %3214 = vmatprep.subr.mxu0 %v3213
    %v3215 = vand.u32 %v67, 4294901760
    %v3216 = vsub.f32 %v67, %v3215
    %3217 = vmatpush1.msra.mxu0 %v3216
    %v3218 = vand.u32 %v60, 4294901760
    %v3219 = vsub.f32 %v60, %v3218
    %3220 = vmatprep.subr.mxu0 %v3219
    %v3221 = vand.u32 %v59, 4294901760
    %v3222 = vsub.f32 %v59, %v3221
    %3223 = vmatpush1.msra.mxu0 %v3222
    %3224 = vmatprep.subr.mxu0 0.0
    %3225 = vmatpush2.msra.mxu0 0.0
    %3226 = vmatprep.subr.mxu0 0.0
    %3227 = vmatpush2.msra.mxu0 0.0
    %3228 = vmatprep.subr.mxu0 0.0
    %3229 = vmatpush2.msra.mxu0 0.0
    %3230 = vmatprep.subr.mxu0 0.0
    %3231 = vmatpush2.msra.mxu0 0.0
    %3232 = vmatprep.subr.mxu0 0.0
    %3233 = vmatpush2.msra.mxu0 0.0
    %3234 = vmatprep.subr.mxu0 0.0
    %3235 = vmatpush2.msra.mxu0 0.0
    %3236 = vmatprep.subr.mxu0 0.0
    %3237 = vmatpush2.msra.mxu0 0.0
    %3238 = vmatprep.subr.mxu0 0.0
    %3239 = vmatpush2.msra.mxu0 0.0
    %3240 = vmatprep.subr.mxu0 0.0
    %3241 = vmatpush2.msra.mxu0 0.0
    %3242 = vmatprep.subr.mxu0 0.0
    %3243 = vmatpush2.msra.mxu0 0.0
    %3244 = vmatprep.subr.mxu0 0.0
    %3245 = vmatpush2.msra.mxu0 0.0
    %3246 = vmatprep.subr.mxu0 0.0
    %3247 = vmatpush2.msra.mxu0 0.0
    %3248 = vmatprep.subr.mxu0 0.0
    %3249 = vmatpush2.msra.mxu0 0.0
    %3250 = vmatprep.subr.mxu0 0.0
    %3251 = vmatpush2.msra.mxu0 0.0
    %3252 = vmatprep.subr.mxu0 0.0
    %3253 = vmatpush2.msra.mxu0 0.0
    %3254 = vmatprep.subr.mxu0 0.0
    %3255 = vmatpush2.msra.mxu0 0.0
    %3256 = vmatprep.mubr.f32.mxu0 0.0
    %v3257 = vand.u32 %v52, 4294901760
    %v3258 = vsub.f32 %v52, %v3257
    %3259 = vmatmul.mubr.f32.gmra.mxu0 %v3258
    %v3260 = vpop.f32.mrf.mxu0
    %v3261 = vadd.f32 %v3124, %v3260
    %v3262 = vpop.f32.mrf.mxu0
    %v3263 = vadd.f32 %v3126, %v3262
    %3264 = vdwg.mxu0
    %v3265 = vand.u32 %v180, 4294901760
    %3266 = vmatprep.subr.mxu0 %v3265
    %v3267 = vand.u32 %v179, 4294901760
    %3268 = vmatpush1.msra.mxu0 %v3267
    %v3269 = vand.u32 %v172, 4294901760
    %3270 = vmatprep.subr.mxu0 %v3269
    %v3271 = vand.u32 %v171, 4294901760
    %3272 = vmatpush1.msra.mxu0 %v3271
    %v3273 = vand.u32 %v164, 4294901760
    %3274 = vmatprep.subr.mxu0 %v3273
    %v3275 = vand.u32 %v163, 4294901760
    %3276 = vmatpush1.msra.mxu0 %v3275
    %v3277 = vand.u32 %v156, 4294901760
    %3278 = vmatprep.subr.mxu0 %v3277
    %v3279 = vand.u32 %v155, 4294901760
    %3280 = vmatpush1.msra.mxu0 %v3279
    %v3281 = vand.u32 %v148, 4294901760
    %3282 = vmatprep.subr.mxu0 %v3281
    %v3283 = vand.u32 %v147, 4294901760
    %3284 = vmatpush1.msra.mxu0 %v3283
    %v3285 = vand.u32 %v140, 4294901760
    %3286 = vmatprep.subr.mxu0 %v3285
    %v3287 = vand.u32 %v139, 4294901760
    %3288 = vmatpush1.msra.mxu0 %v3287
    %v3289 = vand.u32 %v132, 4294901760
    %3290 = vmatprep.subr.mxu0 %v3289
    %v3291 = vand.u32 %v131, 4294901760
    %3292 = vmatpush1.msra.mxu0 %v3291
    %v3293 = vand.u32 %v124, 4294901760
    %3294 = vmatprep.subr.mxu0 %v3293
    %v3295 = vand.u32 %v123, 4294901760
    %3296 = vmatpush1.msra.mxu0 %v3295
    %v3297 = vand.u32 %v116, 4294901760
    %3298 = vmatprep.subr.mxu0 %v3297
    %v3299 = vand.u32 %v115, 4294901760
    %3300 = vmatpush1.msra.mxu0 %v3299
    %v3301 = vand.u32 %v108, 4294901760
    %3302 = vmatprep.subr.mxu0 %v3301
    %v3303 = vand.u32 %v107, 4294901760
    %3304 = vmatpush1.msra.mxu0 %v3303
    %v3305 = vand.u32 %v100, 4294901760
    %3306 = vmatprep.subr.mxu0 %v3305
    %v3307 = vand.u32 %v99, 4294901760
    %3308 = vmatpush1.msra.mxu0 %v3307
    %v3309 = vand.u32 %v92, 4294901760
    %3310 = vmatprep.subr.mxu0 %v3309
    %v3311 = vand.u32 %v91, 4294901760
    %3312 = vmatpush1.msra.mxu0 %v3311
    %v3313 = vand.u32 %v84, 4294901760
    %3314 = vmatprep.subr.mxu0 %v3313
    %v3315 = vand.u32 %v83, 4294901760
    %3316 = vmatpush1.msra.mxu0 %v3315
    %v3317 = vand.u32 %v76, 4294901760
    %3318 = vmatprep.subr.mxu0 %v3317
    %v3319 = vand.u32 %v75, 4294901760
    %3320 = vmatpush1.msra.mxu0 %v3319
    %v3321 = vand.u32 %v68, 4294901760
    %3322 = vmatprep.subr.mxu0 %v3321
    %v3323 = vand.u32 %v67, 4294901760
    %3324 = vmatpush1.msra.mxu0 %v3323
    %v3325 = vand.u32 %v60, 4294901760
    %3326 = vmatprep.subr.mxu0 %v3325
    %v3327 = vand.u32 %v59, 4294901760
    %3328 = vmatpush1.msra.mxu0 %v3327
    %3329 = vmatprep.subr.mxu0 0.0
    %3330 = vmatpush2.msra.mxu0 0.0
    %3331 = vmatprep.subr.mxu0 0.0
    %3332 = vmatpush2.msra.mxu0 0.0
    %3333 = vmatprep.subr.mxu0 0.0
    %3334 = vmatpush2.msra.mxu0 0.0
    %3335 = vmatprep.subr.mxu0 0.0
    %3336 = vmatpush2.msra.mxu0 0.0
    %3337 = vmatprep.subr.mxu0 0.0
    %3338 = vmatpush2.msra.mxu0 0.0
    %3339 = vmatprep.subr.mxu0 0.0
    %3340 = vmatpush2.msra.mxu0 0.0
    %3341 = vmatprep.subr.mxu0 0.0
    %3342 = vmatpush2.msra.mxu0 0.0
    %3343 = vmatprep.subr.mxu0 0.0
    %3344 = vmatpush2.msra.mxu0 0.0
    %3345 = vmatprep.subr.mxu0 0.0
    %3346 = vmatpush2.msra.mxu0 0.0
    %3347 = vmatprep.subr.mxu0 0.0
    %3348 = vmatpush2.msra.mxu0 0.0
    %3349 = vmatprep.subr.mxu0 0.0
    %3350 = vmatpush2.msra.mxu0 0.0
    %3351 = vmatprep.subr.mxu0 0.0
    %3352 = vmatpush2.msra.mxu0 0.0
    %3353 = vmatprep.subr.mxu0 0.0
    %3354 = vmatpush2.msra.mxu0 0.0
    %3355 = vmatprep.subr.mxu0 0.0
    %3356 = vmatpush2.msra.mxu0 0.0
    %3357 = vmatprep.subr.mxu0 0.0
    %3358 = vmatpush2.msra.mxu0 0.0
    %3359 = vmatprep.subr.mxu0 0.0
    %3360 = vmatpush2.msra.mxu0 0.0
    %3361 = vmatprep.mubr.f32.mxu0 0.0
    %v3362 = vand.u32 %v52, 4294901760
    %v3363 = vsub.f32 %v52, %v3362
    %v3364 = vand.u32 %v3363, 4294901760
    %3365 = vmatmul.mubr.f32.gmra.mxu0 %v3364
    %v3366 = vpop.f32.mrf.mxu0
    %v3367 = vadd.f32 %v3261, %v3366
    %v3368 = vpop.f32.mrf.mxu0
    %v3369 = vadd.f32 %v3263, %v3368
    %3370 = vdwg.mxu0
    %v3371 = vand.u32 %v180, 4294901760
    %v3372 = vsub.f32 %v180, %v3371
    %v3373 = vand.u32 %v3372, 4294901760
    %3374 = vmatprep.subr.mxu0 %v3373
    %v3375 = vand.u32 %v179, 4294901760
    %v3376 = vsub.f32 %v179, %v3375
    %v3377 = vand.u32 %v3376, 4294901760
    %3378 = vmatpush1.msra.mxu0 %v3377
    %v3379 = vand.u32 %v172, 4294901760
    %v3380 = vsub.f32 %v172, %v3379
    %v3381 = vand.u32 %v3380, 4294901760
    %3382 = vmatprep.subr.mxu0 %v3381
    %v3383 = vand.u32 %v171, 4294901760
    %v3384 = vsub.f32 %v171, %v3383
    %v3385 = vand.u32 %v3384, 4294901760
    %3386 = vmatpush1.msra.mxu0 %v3385
    %v3387 = vand.u32 %v164, 4294901760
    %v3388 = vsub.f32 %v164, %v3387
    %v3389 = vand.u32 %v3388, 4294901760
    %3390 = vmatprep.subr.mxu0 %v3389
    %v3391 = vand.u32 %v163, 4294901760
    %v3392 = vsub.f32 %v163, %v3391
    %v3393 = vand.u32 %v3392, 4294901760
    %3394 = vmatpush1.msra.mxu0 %v3393
    %v3395 = vand.u32 %v156, 4294901760
    %v3396 = vsub.f32 %v156, %v3395
    %v3397 = vand.u32 %v3396, 4294901760
    %3398 = vmatprep.subr.mxu0 %v3397
    %v3399 = vand.u32 %v155, 4294901760
    %v3400 = vsub.f32 %v155, %v3399
    %v3401 = vand.u32 %v3400, 4294901760
    %3402 = vmatpush1.msra.mxu0 %v3401
    %v3403 = vand.u32 %v148, 4294901760
    %v3404 = vsub.f32 %v148, %v3403
    %v3405 = vand.u32 %v3404, 4294901760
    %3406 = vmatprep.subr.mxu0 %v3405
    %v3407 = vand.u32 %v147, 4294901760
    %v3408 = vsub.f32 %v147, %v3407
    %v3409 = vand.u32 %v3408, 4294901760
    %3410 = vmatpush1.msra.mxu0 %v3409
    %v3411 = vand.u32 %v140, 4294901760
    %v3412 = vsub.f32 %v140, %v3411
    %v3413 = vand.u32 %v3412, 4294901760
    %3414 = vmatprep.subr.mxu0 %v3413
    %v3415 = vand.u32 %v139, 4294901760
    %v3416 = vsub.f32 %v139, %v3415
    %v3417 = vand.u32 %v3416, 4294901760
    %3418 = vmatpush1.msra.mxu0 %v3417
    %v3419 = vand.u32 %v132, 4294901760
    %v3420 = vsub.f32 %v132, %v3419
    %v3421 = vand.u32 %v3420, 4294901760
    %3422 = vmatprep.subr.mxu0 %v3421
    %v3423 = vand.u32 %v131, 4294901760
    %v3424 = vsub.f32 %v131, %v3423
    %v3425 = vand.u32 %v3424, 4294901760
    %3426 = vmatpush1.msra.mxu0 %v3425
    %v3427 = vand.u32 %v124, 4294901760
    %v3428 = vsub.f32 %v124, %v3427
    %v3429 = vand.u32 %v3428, 4294901760
    %3430 = vmatprep.subr.mxu0 %v3429
    %v3431 = vand.u32 %v123, 4294901760
    %v3432 = vsub.f32 %v123, %v3431
    %v3433 = vand.u32 %v3432, 4294901760
    %3434 = vmatpush1.msra.mxu0 %v3433
    %v3435 = vand.u32 %v116, 4294901760
    %v3436 = vsub.f32 %v116, %v3435
    %v3437 = vand.u32 %v3436, 4294901760
    %3438 = vmatprep.subr.mxu0 %v3437
    %v3439 = vand.u32 %v115, 4294901760
    %v3440 = vsub.f32 %v115, %v3439
    %v3441 = vand.u32 %v3440, 4294901760
    %3442 = vmatpush1.msra.mxu0 %v3441
    %v3443 = vand.u32 %v108, 4294901760
    %v3444 = vsub.f32 %v108, %v3443
    %v3445 = vand.u32 %v3444, 4294901760
    %3446 = vmatprep.subr.mxu0 %v3445
    %v3447 = vand.u32 %v107, 4294901760
    %v3448 = vsub.f32 %v107, %v3447
    %v3449 = vand.u32 %v3448, 4294901760
    %3450 = vmatpush1.msra.mxu0 %v3449
    %v3451 = vand.u32 %v100, 4294901760
    %v3452 = vsub.f32 %v100, %v3451
    %v3453 = vand.u32 %v3452, 4294901760
    %3454 = vmatprep.subr.mxu0 %v3453
    %v3455 = vand.u32 %v99, 4294901760
    %v3456 = vsub.f32 %v99, %v3455
    %v3457 = vand.u32 %v3456, 4294901760
    %3458 = vmatpush1.msra.mxu0 %v3457
    %v3459 = vand.u32 %v92, 4294901760
    %v3460 = vsub.f32 %v92, %v3459
    %v3461 = vand.u32 %v3460, 4294901760
    %3462 = vmatprep.subr.mxu0 %v3461
    %v3463 = vand.u32 %v91, 4294901760
    %v3464 = vsub.f32 %v91, %v3463
    %v3465 = vand.u32 %v3464, 4294901760
    %3466 = vmatpush1.msra.mxu0 %v3465
    %v3467 = vand.u32 %v84, 4294901760
    %v3468 = vsub.f32 %v84, %v3467
    %v3469 = vand.u32 %v3468, 4294901760
    %3470 = vmatprep.subr.mxu0 %v3469
    %v3471 = vand.u32 %v83, 4294901760
    %v3472 = vsub.f32 %v83, %v3471
    %v3473 = vand.u32 %v3472, 4294901760
    %3474 = vmatpush1.msra.mxu0 %v3473
    %v3475 = vand.u32 %v76, 4294901760
    %v3476 = vsub.f32 %v76, %v3475
    %v3477 = vand.u32 %v3476, 4294901760
    %3478 = vmatprep.subr.mxu0 %v3477
    %v3479 = vand.u32 %v75, 4294901760
    %v3480 = vsub.f32 %v75, %v3479
    %v3481 = vand.u32 %v3480, 4294901760
    %3482 = vmatpush1.msra.mxu0 %v3481
    %v3483 = vand.u32 %v68, 4294901760
    %v3484 = vsub.f32 %v68, %v3483
    %v3485 = vand.u32 %v3484, 4294901760
    %3486 = vmatprep.subr.mxu0 %v3485
    %v3487 = vand.u32 %v67, 4294901760
    %v3488 = vsub.f32 %v67, %v3487
    %v3489 = vand.u32 %v3488, 4294901760
    %3490 = vmatpush1.msra.mxu0 %v3489
    %v3491 = vand.u32 %v60, 4294901760
    %v3492 = vsub.f32 %v60, %v3491
    %v3493 = vand.u32 %v3492, 4294901760
    %3494 = vmatprep.subr.mxu0 %v3493
    %v3495 = vand.u32 %v59, 4294901760
    %v3496 = vsub.f32 %v59, %v3495
    %v3497 = vand.u32 %v3496, 4294901760
    %3498 = vmatpush1.msra.mxu0 %v3497
    %3499 = vmatprep.subr.mxu0 0.0
    %3500 = vmatpush2.msra.mxu0 0.0
    %3501 = vmatprep.subr.mxu0 0.0
    %3502 = vmatpush2.msra.mxu0 0.0
    %3503 = vmatprep.subr.mxu0 0.0
    %3504 = vmatpush2.msra.mxu0 0.0
    %3505 = vmatprep.subr.mxu0 0.0
    %3506 = vmatpush2.msra.mxu0 0.0
    %3507 = vmatprep.subr.mxu0 0.0
    %3508 = vmatpush2.msra.mxu0 0.0
    %3509 = vmatprep.subr.mxu0 0.0
    %3510 = vmatpush2.msra.mxu0 0.0
    %3511 = vmatprep.subr.mxu0 0.0
    %3512 = vmatpush2.msra.mxu0 0.0
    %3513 = vmatprep.subr.mxu0 0.0
    %3514 = vmatpush2.msra.mxu0 0.0
    %3515 = vmatprep.subr.mxu0 0.0
    %3516 = vmatpush2.msra.mxu0 0.0
    %3517 = vmatprep.subr.mxu0 0.0
    %3518 = vmatpush2.msra.mxu0 0.0
    %3519 = vmatprep.subr.mxu0 0.0
    %3520 = vmatpush2.msra.mxu0 0.0
    %3521 = vmatprep.subr.mxu0 0.0
    %3522 = vmatpush2.msra.mxu0 0.0
    %3523 = vmatprep.subr.mxu0 0.0
    %3524 = vmatpush2.msra.mxu0 0.0
    %3525 = vmatprep.subr.mxu0 0.0
    %3526 = vmatpush2.msra.mxu0 0.0
    %3527 = vmatprep.subr.mxu0 0.0
    %3528 = vmatpush2.msra.mxu0 0.0
    %3529 = vmatprep.subr.mxu0 0.0
    %3530 = vmatpush2.msra.mxu0 0.0
    %3531 = vmatprep.mubr.f32.mxu0 0.0
    %v3532 = vand.u32 %v52, 4294901760
    %3533 = vmatmul.mubr.f32.gmra.mxu0 %v3532
    %v3534 = vpop.f32.mrf.mxu0
    %v3535 = vadd.f32 %v3367, %v3534
    %v3536 = vpop.f32.mrf.mxu0
    %v3537 = vadd.f32 %v3369, %v3536
    %3538 = vdwg.mxu0
    %v3539 = vand.u32 %v180, 4294901760
    %3540 = vmatprep.subr.mxu0 %v3539
    %v3541 = vand.u32 %v179, 4294901760
    %3542 = vmatpush1.msra.mxu0 %v3541
    %v3543 = vand.u32 %v172, 4294901760
    %3544 = vmatprep.subr.mxu0 %v3543
    %v3545 = vand.u32 %v171, 4294901760
    %3546 = vmatpush1.msra.mxu0 %v3545
    %v3547 = vand.u32 %v164, 4294901760
    %3548 = vmatprep.subr.mxu0 %v3547
    %v3549 = vand.u32 %v163, 4294901760
    %3550 = vmatpush1.msra.mxu0 %v3549
    %v3551 = vand.u32 %v156, 4294901760
    %3552 = vmatprep.subr.mxu0 %v3551
    %v3553 = vand.u32 %v155, 4294901760
    %3554 = vmatpush1.msra.mxu0 %v3553
    %v3555 = vand.u32 %v148, 4294901760
    %3556 = vmatprep.subr.mxu0 %v3555
    %v3557 = vand.u32 %v147, 4294901760
    %3558 = vmatpush1.msra.mxu0 %v3557
    %v3559 = vand.u32 %v140, 4294901760
    %3560 = vmatprep.subr.mxu0 %v3559
    %v3561 = vand.u32 %v139, 4294901760
    %3562 = vmatpush1.msra.mxu0 %v3561
    %v3563 = vand.u32 %v132, 4294901760
    %3564 = vmatprep.subr.mxu0 %v3563
    %v3565 = vand.u32 %v131, 4294901760
    %3566 = vmatpush1.msra.mxu0 %v3565
    %v3567 = vand.u32 %v124, 4294901760
    %3568 = vmatprep.subr.mxu0 %v3567
    %v3569 = vand.u32 %v123, 4294901760
    %3570 = vmatpush1.msra.mxu0 %v3569
    %v3571 = vand.u32 %v116, 4294901760
    %3572 = vmatprep.subr.mxu0 %v3571
    %v3573 = vand.u32 %v115, 4294901760
    %3574 = vmatpush1.msra.mxu0 %v3573
    %v3575 = vand.u32 %v108, 4294901760
    %3576 = vmatprep.subr.mxu0 %v3575
    %v3577 = vand.u32 %v107, 4294901760
    %3578 = vmatpush1.msra.mxu0 %v3577
    %v3579 = vand.u32 %v100, 4294901760
    %3580 = vmatprep.subr.mxu0 %v3579
    %v3581 = vand.u32 %v99, 4294901760
    %3582 = vmatpush1.msra.mxu0 %v3581
    %v3583 = vand.u32 %v92, 4294901760
    %3584 = vmatprep.subr.mxu0 %v3583
    %v3585 = vand.u32 %v91, 4294901760
    %3586 = vmatpush1.msra.mxu0 %v3585
    %v3587 = vand.u32 %v84, 4294901760
    %3588 = vmatprep.subr.mxu0 %v3587
    %v3589 = vand.u32 %v83, 4294901760
    %3590 = vmatpush1.msra.mxu0 %v3589
    %v3591 = vand.u32 %v76, 4294901760
    %3592 = vmatprep.subr.mxu0 %v3591
    %v3593 = vand.u32 %v75, 4294901760
    %3594 = vmatpush1.msra.mxu0 %v3593
    %v3595 = vand.u32 %v68, 4294901760
    %3596 = vmatprep.subr.mxu0 %v3595
    %v3597 = vand.u32 %v67, 4294901760
    %3598 = vmatpush1.msra.mxu0 %v3597
    %v3599 = vand.u32 %v60, 4294901760
    %3600 = vmatprep.subr.mxu0 %v3599
    %v3601 = vand.u32 %v59, 4294901760
    %3602 = vmatpush1.msra.mxu0 %v3601
    %3603 = vmatprep.subr.mxu0 0.0
    %3604 = vmatpush2.msra.mxu0 0.0
    %3605 = vmatprep.subr.mxu0 0.0
    %3606 = vmatpush2.msra.mxu0 0.0
    %3607 = vmatprep.subr.mxu0 0.0
    %3608 = vmatpush2.msra.mxu0 0.0
    %3609 = vmatprep.subr.mxu0 0.0
    %3610 = vmatpush2.msra.mxu0 0.0
    %3611 = vmatprep.subr.mxu0 0.0
    %3612 = vmatpush2.msra.mxu0 0.0
    %3613 = vmatprep.subr.mxu0 0.0
    %3614 = vmatpush2.msra.mxu0 0.0
    %3615 = vmatprep.subr.mxu0 0.0
    %3616 = vmatpush2.msra.mxu0 0.0
    %3617 = vmatprep.subr.mxu0 0.0
    %3618 = vmatpush2.msra.mxu0 0.0
    %3619 = vmatprep.subr.mxu0 0.0
    %3620 = vmatpush2.msra.mxu0 0.0
    %3621 = vmatprep.subr.mxu0 0.0
    %3622 = vmatpush2.msra.mxu0 0.0
    %3623 = vmatprep.subr.mxu0 0.0
    %3624 = vmatpush2.msra.mxu0 0.0
    %3625 = vmatprep.subr.mxu0 0.0
    %3626 = vmatpush2.msra.mxu0 0.0
    %3627 = vmatprep.subr.mxu0 0.0
    %3628 = vmatpush2.msra.mxu0 0.0
    %3629 = vmatprep.subr.mxu0 0.0
    %3630 = vmatpush2.msra.mxu0 0.0
    %3631 = vmatprep.subr.mxu0 0.0
    %3632 = vmatpush2.msra.mxu0 0.0
    %3633 = vmatprep.subr.mxu0 0.0
    %3634 = vmatpush2.msra.mxu0 0.0
    %3635 = vmatprep.mubr.f32.mxu0 0.0
    %v3636 = vand.u32 %v52, 4294901760
    %3637 = vmatmul.mubr.f32.gmra.mxu0 %v3636
    %v3638 = vpop.f32.mrf.mxu0
    %v3639 = vadd.f32 %v3535, %v3638
    %v3640 = vpop.f32.mrf.mxu0
    %v3641 = vadd.f32 %v3537, %v3640
    %3642 = vdwg.mxu0
    %v3643 = vmax.f32 %v1074, 0.0
    %v3644 = vmax.f32 %v1076, 0.0
    %v3645 = vmax.f32 %v1929, 0.0
    %v3646 = vmax.f32 %v1931, 0.0
    %v3647 = vmax.f32 %v2784, 0.0
    %v3648 = vmax.f32 %v2786, 0.0
    %v3649 = vmax.f32 %v3639, 0.0
    %v3650 = vmax.f32 %v3641, 0.0
    %v3659 = vcombine.low %v3643, %v3644
    %v3660 = vcombine.low %v3645, %v3646
    %v3661 = vcombine.low %v3647, %v3648
    %v3662 = vcombine.low %v3649, %v3650
    %3667 = vst [vmem:[#allocation8] sm:$0xff] %v3659
    %3668 = vst [vmem:[#allocation8 + $0x8] sm:$0xff] %v3660
    %3669 = vst [vmem:[#allocation8 + $0x10] sm:$0xff] %v3661
    %3670 = vst [vmem:[#allocation8 + $0x18] sm:$0xff] %v3662
    // Predicated region
    $region26: #{tpu_custom_call.1} parent=1 // pred_check
      _
    $region27: #{tpu_custom_call.1} parent=1 // pred_check_branch
      %3672 = sbr.rel (0) target = $region29
    $region28: #{tpu_custom_call.1} parent=1 // pred_region
      %s3674 = ssub.s32 512, 512
      %3675 = vsyncadd [#allocation4], %s3674
      %s3677 = sshll.u32 [#allocation8], 4
      %s3678 = int_to_ptr.vmem [resolvable:$true] %s3677
      %3680 = dma.vmem_to_hbm [thread:$0]  %s3678, 512, %s3, [#allocation4]
    $region29: #{tpu_custom_call.1} parent=1 // pred_fallthru
      _
    // Predicated region
    $region30: #{tpu_custom_call.1} parent=1 // pred_check
      _
    $region31: #{tpu_custom_call.1} parent=1 // pred_check_branch
      %3682 = sbr.rel (0) target = $region33
    $region32: #{tpu_custom_call.1} parent=1 // pred_region
      %3683 = dma.done [#allocation4], 512
    $region33: #{tpu_custom_call.1} parent=1 // pred_fallthru
      _
    %3684 = vsyncpa [#allocation3], 1
    %3685 = vsyncpa [#allocation6], 1
    %3686 = vsyncpa [#allocation4], 1

</llo_original>
